<compile_context>
chip_gen: v5e
topology: v5e:2x2
jax: 0.10.0
libtpu: 0.0.40
codegen_flags: <defaults>
</compile_context>

<pallas_src>
import functools

import numpy as np
import jax
import jax.numpy as jnp
from jax.experimental import pallas as pl
from jax.experimental.pallas import tpu as pltpu

BN_EPS = 1e-3            # MobileNetV3 uses partial(BatchNorm2d, eps=0.001)
LANE = 128               # TPU vreg lane width -> lane-dense channel padding
VMEM_LIMIT = 32 * 1024 * 1024


def _make_divisible(ch, divisor=8, min_ch=None):
    if min_ch is None:
        min_ch = divisor
    new_ch = max(min_ch, int(ch + divisor / 2) // divisor * divisor)
    if new_ch < 0.9 * ch:
        new_ch += divisor
    return new_ch


def _pad_ch(c):
    return max(LANE, ((c + LANE - 1) // LANE) * LANE)


def _choose_tile(hw, cap=1024):
    """Largest spatial tile (rows) that divides hw, is sublane-aligned, <= cap."""
    if hw <= cap:
        return hw
    for t in range(cap, 7, -1):
        if hw % t == 0 and t % 8 == 0:
            return t
    return hw


def _act(y, act):
    if act == "relu":
        return jnp.maximum(y, 0.0)
    if act == "relu6":
        return jnp.clip(y, 0.0, 6.0)
    if act == "hardswish":
        return y * jnp.clip(y + 3.0, 0.0, 6.0) * (1.0 / 6.0)
    if act == "identity":
        return y
    raise ValueError(act)


# ----------------------------- Pallas kernels ------------------------------

def _conv_taps_kernel(tap_ref, w_ref, shift_ref, o_ref, acc_ref, *, act, nt):
    # General conv as a taps-reduction of small matmuls (stem 3x3/s2).
    # grid = (batch, hw_tiles, taps); taps is the last (reduction) axis.
    t = pl.program_id(2)

    @pl.when(t == 0)
    def _():
        acc_ref[...] = jnp.zeros_like(acc_ref)

    x = tap_ref[0, 0].astype(jnp.bfloat16)                       # (TILE, Cin)
    acc_ref[...] += jnp.dot(x, w_ref[0],                         # (Cin, Cout) bf16
                            preferred_element_type=jnp.float32)

    @pl.when(t == nt - 1)
    def _():
        y = _act(acc_ref[...] + shift_ref[...], act)
        o_ref[0] = y.astype(o_ref.dtype)


def _dw_taps_kernel(tap_ref, w_ref, shift_ref, *rest, act, nt, with_pool):
    # Depthwise conv: elementwise FMA over k*k taps (VPU) with fused BN shift +
    # activation; optionally also emits the SE spatial pooled sum (no extra
    # HBM read of the activation later).
    if with_pool:
        o_ref, pool_ref, acc_ref = rest
    else:
        (o_ref, acc_ref), pool_ref = rest, None
    t = pl.program_id(2)

    @pl.when(t == 0)
    def _():
        acc_ref[...] = jnp.zeros_like(acc_ref)

    if with_pool:
        @pl.when(jnp.logical_and(t == 0, pl.program_id(1) == 0))
        def _():
            pool_ref[...] = jnp.zeros_like(pool_ref)

    acc_ref[...] += tap_ref[0, 0].astype(jnp.float32) * w_ref[0]  # (TILE,C)*(1,C)

    @pl.when(t == nt - 1)
    def _():
        y = _act(acc_ref[...] + shift_ref[...], act)
        o_ref[0] = y.astype(o_ref.dtype)
        if with_pool:
            pool_ref[0] += jnp.sum(y, axis=0, keepdims=True)      # (1, C)


def _pw_kernel(*refs, act, with_scale, with_res):
    # Fused pointwise conv / linear: optional SE channel-scale on the input,
    # bf16 MXU matmul, BN shift + activation, optional fused residual add.
    refs = list(refs)
    x_ref = refs.pop(0)
    scale_ref = refs.pop(0) if with_scale else None
    res_ref = refs.pop(0) if with_res else None
    w_ref, shift_ref, o_ref = refs

    x = x_ref[0]                                                 # (TILE, Cin)
    if with_scale:
        x = x.astype(jnp.float32) * scale_ref[0]                 # (1, Cin) bcast
    y = jnp.dot(x.astype(jnp.bfloat16), w_ref[...],
                preferred_element_type=jnp.float32)
    y = _act(y + shift_ref[...], act)
    if with_res:
        y = y + res_ref[0].astype(jnp.float32)
    o_ref[0] = y.astype(o_ref.dtype)


def _pw_pool_kernel(x_ref, w_ref, shift_ref, pool_ref, *, act):
    # Last 1x1 ConvBN+Hardswish fused with the global average pool: only the
    # per-sample pooled sums are written back (never the full feature map).
    h = pl.program_id(1)

    @pl.when(h == 0)
    def _():
        pool_ref[...] = jnp.zeros_like(pool_ref)

    y = jnp.dot(x_ref[0].astype(jnp.bfloat16), w_ref[...],
                preferred_element_type=jnp.float32)
    y = _act(y + shift_ref[...], act)
    pool_ref[0] += jnp.sum(y, axis=0, keepdims=True)


def _se_fc_kernel(psum_ref, w1_ref, b1_ref, w2_ref, b2_ref, scale_ref, *, inv_hw):
    # SqueezeExcitation FCs on the (tiny) pooled vector:
    # relu(fc1(mean)) -> hardsigmoid(fc2(.)). Scale is applied later, fused
    # into the project conv kernel.
    pooled = psum_ref[...] * inv_hw                              # (N, C)
    s = jnp.dot(pooled.astype(jnp.bfloat16), w1_ref[...],
                preferred_element_type=jnp.float32) + b1_ref[...]
    s = jnp.maximum(s, 0.0)
    s = jnp.dot(s.astype(jnp.bfloat16), w2_ref[...],
                preferred_element_type=jnp.float32) + b2_ref[...]
    hsig = jnp.clip(s + 3.0, 0.0, 6.0) * (1.0 / 6.0)
    scale_ref[...] = hsig[:, None, :]                            # (N, 1, C)


# ----------------------------- pallas_call glue -----------------------------

def _cparams(*sem):
    return pltpu.CompilerParams(dimension_semantics=sem,
                                vmem_limit_bytes=VMEM_LIMIT)


def conv_taps(taps, w, shift, act):
    T, N, HW, Cin = taps.shape
    Cout = w.shape[-1]
    tile = _choose_tile(HW)
    return pl.pallas_call(
        functools.partial(_conv_taps_kernel, act=act, nt=T),
        out_shape=jax.ShapeDtypeStruct((N, HW, Cout), jnp.bfloat16),
        grid=(N, HW // tile, T),
        in_specs=[
            pl.BlockSpec((1, 1, tile, Cin), lambda n, h, t: (t, n, h, 0)),
            pl.BlockSpec((1, Cin, Cout), lambda n, h, t: (t, 0, 0)),
            pl.BlockSpec((1, Cout), lambda n, h, t: (0, 0)),
        ],
        out_specs=pl.BlockSpec((1, tile, Cout), lambda n, h, t: (n, h, 0)),
        scratch_shapes=[pltpu.VMEM((tile, Cout), jnp.float32)],
        compiler_params=_cparams("parallel", "parallel", "arbitrary"),
        cost_estimate=pl.CostEstimate(
            flops=int(2 * N * HW * Cin * Cout * T), transcendentals=0,
            bytes_accessed=int(taps.size * taps.dtype.itemsize
                               + w.size * w.dtype.itemsize + N * HW * Cout * 2)),
    )(taps, w, shift)


def dw_conv(taps, w, shift, act, with_pool):
    T, N, HW, C = taps.shape
    tile = _choose_tile(HW)
    if with_pool:
        out_shape = (jax.ShapeDtypeStruct((N, HW, C), jnp.bfloat16),
                     jax.ShapeDtypeStruct((N, 1, C), jnp.float32))
        out_specs = (pl.BlockSpec((1, tile, C), lambda n, h, t: (n, h, 0)),
                     pl.BlockSpec((1, 1, C), lambda n, h, t: (n, 0, 0)))
        sem = ("parallel", "arbitrary", "arbitrary")   # pool is revisited over h
    else:
        out_shape = jax.ShapeDtypeStruct((N, HW, C), jnp.bfloat16)
        out_specs = pl.BlockSpec((1, tile, C), lambda n, h, t: (n, h, 0))
        sem = ("parallel", "parallel", "arbitrary")
    result = pl.pallas_call(
        functools.partial(_dw_taps_kernel, act=act, nt=T, with_pool=with_pool),
        out_shape=out_shape,
        grid=(N, HW // tile, T),
        in_specs=[
            pl.BlockSpec((1, 1, tile, C), lambda n, h, t: (t, n, h, 0)),
            pl.BlockSpec((1, 1, C), lambda n, h, t: (t, 0, 0)),
            pl.BlockSpec((1, C), lambda n, h, t: (0, 0)),
        ],
        out_specs=out_specs,
        scratch_shapes=[pltpu.VMEM((tile, C), jnp.float32)],
        compiler_params=_cparams(*sem),
    )(taps, w, shift)
    if with_pool:
        return result[0], result[1]
    return result, None


def pw_conv(x, w, shift, act, scale=None, res=None):
    N, HW, Cin = x.shape
    Cout = w.shape[-1]
    tile = _choose_tile(HW)
    in_specs = [pl.BlockSpec((1, tile, Cin), lambda n, h: (n, h, 0))]
    args = [x]
    if scale is not None:                     # SE channel scale, shape (N, 1, Cin)
        in_specs.append(pl.BlockSpec((1, 1, Cin), lambda n, h: (n, 0, 0)))
        args.append(scale)
    if res is not None:                       # fused residual, shape (N, HW, Cout)
        in_specs.append(pl.BlockSpec((1, tile, Cout), lambda n, h: (n, h, 0)))
        args.append(res)
    in_specs += [pl.BlockSpec((Cin, Cout), lambda n, h: (0, 0)),
                 pl.BlockSpec((1, Cout), lambda n, h: (0, 0))]
    args += [w, shift]
    return pl.pallas_call(
        functools.partial(_pw_kernel, act=act,
                          with_scale=scale is not None, with_res=res is not None),
        out_shape=jax.ShapeDtypeStruct((N, HW, Cout), jnp.bfloat16),
        grid=(N, HW // tile),
        in_specs=in_specs,
        out_specs=pl.BlockSpec((1, tile, Cout), lambda n, h: (n, h, 0)),
        compiler_params=_cparams("parallel", "parallel"),
        cost_estimate=pl.CostEstimate(
            flops=int(2 * N * HW * Cin * Cout), transcendentals=0,
            bytes_accessed=int(x.size * x.dtype.itemsize
                               + w.size * w.dtype.itemsize + N * HW * Cout * 2)),
    )(*args)


def pw_conv_pool(x, w, shift, act):
    N, HW, Cin = x.shape
    Cout = w.shape[-1]
    tile = _choose_tile(HW)
    return pl.pallas_call(
        functools.partial(_pw_pool_kernel, act=act),
        out_shape=jax.ShapeDtypeStruct((N, 1, Cout), jnp.float32),
        grid=(N, HW // tile),
        in_specs=[pl.BlockSpec((1, tile, Cin), lambda n, h: (n, h, 0)),
                  pl.BlockSpec((Cin, Cout), lambda n, h: (0, 0)),
                  pl.BlockSpec((1, Cout), lambda n, h: (0, 0))],
        out_specs=pl.BlockSpec((1, 1, Cout), lambda n, h: (n, 0, 0)),
        compiler_params=_cparams("parallel", "arbitrary"),
    )(x, w, shift)


def se_fc(psum, w1, b1, w2, b2, inv_hw):
    N, C = psum.shape
    sq = w1.shape[-1]
    return pl.pallas_call(
        functools.partial(_se_fc_kernel, inv_hw=inv_hw),
        out_shape=jax.ShapeDtypeStruct((N, 1, C), jnp.float32),
        grid=(1,),
        in_specs=[pl.BlockSpec((N, C), lambda i: (0, 0)),
                  pl.BlockSpec((C, sq), lambda i: (0, 0)),
                  pl.BlockSpec((1, sq), lambda i: (0, 0)),
                  pl.BlockSpec((sq, C), lambda i: (0, 0)),
                  pl.BlockSpec((1, C), lambda i: (0, 0))],
        out_specs=pl.BlockSpec((N, 1, C), lambda i: (0, 0, 0)),
        compiler_params=_cparams("arbitrary"),
    )(psum, w1, b1, w2, b2)


# ------------------------------ JAX-side glue -------------------------------

def extract_patches(x, k, stride, pad):
    """x: (N, H, W, C) -> (k*k, N, Ho, Wo, C) shifted/strided taps."""
    xp = jnp.pad(x, ((0, 0), (pad, pad), (pad, pad), (0, 0)))
    _, Hp, Wp, _ = xp.shape
    Ho = (Hp - k) // stride + 1
    Wo = (Wp - k) // stride + 1
    taps = []
    for kh in range(k):
        for kw in range(k):
            taps.append(xp[:, kh:kh + (Ho - 1) * stride + 1:stride,
                           kw:kw + (Wo - 1) * stride + 1:stride, :])
    return jnp.stack(taps, axis=0), Ho, Wo


# ------------------------------- parameters --------------------------------
# All channel dims are zero-padded to multiples of 128 (lane-dense stores).
# Padded lanes carry zero weights / zero shifts / zero biases, so they stay
# exactly zero through every layer and never perturb the real outputs.

def init_params(key, cfgs, first_out, last_channel, num_classes):
    keys = iter(jax.random.split(key, 256))

    def kaiming(shape, fan_out):
        return jax.random.normal(next(keys), shape, jnp.float32) * np.sqrt(2.0 / fan_out)

    def folded_bn(c):
        # gamma=1, beta=0, running_mean=0, running_var=1 at init.
        scale = jnp.full((c,), 1.0 / np.sqrt(1.0 + BN_EPS), jnp.float32)
        shift = jnp.zeros((c,), jnp.float32)
        return scale, shift

    def pad2(a, r, c, dtype):
        out = jnp.zeros((r, c), dtype)
        return out.at[:a.shape[0], :a.shape[1]].set(a.astype(dtype))

    def pw_params(cin, cout):
        cin_p, cout_p = _pad_ch(cin), _pad_ch(cout)
        w = kaiming((cin, cout), fan_out=cout)                 # 1x1 conv fan_out
        scale, shift = folded_bn(cout)
        w_p = pad2(w * scale[None, :], cin_p, cout_p, jnp.bfloat16)
        shift_p = jnp.zeros((1, cout_p), jnp.float32).at[0, :cout].set(shift)
        return w_p, shift_p

    p = {}
    # stem conv 3x3/s2 (3 -> first_out): taps-major weight (9, 3, Cout_p), BN folded.
    c0 = first_out
    c0_p = _pad_ch(c0)
    w = kaiming((9, 3, c0), fan_out=c0 * 9)
    scale, shift = folded_bn(c0)
    p["stem_w"] = (jnp.zeros((9, 3, c0_p), jnp.bfloat16)
                   .at[:, :, :c0].set((w * scale[None, None, :]).astype(jnp.bfloat16)))
    p["stem_shift"] = jnp.zeros((1, c0_p), jnp.float32).at[0, :c0].set(shift)

    blocks = []
    for (cin, k, exp, cout, use_se, _act_name, _stride) in cfgs:
        exp_p = _pad_ch(exp)
        bp = {}
        if exp != cin:
            bp["exp_w"], bp["exp_shift"] = pw_params(cin, exp)
        dw = kaiming((k * k, exp), fan_out=exp * k * k)
        scale, shift = folded_bn(exp)
        bp["dw_w"] = (jnp.zeros((k * k, 1, exp_p), jnp.float32)
                      .at[:, 0, :exp].set(dw * scale[None, :]))
        bp["dw_shift"] = jnp.zeros((1, exp_p), jnp.float32).at[0, :exp].set(shift)
        if use_se:
            sq = _make_divisible(exp // 4, 8)
            sq_p = _pad_ch(sq)
            bp["se_w1"] = pad2(kaiming((exp, sq), fan_out=sq), exp_p, sq_p, jnp.bfloat16)
            bp["se_b1"] = jnp.zeros((1, sq_p), jnp.float32)
            bp["se_w2"] = pad2(kaiming((sq, exp), fan_out=exp), sq_p, exp_p, jnp.bfloat16)
            bp["se_b2"] = jnp.zeros((1, exp_p), jnp.float32)
        bp["proj_w"], bp["proj_shift"] = pw_params(exp, cout)
        blocks.append(bp)
    p["blocks"] = blocks

    last_in = cfgs[-1][3]
    last_out = 6 * last_in
    p["last_w"], p["last_shift"] = pw_params(last_in, last_out)

    lo_p, lc_p, nc_p = _pad_ch(last_out), _pad_ch(last_channel), _pad_ch(num_classes)
    fc1 = jax.random.normal(next(keys), (last_out, last_channel), jnp.float32) * 0.01
    fc2 = jax.random.normal(next(keys), (last_channel, num_classes), jnp.float32) * 0.01
    p["fc1_w"] = pad2(fc1, lo_p, lc_p, jnp.bfloat16)
    p["fc1_b"] = jnp.zeros((1, lc_p), jnp.float32)
    p["fc2_w"] = pad2(fc2, lc_p, nc_p, jnp.bfloat16)
    p["fc2_b"] = jnp.zeros((1, nc_p), jnp.float32)
    return p


# --------------------------------- forward ---------------------------------

def mobilenet_v3_forward(params, x_nchw, cfgs, num_classes):
    # NCHW (PyTorch) -> NHWC internally; activations flow as (N, H*W, C_pad) bf16.
    x = jnp.transpose(x_nchw, (0, 2, 3, 1)).astype(jnp.float32)
    N = x.shape[0]

    # features[0]: ConvBNActivation(3 -> c0, k=3, s=2) + Hardswish (taps reduction).
    taps, H, W = extract_patches(x, 3, 2, 1)
    taps = taps.reshape(9, N, H * W, x.shape[-1]).astype(jnp.bfloat16)
    x = conv_taps(taps, params["stem_w"], params["stem_shift"], "hardswish")

    # InvertedResidual blocks
    for cfg, bp in zip(cfgs, params["blocks"]):
        cin, k, exp, cout, use_se, act, stride = cfg
        inp = x
        if exp != cin:                                       # expand 1x1 conv
            x = pw_conv(x, bp["exp_w"], bp["exp_shift"], act)
        exp_p = bp["dw_w"].shape[-1]
        x4 = x.reshape(N, H, W, exp_p)                       # depthwise conv
        taps, Ho, Wo = extract_patches(x4, k, stride, (k - 1) // 2)
        taps = taps.reshape(k * k, N, Ho * Wo, exp_p)
        y, psum = dw_conv(taps, bp["dw_w"], bp["dw_shift"], act, with_pool=use_se)
        H, W = Ho, Wo
        scale = None
        if use_se:                                           # SE FCs (tiny)
            scale = se_fc(psum[:, 0, :], bp["se_w1"], bp["se_b1"],
                          bp["se_w2"], bp["se_b2"], 1.0 / (H * W))
        res = inp if (stride == 1 and cin == cout) else None
        # project 1x1 conv with SE scale + residual fused in.
        x = pw_conv(y, bp["proj_w"], bp["proj_shift"], "identity",
                    scale=scale, res=res)

    # last ConvBNActivation 1x1 + Hardswish fused with AdaptiveAvgPool2d(1)
    psum = pw_conv_pool(x, params["last_w"], params["last_shift"], "hardswish")
    pooled = psum[:, 0, :] * (1.0 / (H * W))                 # (N, C_pad) f32

    # classifier: Linear -> Hardswish -> Dropout -> Linear
    h = pw_conv(pooled[None], params["fc1_w"], params["fc1_b"], "hardswish")
    # TODO(synk): nn.Dropout(0.2) is stochastic only in train mode; eval identity here.
    logits = pw_conv(h, params["fc2_w"], params["fc2_b"], "identity")
    return logits[0, :, :num_classes].astype(jnp.float32)


# ----------------------------------- main -----------------------------------

if __name__ == "__main__":
    # Small inverted_residual_setting (width_multi = 1.0) exercising:
    # no-expand + SE + stride2, expand + stride1, expand + SE + Hardswish + residual.
    # (in_ch, kernel, expanded_ch, out_ch, use_se, activation, stride)
    CFGS = [
        (16, 3, 16, 16, True,  "relu",      2),
        (16, 3, 64, 24, False, "relu",      1),
        (24, 5, 96, 24, True,  "hardswish", 1),
    ]
    LAST_CHANNEL = 128
    NUM_CLASSES = 10

    key = jax.random.PRNGKey(0)
    pkey, xkey = jax.random.split(key)
    params = init_params(pkey, CFGS, first_out=CFGS[0][0],
                         last_channel=LAST_CHANNEL, num_classes=NUM_CLASSES)

    x = jax.random.normal(xkey, (2, 3, 16, 16), jnp.float32)  # NCHW, like PyTorch

    fwd = jax.jit(functools.partial(mobilenet_v3_forward, cfgs=CFGS,
                                    num_classes=NUM_CLASSES))
    logits = fwd(params, x)
    jax.block_until_ready(logits)

    assert logits.shape == (2, NUM_CLASSES)
    assert bool(jnp.all(jnp.isfinite(logits)))
    print("KERNEL_OK")
</pallas_src>

<mosaic_0001>
module attributes {stable_mosaic.version = 11 : i64} {
  func.func @_conv_taps_kernel(%arg0: i32, %arg1: i32, %arg2: i32, %arg3: memref<1x1x64x3xbf16, #tpu.memory_space<vmem>>, %arg4: memref<1x3x128xbf16, #tpu.memory_space<vmem>>, %arg5: memref<1x128xf32, #tpu.memory_space<vmem>>, %arg6: memref<1x64x128xbf16, #tpu.memory_space<vmem>>, %arg7: memref<64x128xf32, #tpu.memory_space<vmem>>) attributes {dimension_semantics = [#tpu.dimension_semantics<parallel>, #tpu.dimension_semantics<parallel>, #tpu.dimension_semantics<arbitrary>], iteration_bounds = array<i64: 2, 1, 9>, scalar_prefetch = 0 : i64, scratch_operands = 1 : i64, tpu.core_type = #tpu.core_type<tc>, window_params = [{transform_indices = @transform_0, window_bounds = array<i64: 1, 1, 64, 3>}, {transform_indices = @transform_1, window_bounds = array<i64: 1, 3, 128>}, {pipeline_mode = #tpu.pipeline_mode<synchronous>, transform_indices = @transform_2, window_bounds = array<i64: 1, 128>}, {transform_indices = @transform_3, window_bounds = array<i64: 1, 64, 128>}]} {
    %c0_i32 = arith.constant 0 : i32
    %0 = arith.cmpi eq, %arg2, %c0_i32 : i32
    %1 = arith.extui %0 : i1 to i32
    %c0_i32_0 = arith.constant 0 : i32
    %2 = arith.cmpi ne, %1, %c0_i32_0 : i32
    scf.if %2 {
      %cst_12 = arith.constant 0.000000e+00 : f32
      %14 = vector.broadcast %cst_12 : f32 to vector<64x128xf32>
      %c0_13 = arith.constant 0 : index
      %c0_14 = arith.constant 0 : index
      %15 = vector.load %arg7[%c0_13, %c0_14] : memref<64x128xf32, #tpu.memory_space<vmem>>, vector<64x128xf32>
      tpu.vector_store %arg7[%c0_13, %c0_14], %14 {strides = array<i32>} : memref<64x128xf32, #tpu.memory_space<vmem>>, vector<64x128xf32>,
    } else {
    }
    %c0 = arith.constant 0 : index
    %c0_1 = arith.constant 0 : index
    %c0_2 = arith.constant 0 : index
    %c0_3 = arith.constant 0 : index
    %3 = vector.load %arg3[%c0, %c0_1, %c0_2, %c0_3] : memref<1x1x64x3xbf16, #tpu.memory_space<vmem>>, vector<1x1x64x3xbf16>
    %4 = vector.shape_cast %3 : vector<1x1x64x3xbf16> to vector<64x3xbf16>
    %c0_4 = arith.constant 0 : index
    %c0_5 = arith.constant 0 : index
    %5 = vector.load %arg7[%c0_4, %c0_5] : memref<64x128xf32, #tpu.memory_space<vmem>>, vector<64x128xf32>
    %c0_6 = arith.constant 0 : index
    %c0_7 = arith.constant 0 : index
    %c0_8 = arith.constant 0 : index
    %6 = vector.load %arg4[%c0_6, %c0_7, %c0_8] : memref<1x3x128xbf16, #tpu.memory_space<vmem>>, vector<1x3x128xbf16>
    %7 = vector.shape_cast %6 : vector<1x3x128xbf16> to vector<3x128xbf16>
    %cst = arith.constant dense<0.000000e+00> : vector<64x128xf32>
    %8 = tpu.matmul %4, %7, %cst {dimension_numbers = #tpu.dot_dimension_numbers<[1], [0], [0], [1], [0, 0, 1, 1], [], []>} : vector<64x3xbf16>, vector<3x128xbf16>, vector<64x128xf32> -> vector<64x128xf32>
    %9 = arith.addf %5, %8 : vector<64x128xf32>
    %c0_9 = arith.constant 0 : index
    %c0_10 = arith.constant 0 : index
    %10 = vector.load %arg7[%c0_9, %c0_10] : memref<64x128xf32, #tpu.memory_space<vmem>>, vector<64x128xf32>
    tpu.vector_store %arg7[%c0_9, %c0_10], %9 {strides = array<i32>} : memref<64x128xf32, #tpu.memory_space<vmem>>, vector<64x128xf32>,
    %c8_i32 = arith.constant 8 : i32
    %11 = arith.cmpi eq, %arg2, %c8_i32 : i32
    %12 = arith.extui %11 : i1 to i32
    %c0_i32_11 = arith.constant 0 : i32
    %13 = arith.cmpi ne, %12, %c0_i32_11 : i32
    scf.if %13 {
      %c0_12 = arith.constant 0 : index
      %c0_13 = arith.constant 0 : index
      %14 = vector.load %arg7[%c0_12, %c0_13] : memref<64x128xf32, #tpu.memory_space<vmem>>, vector<64x128xf32>
      %c0_14 = arith.constant 0 : index
      %c0_15 = arith.constant 0 : index
      %15 = vector.load %arg5[%c0_14, %c0_15] : memref<1x128xf32, #tpu.memory_space<vmem>>, vector<1x128xf32>
      %16 = vector.broadcast %15 : vector<1x128xf32> to vector<64x128xf32>
      %17 = arith.addf %14, %16 : vector<64x128xf32>
      %cst_16 = arith.constant 3.000000e+00 : f32
      %18 = vector.broadcast %cst_16 : f32 to vector<64x128xf32>
      %19 = arith.addf %17, %18 : vector<64x128xf32>
      %cst_17 = arith.constant 0.000000e+00 : f32
      %cst_18 = arith.constant 6.000000e+00 : f32
      %20 = vector.broadcast %cst_17 : f32 to vector<64x128xf32>
      %21 = arith.maximumf %20, %19 : vector<64x128xf32>
      %22 = vector.broadcast %cst_18 : f32 to vector<64x128xf32>
      %23 = arith.minimumf %22, %21 : vector<64x128xf32>
      %24 = arith.mulf %17, %23 : vector<64x128xf32>
      %cst_19 = arith.constant 0.166666672 : f32
      %25 = vector.broadcast %cst_19 : f32 to vector<64x128xf32>
      %26 = arith.mulf %24, %25 : vector<64x128xf32>
      %27 = arith.truncf %26 : vector<64x128xf32> to vector<64x128xbf16>
      %c0_20 = arith.constant 0 : index
      %c0_21 = arith.constant 0 : index
      %c0_22 = arith.constant 0 : index
      %28 = vector.load %arg6[%c0_20, %c0_21, %c0_22] : memref<1x64x128xbf16, #tpu.memory_space<vmem>>, vector<1x64x128xbf16>
      %29 = vector.shape_cast %28 : vector<1x64x128xbf16> to vector<64x128xbf16>
      %30 = vector.shape_cast %27 : vector<64x128xbf16> to vector<1x64x128xbf16>
      tpu.vector_store %arg6[%c0_20, %c0_21, %c0_22], %30 {strides = array<i32>} : memref<1x64x128xbf16, #tpu.memory_space<vmem>>, vector<1x64x128xbf16>,
    } else {
    }
    return
  }
  func.func @transform_0(%arg0: i32, %arg1: i32, %arg2: i32) -> (i32, i32, i32, i32) {
    %c0_i32 = arith.constant 0 : i32
    %c0_i32_0 = arith.constant 0 : i32
    return %arg2, %arg0, %arg1, %c0_i32 : i32, i32, i32, i32
  }
  func.func @transform_1(%arg0: i32, %arg1: i32, %arg2: i32) -> (i32, i32, i32) {
    %c0_i32 = arith.constant 0 : i32
    %c0_i32_0 = arith.constant 0 : i32
    %c0_i32_1 = arith.constant 0 : i32
    return %arg2, %c0_i32, %c0_i32_0 : i32, i32, i32
  }
  func.func @transform_2(%arg0: i32, %arg1: i32, %arg2: i32) -> (i32, i32) {
    %c0_i32 = arith.constant 0 : i32
    %c0_i32_0 = arith.constant 0 : i32
    %c0_i32_1 = arith.constant 0 : i32
    return %c0_i32, %c0_i32_0 : i32, i32
  }
  func.func @transform_3(%arg0: i32, %arg1: i32, %arg2: i32) -> (i32, i32, i32) {
    %c0_i32 = arith.constant 0 : i32
    %c0_i32_0 = arith.constant 0 : i32
    return %arg0, %arg1, %c0_i32 : i32, i32, i32
  }
}

module attributes {stable_mosaic.version = 11 : i64} {
  func.func @_se_fc_kernel(%arg0: i32, %arg1: memref<2x128xf32, #tpu.memory_space<vmem>>, %arg2: memref<128x128xbf16, #tpu.memory_space<vmem>>, %arg3: memref<1x128xf32, #tpu.memory_space<vmem>>, %arg4: memref<128x128xbf16, #tpu.memory_space<vmem>>, %arg5: memref<1x128xf32, #tpu.memory_space<vmem>>, %arg6: memref<2x1x128xf32, #tpu.memory_space<vmem>>) attributes {dimension_semantics = [#tpu.dimension_semantics<arbitrary>], iteration_bounds = array<i64: 1>, scalar_prefetch = 0 : i64, scratch_operands = 0 : i64, tpu.core_type = #tpu.core_type<tc>, window_params = [{pipeline_mode = #tpu.pipeline_mode<synchronous>, transform_indices = @transform_0, window_bounds = array<i64: 2, 128>}, {pipeline_mode = #tpu.pipeline_mode<synchronous>, transform_indices = @transform_1, window_bounds = array<i64: 128, 128>}, {pipeline_mode = #tpu.pipeline_mode<synchronous>, transform_indices = @transform_2, window_bounds = array<i64: 1, 128>}, {pipeline_mode = #tpu.pipeline_mode<synchronous>, transform_indices = @transform_3, window_bounds = array<i64: 128, 128>}, {pipeline_mode = #tpu.pipeline_mode<synchronous>, transform_indices = @transform_4, window_bounds = array<i64: 1, 128>}, {pipeline_mode = #tpu.pipeline_mode<synchronous>, transform_indices = @transform_5, window_bounds = array<i64: 2, 1, 128>}]} {
    %c0 = arith.constant 0 : index
    %c0_0 = arith.constant 0 : index
    %0 = vector.load %arg1[%c0, %c0_0] : memref<2x128xf32, #tpu.memory_space<vmem>>, vector<2x128xf32>
    %cst = arith.constant 6.250000e-02 : f32
    %1 = vector.broadcast %cst : f32 to vector<2x128xf32>
    %2 = arith.mulf %0, %1 : vector<2x128xf32>
    %3 = arith.truncf %2 : vector<2x128xf32> to vector<2x128xbf16>
    %c0_1 = arith.constant 0 : index
    %c0_2 = arith.constant 0 : index
    %4 = vector.load %arg2[%c0_1, %c0_2] : memref<128x128xbf16, #tpu.memory_space<vmem>>, vector<128x128xbf16>
    %cst_3 = arith.constant dense<0.000000e+00> : vector<2x128xf32>
    %5 = tpu.matmul %3, %4, %cst_3 {dimension_numbers = #tpu.dot_dimension_numbers<[1], [0], [0], [1], [0, 0, 1, 1], [], []>} : vector<2x128xbf16>, vector<128x128xbf16>, vector<2x128xf32> -> vector<2x128xf32>
    %c0_4 = arith.constant 0 : index
    %c0_5 = arith.constant 0 : index
    %6 = vector.load %arg3[%c0_4, %c0_5] : memref<1x128xf32, #tpu.memory_space<vmem>>, vector<1x128xf32>
    %7 = vector.broadcast %6 : vector<1x128xf32> to vector<2x128xf32>
    %8 = arith.addf %5, %7 : vector<2x128xf32>
    %cst_6 = arith.constant 0.000000e+00 : f32
    %9 = vector.broadcast %cst_6 : f32 to vector<2x128xf32>
    %10 = arith.maximumf %8, %9 : vector<2x128xf32>
    %11 = arith.truncf %10 : vector<2x128xf32> to vector<2x128xbf16>
    %c0_7 = arith.constant 0 : index
    %c0_8 = arith.constant 0 : index
    %12 = vector.load %arg4[%c0_7, %c0_8] : memref<128x128xbf16, #tpu.memory_space<vmem>>, vector<128x128xbf16>
    %cst_9 = arith.constant dense<0.000000e+00> : vector<2x128xf32>
    %13 = tpu.matmul %11, %12, %cst_9 {dimension_numbers = #tpu.dot_dimension_numbers<[1], [0], [0], [1], [0, 0, 1, 1], [], []>} : vector<2x128xbf16>, vector<128x128xbf16>, vector<2x128xf32> -> vector<2x128xf32>
    %c0_10 = arith.constant 0 : index
    %c0_11 = arith.constant 0 : index
    %14 = vector.load %arg5[%c0_10, %c0_11] : memref<1x128xf32, #tpu.memory_space<vmem>>, vector<1x128xf32>
    %15 = vector.broadcast %14 : vector<1x128xf32> to vector<2x128xf32>
    %16 = arith.addf %13, %15 : vector<2x128xf32>
    %cst_12 = arith.constant 3.000000e+00 : f32
    %17 = vector.broadcast %cst_12 : f32 to vector<2x128xf32>
    %18 = arith.addf %16, %17 : vector<2x128xf32>
    %cst_13 = arith.constant 0.000000e+00 : f32
    %cst_14 = arith.constant 6.000000e+00 : f32
    %19 = vector.broadcast %cst_13 : f32 to vector<2x128xf32>
    %20 = arith.maximumf %19, %18 : vector<2x128xf32>
    %21 = vector.broadcast %cst_14 : f32 to vector<2x128xf32>
    %22 = arith.minimumf %21, %20 : vector<2x128xf32>
    %cst_15 = arith.constant 0.166666672 : f32
    %23 = vector.broadcast %cst_15 : f32 to vector<2x128xf32>
    %24 = arith.mulf %22, %23 : vector<2x128xf32>
    %25 = vector.shape_cast %24 : vector<2x128xf32> to vector<2x1x128xf32>
    %c0_16 = arith.constant 0 : index
    %c0_17 = arith.constant 0 : index
    %c0_18 = arith.constant 0 : index
    %26 = vector.load %arg6[%c0_16, %c0_17, %c0_18] : memref<2x1x128xf32, #tpu.memory_space<vmem>>, vector<2x1x128xf32>
    tpu.vector_store %arg6[%c0_16, %c0_17, %c0_18], %25 {strides = array<i32>} : memref<2x1x128xf32, #tpu.memory_space<vmem>>, vector<2x1x128xf32>,
    return
  }
  func.func @transform_0(%arg0: i32) -> (i32, i32) {
    %c0_i32 = arith.constant 0 : i32
    %c0_i32_0 = arith.constant 0 : i32
    %c0_i32_1 = arith.constant 0 : i32
    return %c0_i32, %c0_i32_0 : i32, i32
  }
  func.func @transform_1(%arg0: i32) -> (i32, i32) {
    %c0_i32 = arith.constant 0 : i32
    %c0_i32_0 = arith.constant 0 : i32
    %c0_i32_1 = arith.constant 0 : i32
    return %c0_i32, %c0_i32_0 : i32, i32
  }
  func.func @transform_2(%arg0: i32) -> (i32, i32) {
    %c0_i32 = arith.constant 0 : i32
    %c0_i32_0 = arith.constant 0 : i32
    %c0_i32_1 = arith.constant 0 : i32
    return %c0_i32, %c0_i32_0 : i32, i32
  }
  func.func @transform_3(%arg0: i32) -> (i32, i32) {
    %c0_i32 = arith.constant 0 : i32
    %c0_i32_0 = arith.constant 0 : i32
    %c0_i32_1 = arith.constant 0 : i32
    return %c0_i32, %c0_i32_0 : i32, i32
  }
  func.func @transform_4(%arg0: i32) -> (i32, i32) {
    %c0_i32 = arith.constant 0 : i32
    %c0_i32_0 = arith.constant 0 : i32
    %c0_i32_1 = arith.constant 0 : i32
    return %c0_i32, %c0_i32_0 : i32, i32
  }
  func.func @transform_5(%arg0: i32) -> (i32, i32, i32) {
    %c0_i32 = arith.constant 0 : i32
    %c0_i32_0 = arith.constant 0 : i32
    %c0_i32_1 = arith.constant 0 : i32
    %c0_i32_2 = arith.constant 0 : i32
    return %c0_i32, %c0_i32_0, %c0_i32_1 : i32, i32, i32
  }
}

module attributes {stable_mosaic.version = 11 : i64} {
  func.func @_dw_taps_kernel(%arg0: i32, %arg1: i32, %arg2: i32, %arg3: memref<1x1x16x128xbf16, #tpu.memory_space<vmem>>, %arg4: memref<1x1x128xf32, #tpu.memory_space<vmem>>, %arg5: memref<1x128xf32, #tpu.memory_space<vmem>>, %arg6: memref<1x16x128xbf16, #tpu.memory_space<vmem>>, %arg7: memref<1x1x128xf32, #tpu.memory_space<vmem>>, %arg8: memref<16x128xf32, #tpu.memory_space<vmem>>) attributes {dimension_semantics = [#tpu.dimension_semantics<parallel>, #tpu.dimension_semantics<arbitrary>, #tpu.dimension_semantics<arbitrary>], iteration_bounds = array<i64: 2, 1, 9>, scalar_prefetch = 0 : i64, scratch_operands = 1 : i64, tpu.core_type = #tpu.core_type<tc>, window_params = [{transform_indices = @transform_0, window_bounds = array<i64: 1, 1, 16, 128>}, {transform_indices = @transform_1, window_bounds = array<i64: 1, 1, 128>}, {pipeline_mode = #tpu.pipeline_mode<synchronous>, transform_indices = @transform_2, window_bounds = array<i64: 1, 128>}, {transform_indices = @transform_3, window_bounds = array<i64: 1, 16, 128>}, {transform_indices = @transform_4, window_bounds = array<i64: 1, 1, 128>}]} {
    %c0_i32 = arith.constant 0 : i32
    %0 = arith.cmpi eq, %arg2, %c0_i32 : i32
    %1 = arith.extui %0 : i1 to i32
    %c0_i32_0 = arith.constant 0 : i32
    %2 = arith.cmpi ne, %1, %c0_i32_0 : i32
    scf.if %2 {
      %cst = arith.constant 0.000000e+00 : f32
      %21 = vector.broadcast %cst : f32 to vector<16x128xf32>
      %c0_15 = arith.constant 0 : index
      %c0_16 = arith.constant 0 : index
      %22 = vector.load %arg8[%c0_15, %c0_16] : memref<16x128xf32, #tpu.memory_space<vmem>>, vector<16x128xf32>
      tpu.vector_store %arg8[%c0_15, %c0_16], %21 {strides = array<i32>} : memref<16x128xf32, #tpu.memory_space<vmem>>, vector<16x128xf32>,
    } else {
    }
    %c0_i32_1 = arith.constant 0 : i32
    %3 = arith.cmpi eq, %arg2, %c0_i32_1 : i32
    %c0_i32_2 = arith.constant 0 : i32
    %4 = arith.cmpi eq, %arg1, %c0_i32_2 : i32
    %5 = arith.andi %3, %4 : i1
    %6 = arith.extui %5 : i1 to i32
    %c0_i32_3 = arith.constant 0 : i32
    %7 = arith.cmpi ne, %6, %c0_i32_3 : i32
    scf.if %7 {
      %cst = arith.constant 0.000000e+00 : f32
      %21 = vector.broadcast %cst : f32 to vector<1x1x128xf32>
      %c0_15 = arith.constant 0 : index
      %c0_16 = arith.constant 0 : index
      %c0_17 = arith.constant 0 : index
      %22 = vector.load %arg7[%c0_15, %c0_16, %c0_17] : memref<1x1x128xf32, #tpu.memory_space<vmem>>, vector<1x1x128xf32>
      tpu.vector_store %arg7[%c0_15, %c0_16, %c0_17], %21 {strides = array<i32>} : memref<1x1x128xf32, #tpu.memory_space<vmem>>, vector<1x1x128xf32>,
    } else {
    }
    %c0 = arith.constant 0 : index
    %c0_4 = arith.constant 0 : index
    %8 = vector.load %arg8[%c0, %c0_4] : memref<16x128xf32, #tpu.memory_space<vmem>>, vector<16x128xf32>
    %c0_5 = arith.constant 0 : index
    %c0_6 = arith.constant 0 : index
    %c0_7 = arith.constant 0 : index
    %c0_8 = arith.constant 0 : index
    %9 = vector.load %arg3[%c0_5, %c0_6, %c0_7, %c0_8] : memref<1x1x16x128xbf16, #tpu.memory_space<vmem>>, vector<1x1x16x128xbf16>
    %10 = vector.shape_cast %9 : vector<1x1x16x128xbf16> to vector<16x128xbf16>
    %11 = arith.extf %10 : vector<16x128xbf16> to vector<16x128xf32>
    %c0_9 = arith.constant 0 : index
    %c0_10 = arith.constant 0 : index
    %c0_11 = arith.constant 0 : index
    %12 = vector.load %arg4[%c0_9, %c0_10, %c0_11] : memref<1x1x128xf32, #tpu.memory_space<vmem>>, vector<1x1x128xf32>
    %13 = vector.shape_cast %12 : vector<1x1x128xf32> to vector<1x128xf32>
    %14 = vector.broadcast %13 : vector<1x128xf32> to vector<16x128xf32>
    %15 = arith.mulf %11, %14 : vector<16x128xf32>
    %16 = arith.addf %8, %15 : vector<16x128xf32>
    %c0_12 = arith.constant 0 : index
    %c0_13 = arith.constant 0 : index
    %17 = vector.load %arg8[%c0_12, %c0_13] : memref<16x128xf32, #tpu.memory_space<vmem>>, vector<16x128xf32>
    tpu.vector_store %arg8[%c0_12, %c0_13], %16 {strides = array<i32>} : memref<16x128xf32, #tpu.memory_space<vmem>>, vector<16x128xf32>,
    %c8_i32 = arith.constant 8 : i32
    %18 = arith.cmpi eq, %arg2, %c8_i32 : i32
    %19 = arith.extui %18 : i1 to i32
    %c0_i32_14 = arith.constant 0 : i32
    %20 = arith.cmpi ne, %19, %c0_i32_14 : i32
    scf.if %20 {
      %c0_15 = arith.constant 0 : index
      %c0_16 = arith.constant 0 : index
      %21 = vector.load %arg8[%c0_15, %c0_16] : memref<16x128xf32, #tpu.memory_space<vmem>>, vector<16x128xf32>
      %c0_17 = arith.constant 0 : index
      %c0_18 = arith.constant 0 : index
      %22 = vector.load %arg5[%c0_17, %c0_18] : memref<1x128xf32, #tpu.memory_space<vmem>>, vector<1x128xf32>
      %23 = vector.broadcast %22 : vector<1x128xf32> to vector<16x128xf32>
      %24 = arith.addf %21, %23 : vector<16x128xf32>
      %cst = arith.constant 0.000000e+00 : f32
      %25 = vector.broadcast %cst : f32 to vector<16x128xf32>
      %26 = arith.maximumf %24, %25 : vector<16x128xf32>
      %27 = arith.truncf %26 : vector<16x128xf32> to vector<16x128xbf16>
      %c0_19 = arith.constant 0 : index
      %c0_20 = arith.constant 0 : index
      %c0_21 = arith.constant 0 : index
      %28 = vector.load %arg6[%c0_19, %c0_20, %c0_21] : memref<1x16x128xbf16, #tpu.memory_space<vmem>>, vector<1x16x128xbf16>
      %29 = vector.shape_cast %28 : vector<1x16x128xbf16> to vector<16x128xbf16>
      %30 = vector.shape_cast %27 : vector<16x128xbf16> to vector<1x16x128xbf16>
      tpu.vector_store %arg6[%c0_19, %c0_20, %c0_21], %30 {strides = array<i32>} : memref<1x16x128xbf16, #tpu.memory_space<vmem>>, vector<1x16x128xbf16>,
      %c0_22 = arith.constant 0 : index
      %c0_23 = arith.constant 0 : index
      %c0_24 = arith.constant 0 : index
      %31 = vector.load %arg7[%c0_22, %c0_23, %c0_24] : memref<1x1x128xf32, #tpu.memory_space<vmem>>, vector<1x1x128xf32>
      %32 = vector.shape_cast %31 : vector<1x1x128xf32> to vector<1x128xf32>
      %cst_25 = arith.constant dense<0.000000e+00> : vector<128xf32>
      %33 = vector.multi_reduction <add>, %26, %cst_25 [0] : vector<16x128xf32> to vector<128xf32>
      %34 = vector.shape_cast %33 : vector<128xf32> to vector<1x128xf32>
      %35 = arith.addf %32, %34 : vector<1x128xf32>
      %c0_26 = arith.constant 0 : index
      %c0_27 = arith.constant 0 : index
      %c0_28 = arith.constant 0 : index
      %36 = vector.load %arg7[%c0_26, %c0_27, %c0_28] : memref<1x1x128xf32, #tpu.memory_space<vmem>>, vector<1x1x128xf32>
      %37 = vector.shape_cast %36 : vector<1x1x128xf32> to vector<1x128xf32>
      %38 = vector.shape_cast %35 : vector<1x128xf32> to vector<1x1x128xf32>
      tpu.vector_store %arg7[%c0_26, %c0_27, %c0_28], %38 {strides = array<i32>} : memref<1x1x128xf32, #tpu.memory_space<vmem>>, vector<1x1x128xf32>,
    } else {
    }
    return
  }
  func.func @transform_0(%arg0: i32, %arg1: i32, %arg2: i32) -> (i32, i32, i32, i32) {
    %c0_i32 = arith.constant 0 : i32
    %c0_i32_0 = arith.constant 0 : i32
    return %arg2, %arg0, %arg1, %c0_i32 : i32, i32, i32, i32
  }
  func.func @transform_1(%arg0: i32, %arg1: i32, %arg2: i32) -> (i32, i32, i32) {
    %c0_i32 = arith.constant 0 : i32
    %c0_i32_0 = arith.constant 0 : i32
    %c0_i32_1 = arith.constant 0 : i32
    return %arg2, %c0_i32, %c0_i32_0 : i32, i32, i32
  }
  func.func @transform_2(%arg0: i32, %arg1: i32, %arg2: i32) -> (i32, i32) {
    %c0_i32 = arith.constant 0 : i32
    %c0_i32_0 = arith.constant 0 : i32
    %c0_i32_1 = arith.constant 0 : i32
    return %c0_i32, %c0_i32_0 : i32, i32
  }
  func.func @transform_3(%arg0: i32, %arg1: i32, %arg2: i32) -> (i32, i32, i32) {
    %c0_i32 = arith.constant 0 : i32
    %c0_i32_0 = arith.constant 0 : i32
    return %arg0, %arg1, %c0_i32 : i32, i32, i32
  }
  func.func @transform_4(%arg0: i32, %arg1: i32, %arg2: i32) -> (i32, i32, i32) {
    %c0_i32 = arith.constant 0 : i32
    %c0_i32_0 = arith.constant 0 : i32
    %c0_i32_1 = arith.constant 0 : i32
    return %arg0, %c0_i32, %c0_i32_0 : i32, i32, i32
  }
}

module attributes {stable_mosaic.version = 11 : i64} {
  func.func @_pw_kernel(%arg0: i32, %arg1: i32, %arg2: memref<1x16x128xbf16, #tpu.memory_space<vmem>>, %arg3: memref<1x1x128xf32, #tpu.memory_space<vmem>>, %arg4: memref<128x128xbf16, #tpu.memory_space<vmem>>, %arg5: memref<1x128xf32, #tpu.memory_space<vmem>>, %arg6: memref<1x16x128xbf16, #tpu.memory_space<vmem>>) attributes {dimension_semantics = [#tpu.dimension_semantics<parallel>, #tpu.dimension_semantics<parallel>], iteration_bounds = array<i64: 2, 1>, scalar_prefetch = 0 : i64, scratch_operands = 0 : i64, tpu.core_type = #tpu.core_type<tc>, window_params = [{transform_indices = @transform_0, window_bounds = array<i64: 1, 16, 128>}, {transform_indices = @transform_1, window_bounds = array<i64: 1, 1, 128>}, {pipeline_mode = #tpu.pipeline_mode<synchronous>, transform_indices = @transform_2, window_bounds = array<i64: 128, 128>}, {pipeline_mode = #tpu.pipeline_mode<synchronous>, transform_indices = @transform_3, window_bounds = array<i64: 1, 128>}, {transform_indices = @transform_4, window_bounds = array<i64: 1, 16, 128>}]} {
    %c0 = arith.constant 0 : index
    %c0_0 = arith.constant 0 : index
    %c0_1 = arith.constant 0 : index
    %0 = vector.load %arg2[%c0, %c0_0, %c0_1] : memref<1x16x128xbf16, #tpu.memory_space<vmem>>, vector<1x16x128xbf16>
    %1 = vector.shape_cast %0 : vector<1x16x128xbf16> to vector<16x128xbf16>
    %2 = arith.extf %1 : vector<16x128xbf16> to vector<16x128xf32>
    %c0_2 = arith.constant 0 : index
    %c0_3 = arith.constant 0 : index
    %c0_4 = arith.constant 0 : index
    %3 = vector.load %arg3[%c0_2, %c0_3, %c0_4] : memref<1x1x128xf32, #tpu.memory_space<vmem>>, vector<1x1x128xf32>
    %4 = vector.shape_cast %3 : vector<1x1x128xf32> to vector<1x128xf32>
    %5 = vector.broadcast %4 : vector<1x128xf32> to vector<16x128xf32>
    %6 = arith.mulf %2, %5 : vector<16x128xf32>
    %7 = arith.truncf %6 : vector<16x128xf32> to vector<16x128xbf16>
    %c0_5 = arith.constant 0 : index
    %c0_6 = arith.constant 0 : index
    %8 = vector.load %arg4[%c0_5, %c0_6] : memref<128x128xbf16, #tpu.memory_space<vmem>>, vector<128x128xbf16>
    %cst = arith.constant dense<0.000000e+00> : vector<16x128xf32>
    %9 = tpu.matmul %7, %8, %cst {dimension_numbers = #tpu.dot_dimension_numbers<[1], [0], [0], [1], [0, 0, 1, 1], [], []>} : vector<16x128xbf16>, vector<128x128xbf16>, vector<16x128xf32> -> vector<16x128xf32>
    %c0_7 = arith.constant 0 : index
    %c0_8 = arith.constant 0 : index
    %10 = vector.load %arg5[%c0_7, %c0_8] : memref<1x128xf32, #tpu.memory_space<vmem>>, vector<1x128xf32>
    %11 = vector.broadcast %10 : vector<1x128xf32> to vector<16x128xf32>
    %12 = arith.addf %9, %11 : vector<16x128xf32>
    %13 = arith.truncf %12 : vector<16x128xf32> to vector<16x128xbf16>
    %c0_9 = arith.constant 0 : index
    %c0_10 = arith.constant 0 : index
    %c0_11 = arith.constant 0 : index
    %14 = vector.load %arg6[%c0_9, %c0_10, %c0_11] : memref<1x16x128xbf16, #tpu.memory_space<vmem>>, vector<1x16x128xbf16>
    %15 = vector.shape_cast %14 : vector<1x16x128xbf16> to vector<16x128xbf16>
    %16 = vector.shape_cast %13 : vector<16x128xbf16> to vector<1x16x128xbf16>
    tpu.vector_store %arg6[%c0_9, %c0_10, %c0_11], %16 {strides = array<i32>} : memref<1x16x128xbf16, #tpu.memory_space<vmem>>, vector<1x16x128xbf16>,
    return
  }
  func.func @transform_0(%arg0: i32, %arg1: i32) -> (i32, i32, i32) {
    %c0_i32 = arith.constant 0 : i32
    %c0_i32_0 = arith.constant 0 : i32
    return %arg0, %arg1, %c0_i32 : i32, i32, i32
  }
  func.func @transform_1(%arg0: i32, %arg1: i32) -> (i32, i32, i32) {
    %c0_i32 = arith.constant 0 : i32
    %c0_i32_0 = arith.constant 0 : i32
    %c0_i32_1 = arith.constant 0 : i32
    return %arg0, %c0_i32, %c0_i32_0 : i32, i32, i32
  }
  func.func @transform_2(%arg0: i32, %arg1: i32) -> (i32, i32) {
    %c0_i32 = arith.constant 0 : i32
    %c0_i32_0 = arith.constant 0 : i32
    %c0_i32_1 = arith.constant 0 : i32
    return %c0_i32, %c0_i32_0 : i32, i32
  }
  func.func @transform_3(%arg0: i32, %arg1: i32) -> (i32, i32) {
    %c0_i32 = arith.constant 0 : i32
    %c0_i32_0 = arith.constant 0 : i32
    %c0_i32_1 = arith.constant 0 : i32
    return %c0_i32, %c0_i32_0 : i32, i32
  }
  func.func @transform_4(%arg0: i32, %arg1: i32) -> (i32, i32, i32) {
    %c0_i32 = arith.constant 0 : i32
    %c0_i32_0 = arith.constant 0 : i32
    return %arg0, %arg1, %c0_i32 : i32, i32, i32
  }
}

module attributes {stable_mosaic.version = 11 : i64} {
  func.func @_pw_kernel(%arg0: i32, %arg1: i32, %arg2: memref<1x16x128xbf16, #tpu.memory_space<vmem>>, %arg3: memref<128x128xbf16, #tpu.memory_space<vmem>>, %arg4: memref<1x128xf32, #tpu.memory_space<vmem>>, %arg5: memref<1x16x128xbf16, #tpu.memory_space<vmem>>) attributes {dimension_semantics = [#tpu.dimension_semantics<parallel>, #tpu.dimension_semantics<parallel>], iteration_bounds = array<i64: 2, 1>, scalar_prefetch = 0 : i64, scratch_operands = 0 : i64, tpu.core_type = #tpu.core_type<tc>, window_params = [{transform_indices = @transform_0, window_bounds = array<i64: 1, 16, 128>}, {pipeline_mode = #tpu.pipeline_mode<synchronous>, transform_indices = @transform_1, window_bounds = array<i64: 128, 128>}, {pipeline_mode = #tpu.pipeline_mode<synchronous>, transform_indices = @transform_2, window_bounds = array<i64: 1, 128>}, {transform_indices = @transform_3, window_bounds = array<i64: 1, 16, 128>}]} {
    %c0 = arith.constant 0 : index
    %c0_0 = arith.constant 0 : index
    %c0_1 = arith.constant 0 : index
    %0 = vector.load %arg2[%c0, %c0_0, %c0_1] : memref<1x16x128xbf16, #tpu.memory_space<vmem>>, vector<1x16x128xbf16>
    %1 = vector.shape_cast %0 : vector<1x16x128xbf16> to vector<16x128xbf16>
    %c0_2 = arith.constant 0 : index
    %c0_3 = arith.constant 0 : index
    %2 = vector.load %arg3[%c0_2, %c0_3] : memref<128x128xbf16, #tpu.memory_space<vmem>>, vector<128x128xbf16>
    %cst = arith.constant dense<0.000000e+00> : vector<16x128xf32>
    %3 = tpu.matmul %1, %2, %cst {dimension_numbers = #tpu.dot_dimension_numbers<[1], [0], [0], [1], [0, 0, 1, 1], [], []>} : vector<16x128xbf16>, vector<128x128xbf16>, vector<16x128xf32> -> vector<16x128xf32>
    %c0_4 = arith.constant 0 : index
    %c0_5 = arith.constant 0 : index
    %4 = vector.load %arg4[%c0_4, %c0_5] : memref<1x128xf32, #tpu.memory_space<vmem>>, vector<1x128xf32>
    %5 = vector.broadcast %4 : vector<1x128xf32> to vector<16x128xf32>
    %6 = arith.addf %3, %5 : vector<16x128xf32>
    %cst_6 = arith.constant 0.000000e+00 : f32
    %7 = vector.broadcast %cst_6 : f32 to vector<16x128xf32>
    %8 = arith.maximumf %6, %7 : vector<16x128xf32>
    %9 = arith.truncf %8 : vector<16x128xf32> to vector<16x128xbf16>
    %c0_7 = arith.constant 0 : index
    %c0_8 = arith.constant 0 : index
    %c0_9 = arith.constant 0 : index
    %10 = vector.load %arg5[%c0_7, %c0_8, %c0_9] : memref<1x16x128xbf16, #tpu.memory_space<vmem>>, vector<1x16x128xbf16>
    %11 = vector.shape_cast %10 : vector<1x16x128xbf16> to vector<16x128xbf16>
    %12 = vector.shape_cast %9 : vector<16x128xbf16> to vector<1x16x128xbf16>
    tpu.vector_store %arg5[%c0_7, %c0_8, %c0_9], %12 {strides = array<i32>} : memref<1x16x128xbf16, #tpu.memory_space<vmem>>, vector<1x16x128xbf16>,
    return
  }
  func.func @transform_0(%arg0: i32, %arg1: i32) -> (i32, i32, i32) {
    %c0_i32 = arith.constant 0 : i32
    %c0_i32_0 = arith.constant 0 : i32
    return %arg0, %arg1, %c0_i32 : i32, i32, i32
  }
  func.func @transform_1(%arg0: i32, %arg1: i32) -> (i32, i32) {
    %c0_i32 = arith.constant 0 : i32
    %c0_i32_0 = arith.constant 0 : i32
    %c0_i32_1 = arith.constant 0 : i32
    return %c0_i32, %c0_i32_0 : i32, i32
  }
  func.func @transform_2(%arg0: i32, %arg1: i32) -> (i32, i32) {
    %c0_i32 = arith.constant 0 : i32
    %c0_i32_0 = arith.constant 0 : i32
    %c0_i32_1 = arith.constant 0 : i32
    return %c0_i32, %c0_i32_0 : i32, i32
  }
  func.func @transform_3(%arg0: i32, %arg1: i32) -> (i32, i32, i32) {
    %c0_i32 = arith.constant 0 : i32
    %c0_i32_0 = arith.constant 0 : i32
    return %arg0, %arg1, %c0_i32 : i32, i32, i32
  }
}

module attributes {stable_mosaic.version = 11 : i64} {
  func.func @_pw_kernel(%arg0: i32, %arg1: i32, %arg2: memref<1x16x128xbf16, #tpu.memory_space<vmem>>, %arg3: memref<128x128xbf16, #tpu.memory_space<vmem>>, %arg4: memref<1x128xf32, #tpu.memory_space<vmem>>, %arg5: memref<1x16x128xbf16, #tpu.memory_space<vmem>>) attributes {dimension_semantics = [#tpu.dimension_semantics<parallel>, #tpu.dimension_semantics<parallel>], iteration_bounds = array<i64: 2, 1>, scalar_prefetch = 0 : i64, scratch_operands = 0 : i64, tpu.core_type = #tpu.core_type<tc>, window_params = [{transform_indices = @transform_0, window_bounds = array<i64: 1, 16, 128>}, {pipeline_mode = #tpu.pipeline_mode<synchronous>, transform_indices = @transform_1, window_bounds = array<i64: 128, 128>}, {pipeline_mode = #tpu.pipeline_mode<synchronous>, transform_indices = @transform_2, window_bounds = array<i64: 1, 128>}, {transform_indices = @transform_3, window_bounds = array<i64: 1, 16, 128>}]} {
    %c0 = arith.constant 0 : index
    %c0_0 = arith.constant 0 : index
    %c0_1 = arith.constant 0 : index
    %0 = vector.load %arg2[%c0, %c0_0, %c0_1] : memref<1x16x128xbf16, #tpu.memory_space<vmem>>, vector<1x16x128xbf16>
    %1 = vector.shape_cast %0 : vector<1x16x128xbf16> to vector<16x128xbf16>
    %c0_2 = arith.constant 0 : index
    %c0_3 = arith.constant 0 : index
    %2 = vector.load %arg3[%c0_2, %c0_3] : memref<128x128xbf16, #tpu.memory_space<vmem>>, vector<128x128xbf16>
    %cst = arith.constant dense<0.000000e+00> : vector<16x128xf32>
    %3 = tpu.matmul %1, %2, %cst {dimension_numbers = #tpu.dot_dimension_numbers<[1], [0], [0], [1], [0, 0, 1, 1], [], []>} : vector<16x128xbf16>, vector<128x128xbf16>, vector<16x128xf32> -> vector<16x128xf32>
    %c0_4 = arith.constant 0 : index
    %c0_5 = arith.constant 0 : index
    %4 = vector.load %arg4[%c0_4, %c0_5] : memref<1x128xf32, #tpu.memory_space<vmem>>, vector<1x128xf32>
    %5 = vector.broadcast %4 : vector<1x128xf32> to vector<16x128xf32>
    %6 = arith.addf %3, %5 : vector<16x128xf32>
    %7 = arith.truncf %6 : vector<16x128xf32> to vector<16x128xbf16>
    %c0_6 = arith.constant 0 : index
    %c0_7 = arith.constant 0 : index
    %c0_8 = arith.constant 0 : index
    %8 = vector.load %arg5[%c0_6, %c0_7, %c0_8] : memref<1x16x128xbf16, #tpu.memory_space<vmem>>, vector<1x16x128xbf16>
    %9 = vector.shape_cast %8 : vector<1x16x128xbf16> to vector<16x128xbf16>
    %10 = vector.shape_cast %7 : vector<16x128xbf16> to vector<1x16x128xbf16>
    tpu.vector_store %arg5[%c0_6, %c0_7, %c0_8], %10 {strides = array<i32>} : memref<1x16x128xbf16, #tpu.memory_space<vmem>>, vector<1x16x128xbf16>,
    return
  }
  func.func @transform_0(%arg0: i32, %arg1: i32) -> (i32, i32, i32) {
    %c0_i32 = arith.constant 0 : i32
    %c0_i32_0 = arith.constant 0 : i32
    return %arg0, %arg1, %c0_i32 : i32, i32, i32
  }
  func.func @transform_1(%arg0: i32, %arg1: i32) -> (i32, i32) {
    %c0_i32 = arith.constant 0 : i32
    %c0_i32_0 = arith.constant 0 : i32
    %c0_i32_1 = arith.constant 0 : i32
    return %c0_i32, %c0_i32_0 : i32, i32
  }
  func.func @transform_2(%arg0: i32, %arg1: i32) -> (i32, i32) {
    %c0_i32 = arith.constant 0 : i32
    %c0_i32_0 = arith.constant 0 : i32
    %c0_i32_1 = arith.constant 0 : i32
    return %c0_i32, %c0_i32_0 : i32, i32
  }
  func.func @transform_3(%arg0: i32, %arg1: i32) -> (i32, i32, i32) {
    %c0_i32 = arith.constant 0 : i32
    %c0_i32_0 = arith.constant 0 : i32
    return %arg0, %arg1, %c0_i32 : i32, i32, i32
  }
}

module attributes {stable_mosaic.version = 11 : i64} {
  func.func @_dw_taps_kernel(%arg0: i32, %arg1: i32, %arg2: i32, %arg3: memref<1x1x16x128xbf16, #tpu.memory_space<vmem>>, %arg4: memref<1x1x128xf32, #tpu.memory_space<vmem>>, %arg5: memref<1x128xf32, #tpu.memory_space<vmem>>, %arg6: memref<1x16x128xbf16, #tpu.memory_space<vmem>>, %arg7: memref<16x128xf32, #tpu.memory_space<vmem>>) attributes {dimension_semantics = [#tpu.dimension_semantics<parallel>, #tpu.dimension_semantics<parallel>, #tpu.dimension_semantics<arbitrary>], iteration_bounds = array<i64: 2, 1, 9>, scalar_prefetch = 0 : i64, scratch_operands = 1 : i64, tpu.core_type = #tpu.core_type<tc>, window_params = [{transform_indices = @transform_0, window_bounds = array<i64: 1, 1, 16, 128>}, {transform_indices = @transform_1, window_bounds = array<i64: 1, 1, 128>}, {pipeline_mode = #tpu.pipeline_mode<synchronous>, transform_indices = @transform_2, window_bounds = array<i64: 1, 128>}, {transform_indices = @transform_3, window_bounds = array<i64: 1, 16, 128>}]} {
    %c0_i32 = arith.constant 0 : i32
    %0 = arith.cmpi eq, %arg2, %c0_i32 : i32
    %1 = arith.extui %0 : i1 to i32
    %c0_i32_0 = arith.constant 0 : i32
    %2 = arith.cmpi ne, %1, %c0_i32_0 : i32
    scf.if %2 {
      %cst = arith.constant 0.000000e+00 : f32
      %16 = vector.broadcast %cst : f32 to vector<16x128xf32>
      %c0_12 = arith.constant 0 : index
      %c0_13 = arith.constant 0 : index
      %17 = vector.load %arg7[%c0_12, %c0_13] : memref<16x128xf32, #tpu.memory_space<vmem>>, vector<16x128xf32>
      tpu.vector_store %arg7[%c0_12, %c0_13], %16 {strides = array<i32>} : memref<16x128xf32, #tpu.memory_space<vmem>>, vector<16x128xf32>,
    } else {
    }
    %c0 = arith.constant 0 : index
    %c0_1 = arith.constant 0 : index
    %3 = vector.load %arg7[%c0, %c0_1] : memref<16x128xf32, #tpu.memory_space<vmem>>, vector<16x128xf32>
    %c0_2 = arith.constant 0 : index
    %c0_3 = arith.constant 0 : index
    %c0_4 = arith.constant 0 : index
    %c0_5 = arith.constant 0 : index
    %4 = vector.load %arg3[%c0_2, %c0_3, %c0_4, %c0_5] : memref<1x1x16x128xbf16, #tpu.memory_space<vmem>>, vector<1x1x16x128xbf16>
    %5 = vector.shape_cast %4 : vector<1x1x16x128xbf16> to vector<16x128xbf16>
    %6 = arith.extf %5 : vector<16x128xbf16> to vector<16x128xf32>
    %c0_6 = arith.constant 0 : index
    %c0_7 = arith.constant 0 : index
    %c0_8 = arith.constant 0 : index
    %7 = vector.load %arg4[%c0_6, %c0_7, %c0_8] : memref<1x1x128xf32, #tpu.memory_space<vmem>>, vector<1x1x128xf32>
    %8 = vector.shape_cast %7 : vector<1x1x128xf32> to vector<1x128xf32>
    %9 = vector.broadcast %8 : vector<1x128xf32> to vector<16x128xf32>
    %10 = arith.mulf %6, %9 : vector<16x128xf32>
    %11 = arith.addf %3, %10 : vector<16x128xf32>
    %c0_9 = arith.constant 0 : index
    %c0_10 = arith.constant 0 : index
    %12 = vector.load %arg7[%c0_9, %c0_10] : memref<16x128xf32, #tpu.memory_space<vmem>>, vector<16x128xf32>
    tpu.vector_store %arg7[%c0_9, %c0_10], %11 {strides = array<i32>} : memref<16x128xf32, #tpu.memory_space<vmem>>, vector<16x128xf32>,
    %c8_i32 = arith.constant 8 : i32
    %13 = arith.cmpi eq, %arg2, %c8_i32 : i32
    %14 = arith.extui %13 : i1 to i32
    %c0_i32_11 = arith.constant 0 : i32
    %15 = arith.cmpi ne, %14, %c0_i32_11 : i32
    scf.if %15 {
      %c0_12 = arith.constant 0 : index
      %c0_13 = arith.constant 0 : index
      %16 = vector.load %arg7[%c0_12, %c0_13] : memref<16x128xf32, #tpu.memory_space<vmem>>, vector<16x128xf32>
      %c0_14 = arith.constant 0 : index
      %c0_15 = arith.constant 0 : index
      %17 = vector.load %arg5[%c0_14, %c0_15] : memref<1x128xf32, #tpu.memory_space<vmem>>, vector<1x128xf32>
      %18 = vector.broadcast %17 : vector<1x128xf32> to vector<16x128xf32>
      %19 = arith.addf %16, %18 : vector<16x128xf32>
      %cst = arith.constant 0.000000e+00 : f32
      %20 = vector.broadcast %cst : f32 to vector<16x128xf32>
      %21 = arith.maximumf %19, %20 : vector<16x128xf32>
      %22 = arith.truncf %21 : vector<16x128xf32> to vector<16x128xbf16>
      %c0_16 = arith.constant 0 : index
      %c0_17 = arith.constant 0 : index
      %c0_18 = arith.constant 0 : index
      %23 = vector.load %arg6[%c0_16, %c0_17, %c0_18] : memref<1x16x128xbf16, #tpu.memory_space<vmem>>, vector<1x16x128xbf16>
      %24 = vector.shape_cast %23 : vector<1x16x128xbf16> to vector<16x128xbf16>
      %25 = vector.shape_cast %22 : vector<16x128xbf16> to vector<1x16x128xbf16>
      tpu.vector_store %arg6[%c0_16, %c0_17, %c0_18], %25 {strides = array<i32>} : memref<1x16x128xbf16, #tpu.memory_space<vmem>>, vector<1x16x128xbf16>,
    } else {
    }
    return
  }
  func.func @transform_0(%arg0: i32, %arg1: i32, %arg2: i32) -> (i32, i32, i32, i32) {
    %c0_i32 = arith.constant 0 : i32
    %c0_i32_0 = arith.constant 0 : i32
    return %arg2, %arg0, %arg1, %c0_i32 : i32, i32, i32, i32
  }
  func.func @transform_1(%arg0: i32, %arg1: i32, %arg2: i32) -> (i32, i32, i32) {
    %c0_i32 = arith.constant 0 : i32
    %c0_i32_0 = arith.constant 0 : i32
    %c0_i32_1 = arith.constant 0 : i32
    return %arg2, %c0_i32, %c0_i32_0 : i32, i32, i32
  }
  func.func @transform_2(%arg0: i32, %arg1: i32, %arg2: i32) -> (i32, i32) {
    %c0_i32 = arith.constant 0 : i32
    %c0_i32_0 = arith.constant 0 : i32
    %c0_i32_1 = arith.constant 0 : i32
    return %c0_i32, %c0_i32_0 : i32, i32
  }
  func.func @transform_3(%arg0: i32, %arg1: i32, %arg2: i32) -> (i32, i32, i32) {
    %c0_i32 = arith.constant 0 : i32
    %c0_i32_0 = arith.constant 0 : i32
    return %arg0, %arg1, %c0_i32 : i32, i32, i32
  }
}

module attributes {stable_mosaic.version = 11 : i64} {
  func.func @_pw_kernel(%arg0: i32, %arg1: i32, %arg2: memref<1x16x128xbf16, #tpu.memory_space<vmem>>, %arg3: memref<128x128xbf16, #tpu.memory_space<vmem>>, %arg4: memref<1x128xf32, #tpu.memory_space<vmem>>, %arg5: memref<1x16x128xbf16, #tpu.memory_space<vmem>>) attributes {dimension_semantics = [#tpu.dimension_semantics<parallel>, #tpu.dimension_semantics<parallel>], iteration_bounds = array<i64: 2, 1>, scalar_prefetch = 0 : i64, scratch_operands = 0 : i64, tpu.core_type = #tpu.core_type<tc>, window_params = [{transform_indices = @transform_0, window_bounds = array<i64: 1, 16, 128>}, {pipeline_mode = #tpu.pipeline_mode<synchronous>, transform_indices = @transform_1, window_bounds = array<i64: 128, 128>}, {pipeline_mode = #tpu.pipeline_mode<synchronous>, transform_indices = @transform_2, window_bounds = array<i64: 1, 128>}, {transform_indices = @transform_3, window_bounds = array<i64: 1, 16, 128>}]} {
    %c0 = arith.constant 0 : index
    %c0_0 = arith.constant 0 : index
    %c0_1 = arith.constant 0 : index
    %0 = vector.load %arg2[%c0, %c0_0, %c0_1] : memref<1x16x128xbf16, #tpu.memory_space<vmem>>, vector<1x16x128xbf16>
    %1 = vector.shape_cast %0 : vector<1x16x128xbf16> to vector<16x128xbf16>
    %c0_2 = arith.constant 0 : index
    %c0_3 = arith.constant 0 : index
    %2 = vector.load %arg3[%c0_2, %c0_3] : memref<128x128xbf16, #tpu.memory_space<vmem>>, vector<128x128xbf16>
    %cst = arith.constant dense<0.000000e+00> : vector<16x128xf32>
    %3 = tpu.matmul %1, %2, %cst {dimension_numbers = #tpu.dot_dimension_numbers<[1], [0], [0], [1], [0, 0, 1, 1], [], []>} : vector<16x128xbf16>, vector<128x128xbf16>, vector<16x128xf32> -> vector<16x128xf32>
    %c0_4 = arith.constant 0 : index
    %c0_5 = arith.constant 0 : index
    %4 = vector.load %arg4[%c0_4, %c0_5] : memref<1x128xf32, #tpu.memory_space<vmem>>, vector<1x128xf32>
    %5 = vector.broadcast %4 : vector<1x128xf32> to vector<16x128xf32>
    %6 = arith.addf %3, %5 : vector<16x128xf32>
    %cst_6 = arith.constant 3.000000e+00 : f32
    %7 = vector.broadcast %cst_6 : f32 to vector<16x128xf32>
    %8 = arith.addf %6, %7 : vector<16x128xf32>
    %cst_7 = arith.constant 0.000000e+00 : f32
    %cst_8 = arith.constant 6.000000e+00 : f32
    %9 = vector.broadcast %cst_7 : f32 to vector<16x128xf32>
    %10 = arith.maximumf %9, %8 : vector<16x128xf32>
    %11 = vector.broadcast %cst_8 : f32 to vector<16x128xf32>
    %12 = arith.minimumf %11, %10 : vector<16x128xf32>
    %13 = arith.mulf %6, %12 : vector<16x128xf32>
    %cst_9 = arith.constant 0.166666672 : f32
    %14 = vector.broadcast %cst_9 : f32 to vector<16x128xf32>
    %15 = arith.mulf %13, %14 : vector<16x128xf32>
    %16 = arith.truncf %15 : vector<16x128xf32> to vector<16x128xbf16>
    %c0_10 = arith.constant 0 : index
    %c0_11 = arith.constant 0 : index
    %c0_12 = arith.constant 0 : index
    %17 = vector.load %arg5[%c0_10, %c0_11, %c0_12] : memref<1x16x128xbf16, #tpu.memory_space<vmem>>, vector<1x16x128xbf16>
    %18 = vector.shape_cast %17 : vector<1x16x128xbf16> to vector<16x128xbf16>
    %19 = vector.shape_cast %16 : vector<16x128xbf16> to vector<1x16x128xbf16>
    tpu.vector_store %arg5[%c0_10, %c0_11, %c0_12], %19 {strides = array<i32>} : memref<1x16x128xbf16, #tpu.memory_space<vmem>>, vector<1x16x128xbf16>,
    return
  }
  func.func @transform_0(%arg0: i32, %arg1: i32) -> (i32, i32, i32) {
    %c0_i32 = arith.constant 0 : i32
    %c0_i32_0 = arith.constant 0 : i32
    return %arg0, %arg1, %c0_i32 : i32, i32, i32
  }
  func.func @transform_1(%arg0: i32, %arg1: i32) -> (i32, i32) {
    %c0_i32 = arith.constant 0 : i32
    %c0_i32_0 = arith.constant 0 : i32
    %c0_i32_1 = arith.constant 0 : i32
    return %c0_i32, %c0_i32_0 : i32, i32
  }
  func.func @transform_2(%arg0: i32, %arg1: i32) -> (i32, i32) {
    %c0_i32 = arith.constant 0 : i32
    %c0_i32_0 = arith.constant 0 : i32
    %c0_i32_1 = arith.constant 0 : i32
    return %c0_i32, %c0_i32_0 : i32, i32
  }
  func.func @transform_3(%arg0: i32, %arg1: i32) -> (i32, i32, i32) {
    %c0_i32 = arith.constant 0 : i32
    %c0_i32_0 = arith.constant 0 : i32
    return %arg0, %arg1, %c0_i32 : i32, i32, i32
  }
}

module attributes {stable_mosaic.version = 11 : i64} {
  func.func @_pw_pool_kernel(%arg0: i32, %arg1: i32, %arg2: memref<1x16x128xbf16, #tpu.memory_space<vmem>>, %arg3: memref<128x256xbf16, #tpu.memory_space<vmem>>, %arg4: memref<1x256xf32, #tpu.memory_space<vmem>>, %arg5: memref<1x1x256xf32, #tpu.memory_space<vmem>>) attributes {dimension_semantics = [#tpu.dimension_semantics<parallel>, #tpu.dimension_semantics<arbitrary>], iteration_bounds = array<i64: 2, 1>, scalar_prefetch = 0 : i64, scratch_operands = 0 : i64, tpu.core_type = #tpu.core_type<tc>, window_params = [{transform_indices = @transform_0, window_bounds = array<i64: 1, 16, 128>}, {pipeline_mode = #tpu.pipeline_mode<synchronous>, transform_indices = @transform_1, window_bounds = array<i64: 128, 256>}, {pipeline_mode = #tpu.pipeline_mode<synchronous>, transform_indices = @transform_2, window_bounds = array<i64: 1, 256>}, {transform_indices = @transform_3, window_bounds = array<i64: 1, 1, 256>}]} {
    %c0_i32 = arith.constant 0 : i32
    %0 = arith.cmpi eq, %arg1, %c0_i32 : i32
    %1 = arith.extui %0 : i1 to i32
    %c0_i32_0 = arith.constant 0 : i32
    %2 = arith.cmpi ne, %1, %c0_i32_0 : i32
    scf.if %2 {
      %cst_18 = arith.constant 0.000000e+00 : f32
      %27 = vector.broadcast %cst_18 : f32 to vector<1x1x256xf32>
      %c0_19 = arith.constant 0 : index
      %c0_20 = arith.constant 0 : index
      %c0_21 = arith.constant 0 : index
      %28 = vector.load %arg5[%c0_19, %c0_20, %c0_21] : memref<1x1x256xf32, #tpu.memory_space<vmem>>, vector<1x1x256xf32>
      tpu.vector_store %arg5[%c0_19, %c0_20, %c0_21], %27 {strides = array<i32>} : memref<1x1x256xf32, #tpu.memory_space<vmem>>, vector<1x1x256xf32>,
    } else {
    }
    %c0 = arith.constant 0 : index
    %c0_1 = arith.constant 0 : index
    %c0_2 = arith.constant 0 : index
    %3 = vector.load %arg2[%c0, %c0_1, %c0_2] : memref<1x16x128xbf16, #tpu.memory_space<vmem>>, vector<1x16x128xbf16>
    %4 = vector.shape_cast %3 : vector<1x16x128xbf16> to vector<16x128xbf16>
    %c0_3 = arith.constant 0 : index
    %c0_4 = arith.constant 0 : index
    %5 = vector.load %arg3[%c0_3, %c0_4] : memref<128x256xbf16, #tpu.memory_space<vmem>>, vector<128x256xbf16>
    %cst = arith.constant dense<0.000000e+00> : vector<16x256xf32>
    %6 = tpu.matmul %4, %5, %cst {dimension_numbers = #tpu.dot_dimension_numbers<[1], [0], [0], [1], [0, 0, 1, 1], [], []>} : vector<16x128xbf16>, vector<128x256xbf16>, vector<16x256xf32> -> vector<16x256xf32>
    %c0_5 = arith.constant 0 : index
    %c0_6 = arith.constant 0 : index
    %7 = vector.load %arg4[%c0_5, %c0_6] : memref<1x256xf32, #tpu.memory_space<vmem>>, vector<1x256xf32>
    %8 = vector.broadcast %7 : vector<1x256xf32> to vector<16x256xf32>
    %9 = arith.addf %6, %8 : vector<16x256xf32>
    %cst_7 = arith.constant 3.000000e+00 : f32
    %10 = vector.broadcast %cst_7 : f32 to vector<16x256xf32>
    %11 = arith.addf %9, %10 : vector<16x256xf32>
    %cst_8 = arith.constant 0.000000e+00 : f32
    %cst_9 = arith.constant 6.000000e+00 : f32
    %12 = vector.broadcast %cst_8 : f32 to vector<16x256xf32>
    %13 = arith.maximumf %12, %11 : vector<16x256xf32>
    %14 = vector.broadcast %cst_9 : f32 to vector<16x256xf32>
    %15 = arith.minimumf %14, %13 : vector<16x256xf32>
    %16 = arith.mulf %9, %15 : vector<16x256xf32>
    %cst_10 = arith.constant 0.166666672 : f32
    %17 = vector.broadcast %cst_10 : f32 to vector<16x256xf32>
    %18 = arith.mulf %16, %17 : vector<16x256xf32>
    %c0_11 = arith.constant 0 : index
    %c0_12 = arith.constant 0 : index
    %c0_13 = arith.constant 0 : index
    %19 = vector.load %arg5[%c0_11, %c0_12, %c0_13] : memref<1x1x256xf32, #tpu.memory_space<vmem>>, vector<1x1x256xf32>
    %20 = vector.shape_cast %19 : vector<1x1x256xf32> to vector<1x256xf32>
    %cst_14 = arith.constant dense<0.000000e+00> : vector<256xf32>
    %21 = vector.multi_reduction <add>, %18, %cst_14 [0] : vector<16x256xf32> to vector<256xf32>
    %22 = vector.shape_cast %21 : vector<256xf32> to vector<1x256xf32>
    %23 = arith.addf %20, %22 : vector<1x256xf32>
    %c0_15 = arith.constant 0 : index
    %c0_16 = arith.constant 0 : index
    %c0_17 = arith.constant 0 : index
    %24 = vector.load %arg5[%c0_15, %c0_16, %c0_17] : memref<1x1x256xf32, #tpu.memory_space<vmem>>, vector<1x1x256xf32>
    %25 = vector.shape_cast %24 : vector<1x1x256xf32> to vector<1x256xf32>
    %26 = vector.shape_cast %23 : vector<1x256xf32> to vector<1x1x256xf32>
    tpu.vector_store %arg5[%c0_15, %c0_16, %c0_17], %26 {strides = array<i32>} : memref<1x1x256xf32, #tpu.memory_space<vmem>>, vector<1x1x256xf32>,
    return
  }
  func.func @transform_0(%arg0: i32, %arg1: i32) -> (i32, i32, i32) {
    %c0_i32 = arith.constant 0 : i32
    %c0_i32_0 = arith.constant 0 : i32
    return %arg0, %arg1, %c0_i32 : i32, i32, i32
  }
  func.func @transform_1(%arg0: i32, %arg1: i32) -> (i32, i32) {
    %c0_i32 = arith.constant 0 : i32
    %c0_i32_0 = arith.constant 0 : i32
    %c0_i32_1 = arith.constant 0 : i32
    return %c0_i32, %c0_i32_0 : i32, i32
  }
  func.func @transform_2(%arg0: i32, %arg1: i32) -> (i32, i32) {
    %c0_i32 = arith.constant 0 : i32
    %c0_i32_0 = arith.constant 0 : i32
    %c0_i32_1 = arith.constant 0 : i32
    return %c0_i32, %c0_i32_0 : i32, i32
  }
  func.func @transform_3(%arg0: i32, %arg1: i32) -> (i32, i32, i32) {
    %c0_i32 = arith.constant 0 : i32
    %c0_i32_0 = arith.constant 0 : i32
    %c0_i32_1 = arith.constant 0 : i32
    return %arg0, %c0_i32, %c0_i32_0 : i32, i32, i32
  }
}

module attributes {stable_mosaic.version = 11 : i64} {
  func.func @_dw_taps_kernel(%arg0: i32, %arg1: i32, %arg2: i32, %arg3: memref<1x1x16x128xbf16, #tpu.memory_space<vmem>>, %arg4: memref<1x1x128xf32, #tpu.memory_space<vmem>>, %arg5: memref<1x128xf32, #tpu.memory_space<vmem>>, %arg6: memref<1x16x128xbf16, #tpu.memory_space<vmem>>, %arg7: memref<1x1x128xf32, #tpu.memory_space<vmem>>, %arg8: memref<16x128xf32, #tpu.memory_space<vmem>>) attributes {dimension_semantics = [#tpu.dimension_semantics<parallel>, #tpu.dimension_semantics<arbitrary>, #tpu.dimension_semantics<arbitrary>], iteration_bounds = array<i64: 2, 1, 25>, scalar_prefetch = 0 : i64, scratch_operands = 1 : i64, tpu.core_type = #tpu.core_type<tc>, window_params = [{transform_indices = @transform_0, window_bounds = array<i64: 1, 1, 16, 128>}, {transform_indices = @transform_1, window_bounds = array<i64: 1, 1, 128>}, {pipeline_mode = #tpu.pipeline_mode<synchronous>, transform_indices = @transform_2, window_bounds = array<i64: 1, 128>}, {transform_indices = @transform_3, window_bounds = array<i64: 1, 16, 128>}, {transform_indices = @transform_4, window_bounds = array<i64: 1, 1, 128>}]} {
    %c0_i32 = arith.constant 0 : i32
    %0 = arith.cmpi eq, %arg2, %c0_i32 : i32
    %1 = arith.extui %0 : i1 to i32
    %c0_i32_0 = arith.constant 0 : i32
    %2 = arith.cmpi ne, %1, %c0_i32_0 : i32
    scf.if %2 {
      %cst = arith.constant 0.000000e+00 : f32
      %21 = vector.broadcast %cst : f32 to vector<16x128xf32>
      %c0_15 = arith.constant 0 : index
      %c0_16 = arith.constant 0 : index
      %22 = vector.load %arg8[%c0_15, %c0_16] : memref<16x128xf32, #tpu.memory_space<vmem>>, vector<16x128xf32>
      tpu.vector_store %arg8[%c0_15, %c0_16], %21 {strides = array<i32>} : memref<16x128xf32, #tpu.memory_space<vmem>>, vector<16x128xf32>,
    } else {
    }
    %c0_i32_1 = arith.constant 0 : i32
    %3 = arith.cmpi eq, %arg2, %c0_i32_1 : i32
    %c0_i32_2 = arith.constant 0 : i32
    %4 = arith.cmpi eq, %arg1, %c0_i32_2 : i32
    %5 = arith.andi %3, %4 : i1
    %6 = arith.extui %5 : i1 to i32
    %c0_i32_3 = arith.constant 0 : i32
    %7 = arith.cmpi ne, %6, %c0_i32_3 : i32
    scf.if %7 {
      %cst = arith.constant 0.000000e+00 : f32
      %21 = vector.broadcast %cst : f32 to vector<1x1x128xf32>
      %c0_15 = arith.constant 0 : index
      %c0_16 = arith.constant 0 : index
      %c0_17 = arith.constant 0 : index
      %22 = vector.load %arg7[%c0_15, %c0_16, %c0_17] : memref<1x1x128xf32, #tpu.memory_space<vmem>>, vector<1x1x128xf32>
      tpu.vector_store %arg7[%c0_15, %c0_16, %c0_17], %21 {strides = array<i32>} : memref<1x1x128xf32, #tpu.memory_space<vmem>>, vector<1x1x128xf32>,
    } else {
    }
    %c0 = arith.constant 0 : index
    %c0_4 = arith.constant 0 : index
    %8 = vector.load %arg8[%c0, %c0_4] : memref<16x128xf32, #tpu.memory_space<vmem>>, vector<16x128xf32>
    %c0_5 = arith.constant 0 : index
    %c0_6 = arith.constant 0 : index
    %c0_7 = arith.constant 0 : index
    %c0_8 = arith.constant 0 : index
    %9 = vector.load %arg3[%c0_5, %c0_6, %c0_7, %c0_8] : memref<1x1x16x128xbf16, #tpu.memory_space<vmem>>, vector<1x1x16x128xbf16>
    %10 = vector.shape_cast %9 : vector<1x1x16x128xbf16> to vector<16x128xbf16>
    %11 = arith.extf %10 : vector<16x128xbf16> to vector<16x128xf32>
    %c0_9 = arith.constant 0 : index
    %c0_10 = arith.constant 0 : index
    %c0_11 = arith.constant 0 : index
    %12 = vector.load %arg4[%c0_9, %c0_10, %c0_11] : memref<1x1x128xf32, #tpu.memory_space<vmem>>, vector<1x1x128xf32>
    %13 = vector.shape_cast %12 : vector<1x1x128xf32> to vector<1x128xf32>
    %14 = vector.broadcast %13 : vector<1x128xf32> to vector<16x128xf32>
    %15 = arith.mulf %11, %14 : vector<16x128xf32>
    %16 = arith.addf %8, %15 : vector<16x128xf32>
    %c0_12 = arith.constant 0 : index
    %c0_13 = arith.constant 0 : index
    %17 = vector.load %arg8[%c0_12, %c0_13] : memref<16x128xf32, #tpu.memory_space<vmem>>, vector<16x128xf32>
    tpu.vector_store %arg8[%c0_12, %c0_13], %16 {strides = array<i32>} : memref<16x128xf32, #tpu.memory_space<vmem>>, vector<16x128xf32>,
    %c24_i32 = arith.constant 24 : i32
    %18 = arith.cmpi eq, %arg2, %c24_i32 : i32
    %19 = arith.extui %18 : i1 to i32
    %c0_i32_14 = arith.constant 0 : i32
    %20 = arith.cmpi ne, %19, %c0_i32_14 : i32
    scf.if %20 {
      %c0_15 = arith.constant 0 : index
      %c0_16 = arith.constant 0 : index
      %21 = vector.load %arg8[%c0_15, %c0_16] : memref<16x128xf32, #tpu.memory_space<vmem>>, vector<16x128xf32>
      %c0_17 = arith.constant 0 : index
      %c0_18 = arith.constant 0 : index
      %22 = vector.load %arg5[%c0_17, %c0_18] : memref<1x128xf32, #tpu.memory_space<vmem>>, vector<1x128xf32>
      %23 = vector.broadcast %22 : vector<1x128xf32> to vector<16x128xf32>
      %24 = arith.addf %21, %23 : vector<16x128xf32>
      %cst = arith.constant 3.000000e+00 : f32
      %25 = vector.broadcast %cst : f32 to vector<16x128xf32>
      %26 = arith.addf %24, %25 : vector<16x128xf32>
      %cst_19 = arith.constant 0.000000e+00 : f32
      %cst_20 = arith.constant 6.000000e+00 : f32
      %27 = vector.broadcast %cst_19 : f32 to vector<16x128xf32>
      %28 = arith.maximumf %27, %26 : vector<16x128xf32>
      %29 = vector.broadcast %cst_20 : f32 to vector<16x128xf32>
      %30 = arith.minimumf %29, %28 : vector<16x128xf32>
      %31 = arith.mulf %24, %30 : vector<16x128xf32>
      %cst_21 = arith.constant 0.166666672 : f32
      %32 = vector.broadcast %cst_21 : f32 to vector<16x128xf32>
      %33 = arith.mulf %31, %32 : vector<16x128xf32>
      %34 = arith.truncf %33 : vector<16x128xf32> to vector<16x128xbf16>
      %c0_22 = arith.constant 0 : index
      %c0_23 = arith.constant 0 : index
      %c0_24 = arith.constant 0 : index
      %35 = vector.load %arg6[%c0_22, %c0_23, %c0_24] : memref<1x16x128xbf16, #tpu.memory_space<vmem>>, vector<1x16x128xbf16>
      %36 = vector.shape_cast %35 : vector<1x16x128xbf16> to vector<16x128xbf16>
      %37 = vector.shape_cast %34 : vector<16x128xbf16> to vector<1x16x128xbf16>
      tpu.vector_store %arg6[%c0_22, %c0_23, %c0_24], %37 {strides = array<i32>} : memref<1x16x128xbf16, #tpu.memory_space<vmem>>, vector<1x16x128xbf16>,
      %c0_25 = arith.constant 0 : index
      %c0_26 = arith.constant 0 : index
      %c0_27 = arith.constant 0 : index
      %38 = vector.load %arg7[%c0_25, %c0_26, %c0_27] : memref<1x1x128xf32, #tpu.memory_space<vmem>>, vector<1x1x128xf32>
      %39 = vector.shape_cast %38 : vector<1x1x128xf32> to vector<1x128xf32>
      %cst_28 = arith.constant dense<0.000000e+00> : vector<128xf32>
      %40 = vector.multi_reduction <add>, %33, %cst_28 [0] : vector<16x128xf32> to vector<128xf32>
      %41 = vector.shape_cast %40 : vector<128xf32> to vector<1x128xf32>
      %42 = arith.addf %39, %41 : vector<1x128xf32>
      %c0_29 = arith.constant 0 : index
      %c0_30 = arith.constant 0 : index
      %c0_31 = arith.constant 0 : index
      %43 = vector.load %arg7[%c0_29, %c0_30, %c0_31] : memref<1x1x128xf32, #tpu.memory_space<vmem>>, vector<1x1x128xf32>
      %44 = vector.shape_cast %43 : vector<1x1x128xf32> to vector<1x128xf32>
      %45 = vector.shape_cast %42 : vector<1x128xf32> to vector<1x1x128xf32>
      tpu.vector_store %arg7[%c0_29, %c0_30, %c0_31], %45 {strides = array<i32>} : memref<1x1x128xf32, #tpu.memory_space<vmem>>, vector<1x1x128xf32>,
    } else {
    }
    return
  }
  func.func @transform_0(%arg0: i32, %arg1: i32, %arg2: i32) -> (i32, i32, i32, i32) {
    %c0_i32 = arith.constant 0 : i32
    %c0_i32_0 = arith.constant 0 : i32
    return %arg2, %arg0, %arg1, %c0_i32 : i32, i32, i32, i32
  }
  func.func @transform_1(%arg0: i32, %arg1: i32, %arg2: i32) -> (i32, i32, i32) {
    %c0_i32 = arith.constant 0 : i32
    %c0_i32_0 = arith.constant 0 : i32
    %c0_i32_1 = arith.constant 0 : i32
    return %arg2, %c0_i32, %c0_i32_0 : i32, i32, i32
  }
  func.func @transform_2(%arg0: i32, %arg1: i32, %arg2: i32) -> (i32, i32) {
    %c0_i32 = arith.constant 0 : i32
    %c0_i32_0 = arith.constant 0 : i32
    %c0_i32_1 = arith.constant 0 : i32
    return %c0_i32, %c0_i32_0 : i32, i32
  }
  func.func @transform_3(%arg0: i32, %arg1: i32, %arg2: i32) -> (i32, i32, i32) {
    %c0_i32 = arith.constant 0 : i32
    %c0_i32_0 = arith.constant 0 : i32
    return %arg0, %arg1, %c0_i32 : i32, i32, i32
  }
  func.func @transform_4(%arg0: i32, %arg1: i32, %arg2: i32) -> (i32, i32, i32) {
    %c0_i32 = arith.constant 0 : i32
    %c0_i32_0 = arith.constant 0 : i32
    %c0_i32_1 = arith.constant 0 : i32
    return %arg0, %c0_i32, %c0_i32_0 : i32, i32, i32
  }
}

module attributes {stable_mosaic.version = 11 : i64} {
  func.func @_pw_kernel(%arg0: i32, %arg1: i32, %arg2: memref<1x2x256xf32, #tpu.memory_space<vmem>>, %arg3: memref<256x128xbf16, #tpu.memory_space<vmem>>, %arg4: memref<1x128xf32, #tpu.memory_space<vmem>>, %arg5: memref<1x2x128xbf16, #tpu.memory_space<vmem>>) attributes {dimension_semantics = [#tpu.dimension_semantics<parallel>, #tpu.dimension_semantics<parallel>], iteration_bounds = array<i64: 1, 1>, scalar_prefetch = 0 : i64, scratch_operands = 0 : i64, tpu.core_type = #tpu.core_type<tc>, window_params = [{transform_indices = @transform_0, window_bounds = array<i64: 1, 2, 256>}, {pipeline_mode = #tpu.pipeline_mode<synchronous>, transform_indices = @transform_1, window_bounds = array<i64: 256, 128>}, {pipeline_mode = #tpu.pipeline_mode<synchronous>, transform_indices = @transform_2, window_bounds = array<i64: 1, 128>}, {transform_indices = @transform_3, window_bounds = array<i64: 1, 2, 128>}]} {
    %c0 = arith.constant 0 : index
    %c0_0 = arith.constant 0 : index
    %c0_1 = arith.constant 0 : index
    %0 = vector.load %arg2[%c0, %c0_0, %c0_1] : memref<1x2x256xf32, #tpu.memory_space<vmem>>, vector<1x2x256xf32>
    %1 = vector.shape_cast %0 : vector<1x2x256xf32> to vector<2x256xf32>
    %2 = arith.truncf %1 : vector<2x256xf32> to vector<2x256xbf16>
    %c0_2 = arith.constant 0 : index
    %c0_3 = arith.constant 0 : index
    %3 = vector.load %arg3[%c0_2, %c0_3] : memref<256x128xbf16, #tpu.memory_space<vmem>>, vector<256x128xbf16>
    %cst = arith.constant dense<0.000000e+00> : vector<2x128xf32>
    %4 = tpu.matmul %2, %3, %cst {dimension_numbers = #tpu.dot_dimension_numbers<[1], [0], [0], [1], [0, 0, 1, 1], [], []>} : vector<2x256xbf16>, vector<256x128xbf16>, vector<2x128xf32> -> vector<2x128xf32>
    %c0_4 = arith.constant 0 : index
    %c0_5 = arith.constant 0 : index
    %5 = vector.load %arg4[%c0_4, %c0_5] : memref<1x128xf32, #tpu.memory_space<vmem>>, vector<1x128xf32>
    %6 = vector.broadcast %5 : vector<1x128xf32> to vector<2x128xf32>
    %7 = arith.addf %4, %6 : vector<2x128xf32>
    %cst_6 = arith.constant 3.000000e+00 : f32
    %8 = vector.broadcast %cst_6 : f32 to vector<2x128xf32>
    %9 = arith.addf %7, %8 : vector<2x128xf32>
    %cst_7 = arith.constant 0.000000e+00 : f32
    %cst_8 = arith.constant 6.000000e+00 : f32
    %10 = vector.broadcast %cst_7 : f32 to vector<2x128xf32>
    %11 = arith.maximumf %10, %9 : vector<2x128xf32>
    %12 = vector.broadcast %cst_8 : f32 to vector<2x128xf32>
    %13 = arith.minimumf %12, %11 : vector<2x128xf32>
    %14 = arith.mulf %7, %13 : vector<2x128xf32>
    %cst_9 = arith.constant 0.166666672 : f32
    %15 = vector.broadcast %cst_9 : f32 to vector<2x128xf32>
    %16 = arith.mulf %14, %15 : vector<2x128xf32>
    %17 = arith.truncf %16 : vector<2x128xf32> to vector<2x128xbf16>
    %c0_10 = arith.constant 0 : index
    %c0_11 = arith.constant 0 : index
    %c0_12 = arith.constant 0 : index
    %18 = vector.load %arg5[%c0_10, %c0_11, %c0_12] : memref<1x2x128xbf16, #tpu.memory_space<vmem>>, vector<1x2x128xbf16>
    %19 = vector.shape_cast %18 : vector<1x2x128xbf16> to vector<2x128xbf16>
    %20 = vector.shape_cast %17 : vector<2x128xbf16> to vector<1x2x128xbf16>
    tpu.vector_store %arg5[%c0_10, %c0_11, %c0_12], %20 {strides = array<i32>} : memref<1x2x128xbf16, #tpu.memory_space<vmem>>, vector<1x2x128xbf16>,
    return
  }
  func.func @transform_0(%arg0: i32, %arg1: i32) -> (i32, i32, i32) {
    %c0_i32 = arith.constant 0 : i32
    %c0_i32_0 = arith.constant 0 : i32
    return %arg0, %arg1, %c0_i32 : i32, i32, i32
  }
  func.func @transform_1(%arg0: i32, %arg1: i32) -> (i32, i32) {
    %c0_i32 = arith.constant 0 : i32
    %c0_i32_0 = arith.constant 0 : i32
    %c0_i32_1 = arith.constant 0 : i32
    return %c0_i32, %c0_i32_0 : i32, i32
  }
  func.func @transform_2(%arg0: i32, %arg1: i32) -> (i32, i32) {
    %c0_i32 = arith.constant 0 : i32
    %c0_i32_0 = arith.constant 0 : i32
    %c0_i32_1 = arith.constant 0 : i32
    return %c0_i32, %c0_i32_0 : i32, i32
  }
  func.func @transform_3(%arg0: i32, %arg1: i32) -> (i32, i32, i32) {
    %c0_i32 = arith.constant 0 : i32
    %c0_i32_0 = arith.constant 0 : i32
    return %arg0, %arg1, %c0_i32 : i32, i32, i32
  }
}

module attributes {stable_mosaic.version = 11 : i64} {
  func.func @_pw_kernel(%arg0: i32, %arg1: i32, %arg2: memref<1x16x128xbf16, #tpu.memory_space<vmem>>, %arg3: memref<1x1x128xf32, #tpu.memory_space<vmem>>, %arg4: memref<1x16x128xbf16, #tpu.memory_space<vmem>>, %arg5: memref<128x128xbf16, #tpu.memory_space<vmem>>, %arg6: memref<1x128xf32, #tpu.memory_space<vmem>>, %arg7: memref<1x16x128xbf16, #tpu.memory_space<vmem>>) attributes {dimension_semantics = [#tpu.dimension_semantics<parallel>, #tpu.dimension_semantics<parallel>], iteration_bounds = array<i64: 2, 1>, scalar_prefetch = 0 : i64, scratch_operands = 0 : i64, tpu.core_type = #tpu.core_type<tc>, window_params = [{transform_indices = @transform_0, window_bounds = array<i64: 1, 16, 128>}, {transform_indices = @transform_1, window_bounds = array<i64: 1, 1, 128>}, {transform_indices = @transform_2, window_bounds = array<i64: 1, 16, 128>}, {pipeline_mode = #tpu.pipeline_mode<synchronous>, transform_indices = @transform_3, window_bounds = array<i64: 128, 128>}, {pipeline_mode = #tpu.pipeline_mode<synchronous>, transform_indices = @transform_4, window_bounds = array<i64: 1, 128>}, {transform_indices = @transform_5, window_bounds = array<i64: 1, 16, 128>}]} {
    %c0 = arith.constant 0 : index
    %c0_0 = arith.constant 0 : index
    %c0_1 = arith.constant 0 : index
    %0 = vector.load %arg2[%c0, %c0_0, %c0_1] : memref<1x16x128xbf16, #tpu.memory_space<vmem>>, vector<1x16x128xbf16>
    %1 = vector.shape_cast %0 : vector<1x16x128xbf16> to vector<16x128xbf16>
    %2 = arith.extf %1 : vector<16x128xbf16> to vector<16x128xf32>
    %c0_2 = arith.constant 0 : index
    %c0_3 = arith.constant 0 : index
    %c0_4 = arith.constant 0 : index
    %3 = vector.load %arg3[%c0_2, %c0_3, %c0_4] : memref<1x1x128xf32, #tpu.memory_space<vmem>>, vector<1x1x128xf32>
    %4 = vector.shape_cast %3 : vector<1x1x128xf32> to vector<1x128xf32>
    %5 = vector.broadcast %4 : vector<1x128xf32> to vector<16x128xf32>
    %6 = arith.mulf %2, %5 : vector<16x128xf32>
    %7 = arith.truncf %6 : vector<16x128xf32> to vector<16x128xbf16>
    %c0_5 = arith.constant 0 : index
    %c0_6 = arith.constant 0 : index
    %8 = vector.load %arg5[%c0_5, %c0_6] : memref<128x128xbf16, #tpu.memory_space<vmem>>, vector<128x128xbf16>
    %cst = arith.constant dense<0.000000e+00> : vector<16x128xf32>
    %9 = tpu.matmul %7, %8, %cst {dimension_numbers = #tpu.dot_dimension_numbers<[1], [0], [0], [1], [0, 0, 1, 1], [], []>} : vector<16x128xbf16>, vector<128x128xbf16>, vector<16x128xf32> -> vector<16x128xf32>
    %c0_7 = arith.constant 0 : index
    %c0_8 = arith.constant 0 : index
    %10 = vector.load %arg6[%c0_7, %c0_8] : memref<1x128xf32, #tpu.memory_space<vmem>>, vector<1x128xf32>
    %11 = vector.broadcast %10 : vector<1x128xf32> to vector<16x128xf32>
    %12 = arith.addf %9, %11 : vector<16x128xf32>
    %c0_9 = arith.constant 0 : index
    %c0_10 = arith.constant 0 : index
    %c0_11 = arith.constant 0 : index
    %13 = vector.load %arg4[%c0_9, %c0_10, %c0_11] : memref<1x16x128xbf16, #tpu.memory_space<vmem>>, vector<1x16x128xbf16>
    %14 = vector.shape_cast %13 : vector<1x16x128xbf16> to vector<16x128xbf16>
    %15 = arith.extf %14 : vector<16x128xbf16> to vector<16x128xf32>
    %16 = arith.addf %12, %15 : vector<16x128xf32>
    %17 = arith.truncf %16 : vector<16x128xf32> to vector<16x128xbf16>
    %c0_12 = arith.constant 0 : index
    %c0_13 = arith.constant 0 : index
    %c0_14 = arith.constant 0 : index
    %18 = vector.load %arg7[%c0_12, %c0_13, %c0_14] : memref<1x16x128xbf16, #tpu.memory_space<vmem>>, vector<1x16x128xbf16>
    %19 = vector.shape_cast %18 : vector<1x16x128xbf16> to vector<16x128xbf16>
    %20 = vector.shape_cast %17 : vector<16x128xbf16> to vector<1x16x128xbf16>
    tpu.vector_store %arg7[%c0_12, %c0_13, %c0_14], %20 {strides = array<i32>} : memref<1x16x128xbf16, #tpu.memory_space<vmem>>, vector<1x16x128xbf16>,
    return
  }
  func.func @transform_0(%arg0: i32, %arg1: i32) -> (i32, i32, i32) {
    %c0_i32 = arith.constant 0 : i32
    %c0_i32_0 = arith.constant 0 : i32
    return %arg0, %arg1, %c0_i32 : i32, i32, i32
  }
  func.func @transform_1(%arg0: i32, %arg1: i32) -> (i32, i32, i32) {
    %c0_i32 = arith.constant 0 : i32
    %c0_i32_0 = arith.constant 0 : i32
    %c0_i32_1 = arith.constant 0 : i32
    return %arg0, %c0_i32, %c0_i32_0 : i32, i32, i32
  }
  func.func @transform_2(%arg0: i32, %arg1: i32) -> (i32, i32, i32) {
    %c0_i32 = arith.constant 0 : i32
    %c0_i32_0 = arith.constant 0 : i32
    return %arg0, %arg1, %c0_i32 : i32, i32, i32
  }
  func.func @transform_3(%arg0: i32, %arg1: i32) -> (i32, i32) {
    %c0_i32 = arith.constant 0 : i32
    %c0_i32_0 = arith.constant 0 : i32
    %c0_i32_1 = arith.constant 0 : i32
    return %c0_i32, %c0_i32_0 : i32, i32
  }
  func.func @transform_4(%arg0: i32, %arg1: i32) -> (i32, i32) {
    %c0_i32 = arith.constant 0 : i32
    %c0_i32_0 = arith.constant 0 : i32
    %c0_i32_1 = arith.constant 0 : i32
    return %c0_i32, %c0_i32_0 : i32, i32
  }
  func.func @transform_5(%arg0: i32, %arg1: i32) -> (i32, i32, i32) {
    %c0_i32 = arith.constant 0 : i32
    %c0_i32_0 = arith.constant 0 : i32
    return %arg0, %arg1, %c0_i32 : i32, i32, i32
  }
}

module attributes {stable_mosaic.version = 11 : i64} {
  func.func @_pw_kernel(%arg0: i32, %arg1: i32, %arg2: memref<1x2x128xbf16, #tpu.memory_space<vmem>>, %arg3: memref<128x128xbf16, #tpu.memory_space<vmem>>, %arg4: memref<1x128xf32, #tpu.memory_space<vmem>>, %arg5: memref<1x2x128xbf16, #tpu.memory_space<vmem>>) attributes {dimension_semantics = [#tpu.dimension_semantics<parallel>, #tpu.dimension_semantics<parallel>], iteration_bounds = array<i64: 1, 1>, scalar_prefetch = 0 : i64, scratch_operands = 0 : i64, tpu.core_type = #tpu.core_type<tc>, window_params = [{transform_indices = @transform_0, window_bounds = array<i64: 1, 2, 128>}, {pipeline_mode = #tpu.pipeline_mode<synchronous>, transform_indices = @transform_1, window_bounds = array<i64: 128, 128>}, {pipeline_mode = #tpu.pipeline_mode<synchronous>, transform_indices = @transform_2, window_bounds = array<i64: 1, 128>}, {transform_indices = @transform_3, window_bounds = array<i64: 1, 2, 128>}]} {
    %c0 = arith.constant 0 : index
    %c0_0 = arith.constant 0 : index
    %c0_1 = arith.constant 0 : index
    %0 = vector.load %arg2[%c0, %c0_0, %c0_1] : memref<1x2x128xbf16, #tpu.memory_space<vmem>>, vector<1x2x128xbf16>
    %1 = vector.shape_cast %0 : vector<1x2x128xbf16> to vector<2x128xbf16>
    %c0_2 = arith.constant 0 : index
    %c0_3 = arith.constant 0 : index
    %2 = vector.load %arg3[%c0_2, %c0_3] : memref<128x128xbf16, #tpu.memory_space<vmem>>, vector<128x128xbf16>
    %cst = arith.constant dense<0.000000e+00> : vector<2x128xf32>
    %3 = tpu.matmul %1, %2, %cst {dimension_numbers = #tpu.dot_dimension_numbers<[1], [0], [0], [1], [0, 0, 1, 1], [], []>} : vector<2x128xbf16>, vector<128x128xbf16>, vector<2x128xf32> -> vector<2x128xf32>
    %c0_4 = arith.constant 0 : index
    %c0_5 = arith.constant 0 : index
    %4 = vector.load %arg4[%c0_4, %c0_5] : memref<1x128xf32, #tpu.memory_space<vmem>>, vector<1x128xf32>
    %5 = vector.broadcast %4 : vector<1x128xf32> to vector<2x128xf32>
    %6 = arith.addf %3, %5 : vector<2x128xf32>
    %7 = arith.truncf %6 : vector<2x128xf32> to vector<2x128xbf16>
    %c0_6 = arith.constant 0 : index
    %c0_7 = arith.constant 0 : index
    %c0_8 = arith.constant 0 : index
    %8 = vector.load %arg5[%c0_6, %c0_7, %c0_8] : memref<1x2x128xbf16, #tpu.memory_space<vmem>>, vector<1x2x128xbf16>
    %9 = vector.shape_cast %8 : vector<1x2x128xbf16> to vector<2x128xbf16>
    %10 = vector.shape_cast %7 : vector<2x128xbf16> to vector<1x2x128xbf16>
    tpu.vector_store %arg5[%c0_6, %c0_7, %c0_8], %10 {strides = array<i32>} : memref<1x2x128xbf16, #tpu.memory_space<vmem>>, vector<1x2x128xbf16>,
    return
  }
  func.func @transform_0(%arg0: i32, %arg1: i32) -> (i32, i32, i32) {
    %c0_i32 = arith.constant 0 : i32
    %c0_i32_0 = arith.constant 0 : i32
    return %arg0, %arg1, %c0_i32 : i32, i32, i32
  }
  func.func @transform_1(%arg0: i32, %arg1: i32) -> (i32, i32) {
    %c0_i32 = arith.constant 0 : i32
    %c0_i32_0 = arith.constant 0 : i32
    %c0_i32_1 = arith.constant 0 : i32
    return %c0_i32, %c0_i32_0 : i32, i32
  }
  func.func @transform_2(%arg0: i32, %arg1: i32) -> (i32, i32) {
    %c0_i32 = arith.constant 0 : i32
    %c0_i32_0 = arith.constant 0 : i32
    %c0_i32_1 = arith.constant 0 : i32
    return %c0_i32, %c0_i32_0 : i32, i32
  }
  func.func @transform_3(%arg0: i32, %arg1: i32) -> (i32, i32, i32) {
    %c0_i32 = arith.constant 0 : i32
    %c0_i32_0 = arith.constant 0 : i32
    return %arg0, %arg1, %c0_i32 : i32, i32, i32
  }
}

</mosaic_0001>

<llo_original>
// kernel: mobilenet_v3_forward.14
$region0: #{mobilenet_v3_forward.14}
  #allocation0 [shape = 'u32[]', space=smem, size = 0x4, offset = 0x4, fixed_abs, tag = 'smem constant byte address 0x4 - core index']
  #allocation1 [shape = 'u32[72,128]{1,0:T(1,128)}', space=vmem, size = 0x9000, scoped, tag = 'internal scratch']
  #allocation2 [shape = 'f32[64,128]{1,0:T(8,128)}', space=vmem, size = 0x8000, scoped, tag = 'scratch operand']
  %s0 = inlined_call_operand.vmem [shape: bf16[9,2,64,3], index: 0, kind: input, shape index: {}]
  %s1 = inlined_call_operand.vmem [shape: bf16[9,3,128], index: 1, kind: input, shape index: {}]
  %s2 = inlined_call_operand.vmem [shape: f32[1,128], index: 2, kind: input, shape index: {}]
  %s3 = inlined_call_operand.vmem [shape: bf16[2,64,128], index: 3, kind: output, shape index: {}]
  %s4 = sld [smem:[#allocation0]]
  $region53: #{mobilenet_v3_forward.14} parent=0
    _
  %s6 = ssub.s32 1, %s4
  %s7 = scalar_select 0, %s6, %s4
  loop: start=0, step=1, limit=20
  $region2: #{mobilenet_v3_forward.14} parent=0 // loop_pre_header
    _
  $region3: #{mobilenet_v3_forward.14} parent=0 // loop_header
    %s9 = sphi 0, %s13
    %p10 = scmp.ge.s32.totalorder %s9, 20
    %s16 = sphi 0, %s35
    %s17 = sphi 0, %s31
    %s18 = sphi 0, %s27
    %s19 = sphi 0, %s16
    %s20 = sphi 0, %s17
    %s21 = sphi 0, %s18
    %s22 = sphi 0, %s19
    %s23 = sphi 0, %s20
    %s24 = sphi 0, %s21
    %s42 = sphi 0, %s44
    %s45 = sphi 0, %s42
    %s46 = sphi 0, %s45
    %s62 = sphi 0, %s46
    %s68 = sphi 0, %s70
    %s71 = sphi 0, %s68
    %s72 = sphi 0, %s71
    %s88 = sphi 0, %s72
    %s92 = sphi 0, %s92
    %s94 = sphi 0, %s92
    %s95 = sphi 0, %s94
    %s109 = sphi 0, %s95
    %s117 = sphi 0, %s119
    %s120 = sphi 0, %s117
    %s121 = sphi 0, %s120
    %s137 = sphi 0, %s121
  $region4: #{mobilenet_v3_forward.14} parent=0 // loop_header_branch
    %12 = sbr.rel (%p10) target = $region8
  $region5: #{mobilenet_v3_forward.14} parent=0 // loop_body
    %s14 = ssub.s32 %s9, 1
    %s15 = ssub.s32 %s9, 2
    %s25 = sadd.s32 1, %s18
    %p26 = scmp.ge.s32.totalorder %s25, 9
    %s27 = scalar_select %p26, 0, %s25
    %s28 = sadd.s32 1, %s17
    %s29 = scalar_select %p26, %s28, %s17
    %p30 = scmp.ge.s32.totalorder %s29, 1
    %s31 = scalar_select %p30, 0, %s29
    %s32 = sadd.s32 1, %s16
    %s33 = scalar_select %p30, %s32, %s16
    %p34 = scmp.ge.s32.totalorder %s33, 2
    %s35 = scalar_select %p34, 0, %s33
    %s36 = ssub.s32 %s18, %s27
    %s37 = ssub.s32 %s16, %s35
    %s38 = sor.u32 %s36, %s37
    %s39 = ssub.s32 %s17, %s31
    %s40 = sor.u32 %s38, %s39
    %p41 = scmp.eq.s32.totalorder %s40, 0
    %s43 = sadd.s32 %s42, 1
    %s44 = scalar_select %p41, %s42, %s43
    %p47 = pneg %p41
    %p48 = scmp.eq.s32.totalorder %s9, 17
    %p49 = por %p47, %p48
    %p50 = scmp.ne.s32.totalorder %s42, %s45
    %p51 = scmp.eq.s32.totalorder %s9, 0
    %p52 = por %p50, %p51
    %p53 = scmp.ne.s32.totalorder %s42, %s45
    %p54 = scmp.eq.s32.totalorder %s14, 17
    %p55 = por %p53, %p54
    %p56 = scmp.ne.s32.totalorder %s45, %s46
    %p57 = scmp.eq.s32.totalorder %s14, 0
    %p58 = por %p56, %p57
    %p59 = scmp.ne.s32.totalorder %s45, %s46
    %p60 = scmp.eq.s32.totalorder %s15, 17
    %p61 = por %p59, %p60
    %p63 = scmp.ne.s32.totalorder %s46, %s62
    %p64 = scmp.eq.s32.totalorder %s15, 0
    %p65 = por %p63, %p64
    %s66 = ssub.s32 %s18, %s27
    %p67 = scmp.eq.s32.totalorder %s66, 0
    %s69 = sadd.s32 %s68, 1
    %s70 = scalar_select %p67, %s68, %s69
    %p73 = pneg %p67
    %p74 = scmp.eq.s32.totalorder %s9, 17
    %p75 = por %p73, %p74
    %p76 = scmp.ne.s32.totalorder %s68, %s71
    %p77 = scmp.eq.s32.totalorder %s9, 0
    %p78 = por %p76, %p77
    %p79 = scmp.ne.s32.totalorder %s68, %s71
    %p80 = scmp.eq.s32.totalorder %s14, 17
    %p81 = por %p79, %p80
    %p82 = scmp.ne.s32.totalorder %s71, %s72
    %p83 = scmp.eq.s32.totalorder %s14, 0
    %p84 = por %p82, %p83
    %p85 = scmp.ne.s32.totalorder %s71, %s72
    %p86 = scmp.eq.s32.totalorder %s15, 17
    %p87 = por %p85, %p86
    %p89 = scmp.ne.s32.totalorder %s72, %s88
    %p90 = scmp.eq.s32.totalorder %s15, 0
    %p91 = por %p89, %p90
    %s93 = sadd.s32 %s92, 1
    %p96 = scmp.eq.s32.totalorder %s9, 17
    %p97 = scmp.ne.s32.totalorder %s92, %s94
    %p98 = scmp.eq.s32.totalorder %s9, 0
    %p99 = por %p97, %p98
    %p100 = scmp.ne.s32.totalorder %s92, %s94
    %p101 = scmp.eq.s32.totalorder %s14, 17
    %p102 = por %p100, %p101
    %p103 = scmp.ne.s32.totalorder %s94, %s95
    %p104 = scmp.eq.s32.totalorder %s14, 0
    %p105 = por %p103, %p104
    %p106 = scmp.ne.s32.totalorder %s94, %s95
    %p107 = scmp.eq.s32.totalorder %s15, 17
    %p108 = por %p106, %p107
    %p110 = scmp.ne.s32.totalorder %s95, %s109
    %p111 = scmp.eq.s32.totalorder %s15, 0
    %p112 = por %p110, %p111
    %s113 = ssub.s32 %s16, %s35
    %s114 = ssub.s32 %s17, %s31
    %s115 = sor.u32 %s113, %s114
    %p116 = scmp.eq.s32.totalorder %s115, 0
    %s118 = sadd.s32 %s117, 1
    %s119 = scalar_select %p116, %s117, %s118
    %p122 = pneg %p116
    %p123 = scmp.eq.s32.totalorder %s9, 17
    %p124 = por %p122, %p123
    %p125 = scmp.ne.s32.totalorder %s117, %s120
    %p126 = scmp.eq.s32.totalorder %s9, 0
    %p127 = por %p125, %p126
    %p128 = scmp.ne.s32.totalorder %s117, %s120
    %p129 = scmp.eq.s32.totalorder %s14, 17
    %p130 = por %p128, %p129
    %p131 = scmp.ne.s32.totalorder %s120, %s121
    %p132 = scmp.eq.s32.totalorder %s14, 0
    %p133 = por %p131, %p132
    %p134 = scmp.ne.s32.totalorder %s120, %s121
    %p135 = scmp.eq.s32.totalorder %s15, 17
    %p136 = por %p134, %p135
    %p138 = scmp.ne.s32.totalorder %s121, %s137
    %p139 = scmp.eq.s32.totalorder %s15, 0
    %p140 = por %p138, %p139
    %p141 = scmp.le.s32.totalorder 1, %s9
    %p142 = scmp.lt.s32.totalorder %s9, 19
    %p143 = pnand %p141, %p142
    %p144 = pneg %p143
    // Predicated region
    $region9: #{mobilenet_v3_forward.14} parent=5 // pred_check
      _
    $region10: #{mobilenet_v3_forward.14} parent=5 // pred_check_branch
      %146 = sbr.rel (%p143) target = $region12
    $region11: #{mobilenet_v3_forward.14} parent=5 // pred_region
      %s147 = ssub.s32 %s9, 1
      // Predicated region
      $region13: #{mobilenet_v3_forward.14} parent=11 // pred_check
        %p148 = pneg %p105
      $region14: #{mobilenet_v3_forward.14} parent=11 // pred_check_branch
        %150 = sbr.rel (%p148) target = $region16
      $region15: #{mobilenet_v3_forward.14} parent=11 // pred_region
        _
      $region16: #{mobilenet_v3_forward.14} parent=11 // pred_fallthru
        _
    $region12: #{mobilenet_v3_forward.14} parent=5 // pred_fallthru
      _
    %p151 = scmp.lt.s32.totalorder %s9, 18
    // Predicated region
    $region17: #{mobilenet_v3_forward.14} parent=5 // pred_check
      %p152 = pneg %p151
    $region18: #{mobilenet_v3_forward.14} parent=5 // pred_check_branch
      %154 = sbr.rel (%p152) target = $region20
    $region19: #{mobilenet_v3_forward.14} parent=5 // pred_region
      // Predicated region
      $region21: #{mobilenet_v3_forward.14} parent=19 // pred_check
        %p155 = pneg %p52
      $region22: #{mobilenet_v3_forward.14} parent=19 // pred_check_branch
        %157 = sbr.rel (%p155) target = $region24
      $region23: #{mobilenet_v3_forward.14} parent=19 // pred_region
        %s158 = smul.u32 8, %s17
        %p159 = scmp.lt.s32.totalorder %s18, 8
        %s160 = scalar_select %p159, %s18, 8
        %p161 = scmp.lt.s32.totalorder %s16, 1
        %s162 = scalar_select %p161, %s16, 1
        %p163 = scmp.lt.s32.totalorder %s158, 7
        %s164 = scalar_select %p163, %s158, 7
        %s165 = smul.addr %s162, 8
        %s166 = sadd.s32 %s164, %s165
        %s167 = smul.addr %s160, 16
        %s168 = sadd.s32 %s166, %s167
        %s169 = smul.addr %s168, 4
        %s170 = scalar_lea.vmem %s0, %s169
        %s171 = smul.u32 8, %s17
      $region24: #{mobilenet_v3_forward.14} parent=19 // pred_fallthru
        _
      // Predicated region
      $region25: #{mobilenet_v3_forward.14} parent=19 // pred_check
        %p172 = pneg %p78
      $region26: #{mobilenet_v3_forward.14} parent=19 // pred_check_branch
        %174 = sbr.rel (%p172) target = $region28
      $region27: #{mobilenet_v3_forward.14} parent=19 // pred_region
        %p175 = scmp.lt.s32.totalorder %s18, 8
        %s176 = scalar_select %p175, %s18, 8
        %s177 = smul.addr %s176, 2
        %s178 = scalar_lea.vmem %s1, %s177
      $region28: #{mobilenet_v3_forward.14} parent=19 // pred_fallthru
        _
    $region20: #{mobilenet_v3_forward.14} parent=5 // pred_fallthru
      _
    %p179 = scmp.le.s32.totalorder 1, %s9
    %p180 = scmp.lt.s32.totalorder %s9, 19
    %p181 = pnand %p179, %p180
    %p182 = pneg %p181
    // Predicated region
    $region29: #{mobilenet_v3_forward.14} parent=5 // pred_check
      _
    $region30: #{mobilenet_v3_forward.14} parent=5 // pred_check_branch
      %184 = sbr.rel (%p181) target = $region32
    $region31: #{mobilenet_v3_forward.14} parent=5 // pred_region
      %s185 = ssub.s32 %s9, 1
      %s186 = smul.u32 8, %s20
      %p187 = scmp.lt.s32.totalorder %s21, 8
      %s188 = scalar_select %p187, %s21, 8
      %p189 = scmp.lt.s32.totalorder %s19, 1
      %s190 = scalar_select %p189, %s19, 1
      %p191 = scmp.lt.s32.totalorder %s186, 7
      %s192 = scalar_select %p191, %s186, 7
      %s193 = smul.addr %s190, 8
      %s194 = sadd.s32 %s192, %s193
      %s195 = smul.addr %s188, 16
      %s196 = sadd.s32 %s194, %s195
      %s197 = smul.addr %s196, 4
      %s198 = scalar_lea.vmem %s0, %s197
      %p199 = pneg %p58
      %p200 = pneg %p55
      %p201 = scmp.lt.s32.totalorder %s21, 8
      %s202 = scalar_select %p201, %s21, 8
      %s203 = smul.addr %s202, 2
      %s204 = scalar_lea.vmem %s1, %s203
      %p205 = pneg %p84
      %p206 = pneg %p81
      %p207 = pneg %p105
      %p208 = pneg %p102
      %p209 = pneg %p133
      %p210 = pneg %p130
      %s211 = smul.u32 8, %s20
      %p212 = scmp.lt.s32.totalorder %s19, 1
      %s213 = scalar_select %p212, %s19, 1
      %p214 = scmp.lt.s32.totalorder %s211, 7
      %s215 = scalar_select %p214, %s211, 7
      %s216 = smul.addr %s213, 8
      %s217 = sadd.s32 %s215, %s216
      %s218 = smul.addr %s217, 4
      %s219 = scalar_lea.vmem %s3, %s218
      %s220 = smul.u32 8, %s20
      %p221 = scmp.lt.s32.totalorder %s21, 8
      %s222 = scalar_select %p221, %s21, 8
      %p223 = scmp.lt.s32.totalorder %s19, 1
      %s224 = scalar_select %p223, %s19, 1
      %p225 = scmp.lt.s32.totalorder %s220, 7
      %s226 = scalar_select %p225, %s220, 7
      %s227 = smul.addr %s224, 8
      %s228 = sadd.s32 %s226, %s227
      %s229 = smul.addr %s222, 16
      %s230 = sadd.s32 %s228, %s229
      %s231 = smul.addr %s230, 4
      %s232 = scalar_lea.vmem %s0, %s231
      %s233 = smul.u32 8, %s20
      %p234 = scmp.lt.s32.totalorder %s21, 8
      %s235 = scalar_select %p234, %s21, 8
      %s236 = smul.addr %s235, 2
      %s237 = scalar_lea.vmem %s1, %s236
      %s238 = smul.u32 8, %s20
      %p239 = scmp.lt.s32.totalorder %s19, 1
      %s240 = scalar_select %p239, %s19, 1
      %p241 = scmp.lt.s32.totalorder %s238, 7
      %s242 = scalar_select %p241, %s238, 7
      %s243 = smul.addr %s240, 8
      %s244 = sadd.s32 %s242, %s243
      %s245 = smul.addr %s244, 4
      %s246 = scalar_lea.vmem %s3, %s245
      %s247 = smul.u32 8, %s20
      %p249 = scmp.eq.s32.totalorder %s21, 0
      // Predicated region
      $region33: #{mobilenet_v3_forward.14} parent=31 // pred_check
        %p250 = pneg %p249
      $region34: #{mobilenet_v3_forward.14} parent=31 // pred_check_branch
        %252 = sbr.rel (%p250) target = $region36
      $region35: #{mobilenet_v3_forward.14} parent=31 // pred_region
        %253 = vst [vmem:[#allocation2] sm:$0xff] 0.0
        %254 = vst [vmem:[#allocation2 + $0x8] sm:$0xff] 0.0
        %255 = vst [vmem:[#allocation2 + $0x10] sm:$0xff] 0.0
        %256 = vst [vmem:[#allocation2 + $0x18] sm:$0xff] 0.0
        %257 = vst [vmem:[#allocation2 + $0x20] sm:$0xff] 0.0
        %258 = vst [vmem:[#allocation2 + $0x28] sm:$0xff] 0.0
        %259 = vst [vmem:[#allocation2 + $0x30] sm:$0xff] 0.0
        %260 = vst [vmem:[#allocation2 + $0x38] sm:$0xff] 0.0
      $region36: #{mobilenet_v3_forward.14} parent=31 // pred_fallthru
        _
      %v261 = vld [vmem:[%s232] sm:$0xf]
      %v262 = vld [vmem:[%s232 + $0x4] sm:$0xf]
      %v263 = vld [vmem:[%s232 + $0x8] sm:$0xf]
      %v264 = vld [vmem:[%s232 + $0xc] sm:$0xf]
      %v265 = vld [vmem:[%s232 + $0x10] sm:$0xf]
      %v266 = vld [vmem:[%s232 + $0x14] sm:$0xf]
      %v267 = vld [vmem:[%s232 + $0x18] sm:$0xf]
      %v268 = vld [vmem:[%s232 + $0x1c] sm:$0xf]
      %v269 = vld [vmem:[#allocation2] sm:$0xff]
      %v270 = vld [vmem:[#allocation2 + $0x8] sm:$0xff]
      %v271 = vld [vmem:[#allocation2 + $0x10] sm:$0xff]
      %v272 = vld [vmem:[#allocation2 + $0x18] sm:$0xff]
      %v273 = vld [vmem:[#allocation2 + $0x20] sm:$0xff]
      %v274 = vld [vmem:[#allocation2 + $0x28] sm:$0xff]
      %v275 = vld [vmem:[#allocation2 + $0x30] sm:$0xff]
      %v276 = vld [vmem:[#allocation2 + $0x38] sm:$0xff]
      %v277 = vld [vmem:[%s237] sm:$0x3]
      %v286 = vunpack.c.l.b16 %v261
      %v287 = vunpack.c.l.b16 %v262
      %v288 = vunpack.c.l.b16 %v263
      %v289 = vunpack.c.l.b16 %v264
      %v290 = vunpack.c.l.b16 %v265
      %v291 = vunpack.c.l.b16 %v266
      %v292 = vunpack.c.l.b16 %v267
      %v293 = vunpack.c.l.b16 %v268
      %v294 = vpack.c.b16 %v287, %v286
      %v295 = vpack.c.b16 %v289, %v288
      %v296 = vpack.c.b16 %v291, %v290
      %v297 = vpack.c.b16 %v293, %v292
      %vm298 = vcmask 23552
      %v300 = vsel %vm298, %v294, 0
      %v303 = vsel %vm298, %v295, 0
      %v306 = vsel %vm298, %v296, 0
      %v309 = vsel %vm298, %v297, 0
      %vm311 = vcmask 1040384
      %vm312 = vcmask 1041408
      %v313 = vsel %vm311, 4294967295, 65535
      %v314 = vsel %vm312, %v313, 0
      %v316 = vand.u32 %v277, %v314
      %318 = vmatpush.bf16.msra.mxu0 0
      %319 = vmatpush.bf16.msra.mxu0 0
      %320 = vmatpush.bf16.msra.mxu0 0
      %321 = vmatpush.bf16.msra.mxu0 0
      %322 = vmatpush.bf16.msra.mxu0 0
      %323 = vmatpush.bf16.msra.mxu0 0
      %324 = vmatpush.bf16.msra.mxu0 0
      %325 = vmatpush.bf16.msra.mxu0 %v316
      %326 = vmatmul.bf16.gmra.mxu0 %v300
      %v327 = vpop.f32.mrf.mxu0
      %v328 = vadd.f32 0.0, %v327
      %v329 = vpop.f32.mrf.mxu0
      %v330 = vadd.f32 0.0, %v329
      %331 = vmatmul.bf16.gmra.mxu0 %v303
      %v332 = vpop.f32.mrf.mxu0
      %v333 = vadd.f32 0.0, %v332
      %v334 = vpop.f32.mrf.mxu0
      %v335 = vadd.f32 0.0, %v334
      %336 = vmatmul.bf16.gmra.mxu0 %v306
      %v337 = vpop.f32.mrf.mxu0
      %v338 = vadd.f32 0.0, %v337
      %v339 = vpop.f32.mrf.mxu0
      %v340 = vadd.f32 0.0, %v339
      %341 = vmatmul.bf16.gmra.mxu0 %v309
      %v342 = vpop.f32.mrf.mxu0
      %v343 = vadd.f32 0.0, %v342
      %v344 = vpop.f32.mrf.mxu0
      %v345 = vadd.f32 0.0, %v344
      %346 = vdwg.mxu0
      %v347 = vadd.f32 %v269, %v328
      %v348 = vadd.f32 %v270, %v330
      %v349 = vadd.f32 %v271, %v333
      %v350 = vadd.f32 %v272, %v335
      %v351 = vadd.f32 %v273, %v338
      %v352 = vadd.f32 %v274, %v340
      %v353 = vadd.f32 %v275, %v343
      %v354 = vadd.f32 %v276, %v345
      %355 = vst [vmem:[#allocation2] sm:$0xff] %v347
      %356 = vst [vmem:[#allocation2 + $0x8] sm:$0xff] %v348
      %357 = vst [vmem:[#allocation2 + $0x10] sm:$0xff] %v349
      %358 = vst [vmem:[#allocation2 + $0x18] sm:$0xff] %v350
      %359 = vst [vmem:[#allocation2 + $0x20] sm:$0xff] %v351
      %360 = vst [vmem:[#allocation2 + $0x28] sm:$0xff] %v352
      %361 = vst [vmem:[#allocation2 + $0x30] sm:$0xff] %v353
      %362 = vst [vmem:[#allocation2 + $0x38] sm:$0xff] %v354
      %p363 = scmp.eq.s32.totalorder %s21, 8
      // Predicated region
      $region37: #{mobilenet_v3_forward.14} parent=31 // pred_check
        %p364 = pneg %p363
      $region38: #{mobilenet_v3_forward.14} parent=31 // pred_check_branch
        %366 = sbr.rel (%p364) target = $region40
      $region39: #{mobilenet_v3_forward.14} parent=31 // pred_region
        %v367 = vld [vmem:[#allocation2] sm:$0xff]
        %v368 = vld [vmem:[#allocation2 + $0x8] sm:$0xff]
        %v369 = vld [vmem:[#allocation2 + $0x10] sm:$0xff]
        %v370 = vld [vmem:[#allocation2 + $0x18] sm:$0xff]
        %v371 = vld [vmem:[#allocation2 + $0x20] sm:$0xff]
        %v372 = vld [vmem:[#allocation2 + $0x28] sm:$0xff]
        %v373 = vld [vmem:[#allocation2 + $0x30] sm:$0xff]
        %v374 = vld [vmem:[#allocation2 + $0x38] sm:$0xff]
        %v375 = vld [vmem:[%s2] sm:$0x1]
        %v377 = vperm.slane %v375, 0
        %v379 = vadd.f32 %v367, %v377
        %v380 = vadd.f32 %v368, %v377
        %v381 = vadd.f32 %v369, %v377
        %v382 = vadd.f32 %v370, %v377
        %v383 = vadd.f32 %v371, %v377
        %v384 = vadd.f32 %v372, %v377
        %v385 = vadd.f32 %v373, %v377
        %v386 = vadd.f32 %v374, %v377
        %v387 = vadd.f32 %v379, 3.0
        %v388 = vadd.f32 %v380, 3.0
        %v389 = vadd.f32 %v381, 3.0
        %v390 = vadd.f32 %v382, 3.0
        %v391 = vadd.f32 %v383, 3.0
        %v392 = vadd.f32 %v384, 3.0
        %v393 = vadd.f32 %v385, 3.0
        %v394 = vadd.f32 %v386, 3.0
        %v395 = vmax.f32 %v387, 0.0
        %v396 = vmax.f32 %v388, 0.0
        %v397 = vmax.f32 %v389, 0.0
        %v398 = vmax.f32 %v390, 0.0
        %v399 = vmax.f32 %v391, 0.0
        %v400 = vmax.f32 %v392, 0.0
        %v401 = vmax.f32 %v393, 0.0
        %v402 = vmax.f32 %v394, 0.0
        %v403 = vmin.f32 %v395, 6.0
        %v404 = vmin.f32 %v396, 6.0
        %v405 = vmin.f32 %v397, 6.0
        %v406 = vmin.f32 %v398, 6.0
        %v407 = vmin.f32 %v399, 6.0
        %v408 = vmin.f32 %v400, 6.0
        %v409 = vmin.f32 %v401, 6.0
        %v410 = vmin.f32 %v402, 6.0
        %v411 = vmul.f32 %v379, %v403
        %v412 = vmul.f32 %v380, %v404
        %v413 = vmul.f32 %v381, %v405
        %v414 = vmul.f32 %v382, %v406
        %v415 = vmul.f32 %v383, %v407
        %v416 = vmul.f32 %v384, %v408
        %v417 = vmul.f32 %v385, %v409
        %v418 = vmul.f32 %v386, %v410
        %v419 = vmul.f32 %v411, 0.16666667
        %v420 = vmul.f32 %v412, 0.16666667
        %v421 = vmul.f32 %v413, 0.16666667
        %v422 = vmul.f32 %v414, 0.16666667
        %v423 = vmul.f32 %v415, 0.16666667
        %v424 = vmul.f32 %v416, 0.16666667
        %v425 = vmul.f32 %v417, 0.16666667
        %v426 = vmul.f32 %v418, 0.16666667
        %v427 = vpack.c.bf16 %v419, %v419
        %v428 = vpack.c.bf16 %v420, %v420
        %v429 = vpack.c.bf16 %v421, %v421
        %v430 = vpack.c.bf16 %v422, %v422
        %v431 = vpack.c.bf16 %v423, %v423
        %v432 = vpack.c.bf16 %v424, %v424
        %v433 = vpack.c.bf16 %v425, %v425
        %v434 = vpack.c.bf16 %v426, %v426
        %435 = vst [vmem:[%s246] sm:$0xf] %v427
        %436 = vst [vmem:[%s246 + $0x4] sm:$0xf] %v428
        %437 = vst [vmem:[%s246 + $0x8] sm:$0xf] %v429
        %438 = vst [vmem:[%s246 + $0xc] sm:$0xf] %v430
        %439 = vst [vmem:[%s246 + $0x10] sm:$0xf] %v431
        %440 = vst [vmem:[%s246 + $0x14] sm:$0xf] %v432
        %441 = vst [vmem:[%s246 + $0x18] sm:$0xf] %v433
        %442 = vst [vmem:[%s246 + $0x1c] sm:$0xf] %v434
      $region40: #{mobilenet_v3_forward.14} parent=31 // pred_fallthru
        _
      %s443 = smul.u32 8, %s20
      %p444 = scmp.lt.s32.totalorder %s19, 1
      %s445 = scalar_select %p444, %s19, 1
      %p446 = scmp.lt.s32.totalorder %s443, 7
      %s447 = scalar_select %p446, %s443, 7
      %s448 = smul.addr %s445, 8
      %s449 = sadd.s32 %s447, %s448
      %s450 = smul.addr %s449, 4
      %s451 = scalar_lea.vmem %s3, %s450
      // Predicated region
      $region41: #{mobilenet_v3_forward.14} parent=31 // pred_check
        %p452 = pneg %p130
      $region42: #{mobilenet_v3_forward.14} parent=31 // pred_check_branch
        %454 = sbr.rel (%p452) target = $region44
      $region43: #{mobilenet_v3_forward.14} parent=31 // pred_region
        %s455 = smul.u32 8, %s20
      $region44: #{mobilenet_v3_forward.14} parent=31 // pred_fallthru
        _
    $region32: #{mobilenet_v3_forward.14} parent=5 // pred_fallthru
      _
    %p456 = scmp.le.s32.totalorder 2, %s9
    // Predicated region
    $region45: #{mobilenet_v3_forward.14} parent=5 // pred_check
      %p457 = pneg %p456
    $region46: #{mobilenet_v3_forward.14} parent=5 // pred_check_branch
      %459 = sbr.rel (%p457) target = $region48
    $region47: #{mobilenet_v3_forward.14} parent=5 // pred_region
      %s460 = ssub.s32 %s9, 2
      // Predicated region
      $region49: #{mobilenet_v3_forward.14} parent=47 // pred_check
        %p461 = pneg %p136
      $region50: #{mobilenet_v3_forward.14} parent=47 // pred_check_branch
        %463 = sbr.rel (%p461) target = $region52
      $region51: #{mobilenet_v3_forward.14} parent=47 // pred_region
        %s464 = smul.u32 8, %s23
        %p465 = scmp.lt.s32.totalorder %s22, 1
        %s466 = scalar_select %p465, %s22, 1
        %p467 = scmp.lt.s32.totalorder %s464, 7
        %s468 = scalar_select %p467, %s464, 7
        %s469 = smul.addr %s466, 8
        %s470 = sadd.s32 %s468, %s469
        %s471 = smul.addr %s470, 4
        %s472 = scalar_lea.vmem %s3, %s471
      $region52: #{mobilenet_v3_forward.14} parent=47 // pred_fallthru
        _
    $region48: #{mobilenet_v3_forward.14} parent=5 // pred_fallthru
      _
  $region6: #{mobilenet_v3_forward.14} parent=0 // loop_footer
    %s13 = sadd.s32 1, %s9
  $region7: #{mobilenet_v3_forward.14} parent=0 // loop_footer_branch
    %8 = sbr.rel target = $region3
  $region8: #{mobilenet_v3_forward.14} parent=0 // loop_exit
    _

// kernel: mobilenet_v3_forward.15
$region0: #{mobilenet_v3_forward.15}
  #allocation0 [shape = 'u32[]', space=smem, size = 0x4, offset = 0x4, fixed_abs, tag = 'smem constant byte address 0x4 - core index']
  #allocation1 [shape = 'u32[72,128]{1,0:T(1,128)}', space=vmem, size = 0x9000, scoped, tag = 'internal scratch']
  #allocation2 [shape = 'f32[16,128]{1,0:T(8,128)}', space=vmem, size = 0x2000, scoped, tag = 'scratch operand']
  %s0 = inlined_call_operand.vmem [shape: bf16[9,2,16,128], index: 0, kind: input, shape index: {}]
  %s1 = inlined_call_operand.vmem [shape: f32[9,1,128], index: 1, kind: input, shape index: {}]
  %s2 = inlined_call_operand.vmem [shape: f32[1,128], index: 2, kind: input, shape index: {}]
  %s3 = inlined_call_operand.vmem [shape: bf16[2,16,128], index: 3, kind: output, shape index: {0}]
  %s4 = inlined_call_operand.vmem [shape: f32[2,1,128], index: 4, kind: output, shape index: {1}]
  %5 = xla_tuple %s3, %s4
  %s6 = sld [smem:[#allocation0]]
  $region65: #{mobilenet_v3_forward.15} parent=0
    _
  %s8 = ssub.s32 1, %s6
  %s9 = scalar_select 0, %s8, %s6
  loop: start=0, step=1, limit=20
  $region2: #{mobilenet_v3_forward.15} parent=0 // loop_pre_header
    _
  $region3: #{mobilenet_v3_forward.15} parent=0 // loop_header
    %s11 = sphi 0, %s15
    %p12 = scmp.ge.s32.totalorder %s11, 20
    %s18 = sphi 0, %s37
    %s19 = sphi 0, %s33
    %s20 = sphi 0, %s29
    %s21 = sphi 0, %s18
    %s22 = sphi 0, %s19
    %s23 = sphi 0, %s20
    %s24 = sphi 0, %s21
    %s25 = sphi 0, %s22
    %s26 = sphi 0, %s23
    %s44 = sphi 0, %s46
    %s47 = sphi 0, %s44
    %s48 = sphi 0, %s47
    %s64 = sphi 0, %s48
    %s70 = sphi 0, %s72
    %s73 = sphi 0, %s70
    %s74 = sphi 0, %s73
    %s90 = sphi 0, %s74
    %s94 = sphi 0, %s94
    %s96 = sphi 0, %s94
    %s97 = sphi 0, %s96
    %s111 = sphi 0, %s97
    %s119 = sphi 0, %s121
    %s122 = sphi 0, %s119
    %s123 = sphi 0, %s122
    %s139 = sphi 0, %s123
    %s145 = sphi 0, %s147
    %s148 = sphi 0, %s145
    %s149 = sphi 0, %s148
    %s165 = sphi 0, %s149
  $region4: #{mobilenet_v3_forward.15} parent=0 // loop_header_branch
    %14 = sbr.rel (%p12) target = $region8
  $region5: #{mobilenet_v3_forward.15} parent=0 // loop_body
    %s16 = ssub.s32 %s11, 1
    %s17 = ssub.s32 %s11, 2
    %s27 = sadd.s32 1, %s20
    %p28 = scmp.ge.s32.totalorder %s27, 9
    %s29 = scalar_select %p28, 0, %s27
    %s30 = sadd.s32 1, %s19
    %s31 = scalar_select %p28, %s30, %s19
    %p32 = scmp.ge.s32.totalorder %s31, 1
    %s33 = scalar_select %p32, 0, %s31
    %s34 = sadd.s32 1, %s18
    %s35 = scalar_select %p32, %s34, %s18
    %p36 = scmp.ge.s32.totalorder %s35, 2
    %s37 = scalar_select %p36, 0, %s35
    %s38 = ssub.s32 %s20, %s29
    %s39 = ssub.s32 %s18, %s37
    %s40 = sor.u32 %s38, %s39
    %s41 = ssub.s32 %s19, %s33
    %s42 = sor.u32 %s40, %s41
    %p43 = scmp.eq.s32.totalorder %s42, 0
    %s45 = sadd.s32 %s44, 1
    %s46 = scalar_select %p43, %s44, %s45
    %p49 = pneg %p43
    %p50 = scmp.eq.s32.totalorder %s11, 17
    %p51 = por %p49, %p50
    %p52 = scmp.ne.s32.totalorder %s44, %s47
    %p53 = scmp.eq.s32.totalorder %s11, 0
    %p54 = por %p52, %p53
    %p55 = scmp.ne.s32.totalorder %s44, %s47
    %p56 = scmp.eq.s32.totalorder %s16, 17
    %p57 = por %p55, %p56
    %p58 = scmp.ne.s32.totalorder %s47, %s48
    %p59 = scmp.eq.s32.totalorder %s16, 0
    %p60 = por %p58, %p59
    %p61 = scmp.ne.s32.totalorder %s47, %s48
    %p62 = scmp.eq.s32.totalorder %s17, 17
    %p63 = por %p61, %p62
    %p65 = scmp.ne.s32.totalorder %s48, %s64
    %p66 = scmp.eq.s32.totalorder %s17, 0
    %p67 = por %p65, %p66
    %s68 = ssub.s32 %s20, %s29
    %p69 = scmp.eq.s32.totalorder %s68, 0
    %s71 = sadd.s32 %s70, 1
    %s72 = scalar_select %p69, %s70, %s71
    %p75 = pneg %p69
    %p76 = scmp.eq.s32.totalorder %s11, 17
    %p77 = por %p75, %p76
    %p78 = scmp.ne.s32.totalorder %s70, %s73
    %p79 = scmp.eq.s32.totalorder %s11, 0
    %p80 = por %p78, %p79
    %p81 = scmp.ne.s32.totalorder %s70, %s73
    %p82 = scmp.eq.s32.totalorder %s16, 17
    %p83 = por %p81, %p82
    %p84 = scmp.ne.s32.totalorder %s73, %s74
    %p85 = scmp.eq.s32.totalorder %s16, 0
    %p86 = por %p84, %p85
    %p87 = scmp.ne.s32.totalorder %s73, %s74
    %p88 = scmp.eq.s32.totalorder %s17, 17
    %p89 = por %p87, %p88
    %p91 = scmp.ne.s32.totalorder %s74, %s90
    %p92 = scmp.eq.s32.totalorder %s17, 0
    %p93 = por %p91, %p92
    %s95 = sadd.s32 %s94, 1
    %p98 = scmp.eq.s32.totalorder %s11, 17
    %p99 = scmp.ne.s32.totalorder %s94, %s96
    %p100 = scmp.eq.s32.totalorder %s11, 0
    %p101 = por %p99, %p100
    %p102 = scmp.ne.s32.totalorder %s94, %s96
    %p103 = scmp.eq.s32.totalorder %s16, 17
    %p104 = por %p102, %p103
    %p105 = scmp.ne.s32.totalorder %s96, %s97
    %p106 = scmp.eq.s32.totalorder %s16, 0
    %p107 = por %p105, %p106
    %p108 = scmp.ne.s32.totalorder %s96, %s97
    %p109 = scmp.eq.s32.totalorder %s17, 17
    %p110 = por %p108, %p109
    %p112 = scmp.ne.s32.totalorder %s97, %s111
    %p113 = scmp.eq.s32.totalorder %s17, 0
    %p114 = por %p112, %p113
    %s115 = ssub.s32 %s18, %s37
    %s116 = ssub.s32 %s19, %s33
    %s117 = sor.u32 %s115, %s116
    %p118 = scmp.eq.s32.totalorder %s117, 0
    %s120 = sadd.s32 %s119, 1
    %s121 = scalar_select %p118, %s119, %s120
    %p124 = pneg %p118
    %p125 = scmp.eq.s32.totalorder %s11, 17
    %p126 = por %p124, %p125
    %p127 = scmp.ne.s32.totalorder %s119, %s122
    %p128 = scmp.eq.s32.totalorder %s11, 0
    %p129 = por %p127, %p128
    %p130 = scmp.ne.s32.totalorder %s119, %s122
    %p131 = scmp.eq.s32.totalorder %s16, 17
    %p132 = por %p130, %p131
    %p133 = scmp.ne.s32.totalorder %s122, %s123
    %p134 = scmp.eq.s32.totalorder %s16, 0
    %p135 = por %p133, %p134
    %p136 = scmp.ne.s32.totalorder %s122, %s123
    %p137 = scmp.eq.s32.totalorder %s17, 17
    %p138 = por %p136, %p137
    %p140 = scmp.ne.s32.totalorder %s123, %s139
    %p141 = scmp.eq.s32.totalorder %s17, 0
    %p142 = por %p140, %p141
    %s143 = ssub.s32 %s18, %s37
    %p144 = scmp.eq.s32.totalorder %s143, 0
    %s146 = sadd.s32 %s145, 1
    %s147 = scalar_select %p144, %s145, %s146
    %p150 = pneg %p144
    %p151 = scmp.eq.s32.totalorder %s11, 17
    %p152 = por %p150, %p151
    %p153 = scmp.ne.s32.totalorder %s145, %s148
    %p154 = scmp.eq.s32.totalorder %s11, 0
    %p155 = por %p153, %p154
    %p156 = scmp.ne.s32.totalorder %s145, %s148
    %p157 = scmp.eq.s32.totalorder %s16, 17
    %p158 = por %p156, %p157
    %p159 = scmp.ne.s32.totalorder %s148, %s149
    %p160 = scmp.eq.s32.totalorder %s16, 0
    %p161 = por %p159, %p160
    %p162 = scmp.ne.s32.totalorder %s148, %s149
    %p163 = scmp.eq.s32.totalorder %s17, 17
    %p164 = por %p162, %p163
    %p166 = scmp.ne.s32.totalorder %s149, %s165
    %p167 = scmp.eq.s32.totalorder %s17, 0
    %p168 = por %p166, %p167
    %p169 = scmp.le.s32.totalorder 1, %s11
    %p170 = scmp.lt.s32.totalorder %s11, 19
    %p171 = pnand %p169, %p170
    %p172 = pneg %p171
    // Predicated region
    $region9: #{mobilenet_v3_forward.15} parent=5 // pred_check
      _
    $region10: #{mobilenet_v3_forward.15} parent=5 // pred_check_branch
      %174 = sbr.rel (%p171) target = $region12
    $region11: #{mobilenet_v3_forward.15} parent=5 // pred_region
      %s175 = ssub.s32 %s11, 1
      // Predicated region
      $region13: #{mobilenet_v3_forward.15} parent=11 // pred_check
        %p176 = pneg %p107
      $region14: #{mobilenet_v3_forward.15} parent=11 // pred_check_branch
        %178 = sbr.rel (%p176) target = $region16
      $region15: #{mobilenet_v3_forward.15} parent=11 // pred_region
        _
      $region16: #{mobilenet_v3_forward.15} parent=11 // pred_fallthru
        _
    $region12: #{mobilenet_v3_forward.15} parent=5 // pred_fallthru
      _
    %p179 = scmp.lt.s32.totalorder %s11, 18
    // Predicated region
    $region17: #{mobilenet_v3_forward.15} parent=5 // pred_check
      %p180 = pneg %p179
    $region18: #{mobilenet_v3_forward.15} parent=5 // pred_check_branch
      %182 = sbr.rel (%p180) target = $region20
    $region19: #{mobilenet_v3_forward.15} parent=5 // pred_region
      // Predicated region
      $region21: #{mobilenet_v3_forward.15} parent=19 // pred_check
        %p183 = pneg %p54
      $region22: #{mobilenet_v3_forward.15} parent=19 // pred_check_branch
        %185 = sbr.rel (%p183) target = $region24
      $region23: #{mobilenet_v3_forward.15} parent=19 // pred_region
        %s186 = smul.u32 2, %s19
        %p187 = scmp.lt.s32.totalorder %s20, 8
        %s188 = scalar_select %p187, %s20, 8
        %p189 = scmp.lt.s32.totalorder %s18, 1
        %s190 = scalar_select %p189, %s18, 1
        %p191 = scmp.lt.s32.totalorder %s186, 1
        %s192 = scalar_select %p191, %s186, 1
        %s193 = smul.addr %s190, 2
        %s194 = sadd.s32 %s192, %s193
        %s195 = smul.addr %s188, 4
        %s196 = sadd.s32 %s194, %s195
        %s197 = smul.addr %s196, 4
        %s198 = scalar_lea.vmem %s0, %s197
        %s199 = smul.u32 2, %s19
      $region24: #{mobilenet_v3_forward.15} parent=19 // pred_fallthru
        _
      // Predicated region
      $region25: #{mobilenet_v3_forward.15} parent=19 // pred_check
        %p200 = pneg %p80
      $region26: #{mobilenet_v3_forward.15} parent=19 // pred_check_branch
        %202 = sbr.rel (%p200) target = $region28
      $region27: #{mobilenet_v3_forward.15} parent=19 // pred_region
        %p203 = scmp.lt.s32.totalorder %s20, 8
        %s204 = scalar_select %p203, %s20, 8
        %s205 = scalar_lea.vmem %s1, %s204
      $region28: #{mobilenet_v3_forward.15} parent=19 // pred_fallthru
        _
    $region20: #{mobilenet_v3_forward.15} parent=5 // pred_fallthru
      _
    %p206 = scmp.le.s32.totalorder 1, %s11
    %p207 = scmp.lt.s32.totalorder %s11, 19
    %p208 = pnand %p206, %p207
    %p209 = pneg %p208
    // Predicated region
    $region29: #{mobilenet_v3_forward.15} parent=5 // pred_check
      _
    $region30: #{mobilenet_v3_forward.15} parent=5 // pred_check_branch
      %211 = sbr.rel (%p208) target = $region32
    $region31: #{mobilenet_v3_forward.15} parent=5 // pred_region
      %s212 = ssub.s32 %s11, 1
      %s213 = smul.u32 2, %s22
      %p214 = scmp.lt.s32.totalorder %s23, 8
      %s215 = scalar_select %p214, %s23, 8
      %p216 = scmp.lt.s32.totalorder %s21, 1
      %s217 = scalar_select %p216, %s21, 1
      %p218 = scmp.lt.s32.totalorder %s213, 1
      %s219 = scalar_select %p218, %s213, 1
      %s220 = smul.addr %s217, 2
      %s221 = sadd.s32 %s219, %s220
      %s222 = smul.addr %s215, 4
      %s223 = sadd.s32 %s221, %s222
      %s224 = smul.addr %s223, 4
      %s225 = scalar_lea.vmem %s0, %s224
      %p226 = pneg %p60
      %p227 = pneg %p57
      %p228 = scmp.lt.s32.totalorder %s23, 8
      %s229 = scalar_select %p228, %s23, 8
      %s230 = scalar_lea.vmem %s1, %s229
      %p231 = pneg %p86
      %p232 = pneg %p83
      %p233 = pneg %p107
      %p234 = pneg %p104
      %p235 = pneg %p135
      %p236 = pneg %p132
      %s237 = smul.u32 2, %s22
      %p238 = scmp.lt.s32.totalorder %s21, 1
      %s239 = scalar_select %p238, %s21, 1
      %p240 = scmp.lt.s32.totalorder %s237, 1
      %s241 = scalar_select %p240, %s237, 1
      %s242 = smul.addr %s239, 2
      %s243 = sadd.s32 %s241, %s242
      %s244 = smul.addr %s243, 4
      %s245 = scalar_lea.vmem %s3, %s244
      %p246 = pneg %p161
      %p247 = pneg %p158
      %p248 = scmp.lt.s32.totalorder %s21, 1
      %s249 = scalar_select %p248, %s21, 1
      %s250 = scalar_lea.vmem %s4, %s249
      %s251 = smul.u32 2, %s22
      %p252 = scmp.lt.s32.totalorder %s23, 8
      %s253 = scalar_select %p252, %s23, 8
      %p254 = scmp.lt.s32.totalorder %s21, 1
      %s255 = scalar_select %p254, %s21, 1
      %p256 = scmp.lt.s32.totalorder %s251, 1
      %s257 = scalar_select %p256, %s251, 1
      %s258 = smul.addr %s255, 2
      %s259 = sadd.s32 %s257, %s258
      %s260 = smul.addr %s253, 4
      %s261 = sadd.s32 %s259, %s260
      %s262 = smul.addr %s261, 4
      %s263 = scalar_lea.vmem %s0, %s262
      %s264 = smul.u32 2, %s22
      %p265 = scmp.lt.s32.totalorder %s23, 8
      %s266 = scalar_select %p265, %s23, 8
      %s267 = scalar_lea.vmem %s1, %s266
      %s268 = smul.u32 2, %s22
      %p269 = scmp.lt.s32.totalorder %s21, 1
      %s270 = scalar_select %p269, %s21, 1
      %p271 = scmp.lt.s32.totalorder %s268, 1
      %s272 = scalar_select %p271, %s268, 1
      %s273 = smul.addr %s270, 2
      %s274 = sadd.s32 %s272, %s273
      %s275 = smul.addr %s274, 4
      %s276 = scalar_lea.vmem %s3, %s275
      %s277 = smul.u32 2, %s22
      %p278 = scmp.lt.s32.totalorder %s21, 1
      %s279 = scalar_select %p278, %s21, 1
      %s280 = scalar_lea.vmem %s4, %s279
      %p281 = scmp.eq.s32.totalorder %s23, 0
      // Predicated region
      $region33: #{mobilenet_v3_forward.15} parent=31 // pred_check
        %p282 = pneg %p281
      $region34: #{mobilenet_v3_forward.15} parent=31 // pred_check_branch
        %284 = sbr.rel (%p282) target = $region36
      $region35: #{mobilenet_v3_forward.15} parent=31 // pred_region
        %285 = vst [vmem:[#allocation2] sm:$0xff] 0.0
        %286 = vst [vmem:[#allocation2 + $0x8] sm:$0xff] 0.0
      $region36: #{mobilenet_v3_forward.15} parent=31 // pred_fallthru
        _
      %p287 = scmp.eq.s32.totalorder %s22, 0
      %p288 = pnand %p281, %p287
      %p289 = pneg %p288
      // Predicated region
      $region37: #{mobilenet_v3_forward.15} parent=31 // pred_check
        _
      $region38: #{mobilenet_v3_forward.15} parent=31 // pred_check_branch
        %291 = sbr.rel (%p288) target = $region40
      $region39: #{mobilenet_v3_forward.15} parent=31 // pred_region
        %292 = vst [vmem:[%s280] sm:$0x1] 0.0
      $region40: #{mobilenet_v3_forward.15} parent=31 // pred_fallthru
        _
      %v293 = vld [vmem:[#allocation2] sm:$0xff]
      %v294 = vld [vmem:[#allocation2 + $0x8] sm:$0xff]
      %v295 = vld [vmem:[%s263] sm:$0xf]
      %v296 = vld [vmem:[%s263 + $0x4] sm:$0xf]
      %v297 = vunpack.c.l.bf16 %v295
      %v298 = vunpack.c.l.bf16 %v296
      %v299 = vld [vmem:[%s267] sm:$0x1]
      %v301 = vperm.slane %v299, 0
      %v303 = vmul.f32 %v297, %v301
      %v304 = vmul.f32 %v298, %v301
      %v305 = vadd.f32 %v293, %v303
      %v306 = vadd.f32 %v294, %v304
      %307 = vst [vmem:[#allocation2] sm:$0xff] %v305
      %308 = vst [vmem:[#allocation2 + $0x8] sm:$0xff] %v306
      %p309 = scmp.eq.s32.totalorder %s23, 8
      // Predicated region
      $region41: #{mobilenet_v3_forward.15} parent=31 // pred_check
        %p310 = pneg %p309
      $region42: #{mobilenet_v3_forward.15} parent=31 // pred_check_branch
        %312 = sbr.rel (%p310) target = $region44
      $region43: #{mobilenet_v3_forward.15} parent=31 // pred_region
        %v313 = vld [vmem:[#allocation2] sm:$0xff]
        %v314 = vld [vmem:[#allocation2 + $0x8] sm:$0xff]
        %v315 = vld [vmem:[%s2] sm:$0x1]
        %v317 = vperm.slane %v315, 0
        %v319 = vadd.f32 %v313, %v317
        %v320 = vadd.f32 %v314, %v317
        %v321 = vmax.f32 %v319, 0.0
        %v322 = vmax.f32 %v320, 0.0
        %v323 = vpack.c.bf16 %v321, %v321
        %v324 = vpack.c.bf16 %v322, %v322
        %325 = vst [vmem:[%s276] sm:$0xf] %v323
        %326 = vst [vmem:[%s276 + $0x4] sm:$0xf] %v324
        %v327 = vld [vmem:[%s280] sm:$0x1]
        %v328 = vadd.f32 %v321, %v322
        %v329 = vrot.slane %v328, 4
        %v330 = vadd.f32 %v328, %v329
        %v331 = vrot.slane %v330, 2
        %v332 = vadd.f32 %v330, %v331
        %v333 = vrot.slane %v332, 1
        %v334 = vadd.f32 %v332, %v333
        %v335 = vadd.f32 %v327, %v334
        %336 = vst [vmem:[%s280] sm:$0x1] %v335
      $region44: #{mobilenet_v3_forward.15} parent=31 // pred_fallthru
        _
      %s337 = smul.u32 2, %s22
      %p338 = scmp.lt.s32.totalorder %s21, 1
      %s339 = scalar_select %p338, %s21, 1
      %p340 = scmp.lt.s32.totalorder %s337, 1
      %s341 = scalar_select %p340, %s337, 1
      %s342 = smul.addr %s339, 2
      %s343 = sadd.s32 %s341, %s342
      %s344 = smul.addr %s343, 4
      %s345 = scalar_lea.vmem %s3, %s344
      %p346 = scmp.lt.s32.totalorder %s21, 1
      %s347 = scalar_select %p346, %s21, 1
      %s348 = scalar_lea.vmem %s4, %s347
      // Predicated region
      $region45: #{mobilenet_v3_forward.15} parent=31 // pred_check
        %p349 = pneg %p132
      $region46: #{mobilenet_v3_forward.15} parent=31 // pred_check_branch
        %351 = sbr.rel (%p349) target = $region48
      $region47: #{mobilenet_v3_forward.15} parent=31 // pred_region
        %s352 = smul.u32 2, %s22
      $region48: #{mobilenet_v3_forward.15} parent=31 // pred_fallthru
        _
      // Predicated region
      $region49: #{mobilenet_v3_forward.15} parent=31 // pred_check
        %p353 = pneg %p158
      $region50: #{mobilenet_v3_forward.15} parent=31 // pred_check_branch
        %355 = sbr.rel (%p353) target = $region52
      $region51: #{mobilenet_v3_forward.15} parent=31 // pred_region
        _
      $region52: #{mobilenet_v3_forward.15} parent=31 // pred_fallthru
        _
    $region32: #{mobilenet_v3_forward.15} parent=5 // pred_fallthru
      _
    %p356 = scmp.le.s32.totalorder 2, %s11
    // Predicated region
    $region53: #{mobilenet_v3_forward.15} parent=5 // pred_check
      %p357 = pneg %p356
    $region54: #{mobilenet_v3_forward.15} parent=5 // pred_check_branch
      %359 = sbr.rel (%p357) target = $region56
    $region55: #{mobilenet_v3_forward.15} parent=5 // pred_region
      %s360 = ssub.s32 %s11, 2
      // Predicated region
      $region57: #{mobilenet_v3_forward.15} parent=55 // pred_check
        %p361 = pneg %p138
      $region58: #{mobilenet_v3_forward.15} parent=55 // pred_check_branch
        %363 = sbr.rel (%p361) target = $region60
      $region59: #{mobilenet_v3_forward.15} parent=55 // pred_region
        %s364 = smul.u32 2, %s25
        %p365 = scmp.lt.s32.totalorder %s24, 1
        %s366 = scalar_select %p365, %s24, 1
        %p367 = scmp.lt.s32.totalorder %s364, 1
        %s368 = scalar_select %p367, %s364, 1
        %s369 = smul.addr %s366, 2
        %s370 = sadd.s32 %s368, %s369
        %s371 = smul.addr %s370, 4
        %s372 = scalar_lea.vmem %s3, %s371
      $region60: #{mobilenet_v3_forward.15} parent=55 // pred_fallthru
        _
      // Predicated region
      $region61: #{mobilenet_v3_forward.15} parent=55 // pred_check
        %p373 = pneg %p164
      $region62: #{mobilenet_v3_forward.15} parent=55 // pred_check_branch
        %375 = sbr.rel (%p373) target = $region64
      $region63: #{mobilenet_v3_forward.15} parent=55 // pred_region
        %p376 = scmp.lt.s32.totalorder %s24, 1
        %s377 = scalar_select %p376, %s24, 1
        %s378 = scalar_lea.vmem %s4, %s377
      $region64: #{mobilenet_v3_forward.15} parent=55 // pred_fallthru
        _
    $region56: #{mobilenet_v3_forward.15} parent=5 // pred_fallthru
      _
  $region6: #{mobilenet_v3_forward.15} parent=0 // loop_footer
    %s15 = sadd.s32 1, %s11
  $region7: #{mobilenet_v3_forward.15} parent=0 // loop_footer_branch
    %10 = sbr.rel target = $region3
  $region8: #{mobilenet_v3_forward.15} parent=0 // loop_exit
    _

// kernel: mobilenet_v3_forward.16
$region0: #{mobilenet_v3_forward.16}
  #allocation0 [shape = 'u32[]', space=smem, size = 0x4, offset = 0x4, fixed_abs, tag = 'smem constant byte address 0x4 - core index']
  #allocation1 [shape = 'u32[72,128]{1,0:T(1,128)}', space=vmem, size = 0x9000, scoped, tag = 'internal scratch']
  %s0 = inlined_call_operand.vmem [shape: f32[2,128], index: 0, kind: input, shape index: {}]
  %s1 = inlined_call_operand.vmem [shape: bf16[128,128], index: 1, kind: input, shape index: {}]
  %s2 = inlined_call_operand.vmem [shape: f32[1,128], index: 2, kind: input, shape index: {}]
  %s3 = inlined_call_operand.vmem [shape: bf16[128,128], index: 3, kind: input, shape index: {}]
  %s4 = inlined_call_operand.vmem [shape: f32[1,128], index: 4, kind: input, shape index: {}]
  %s5 = inlined_call_operand.vmem [shape: f32[2,1,128], index: 5, kind: output, shape index: {}]
  %s6 = sld [smem:[#allocation0]]
  $region30: #{mobilenet_v3_forward.16} parent=0
    _
  %s8 = ssub.s32 1, %s6
  %s9 = scalar_select 0, %s8, %s6
  // Predicated region
  $region2: #{mobilenet_v3_forward.16} parent=0 // pred_check
    _
  $region3: #{mobilenet_v3_forward.16} parent=0 // pred_check_branch
    %11 = sbr.rel (0) target = $region5
  $region4: #{mobilenet_v3_forward.16} parent=0 // pred_region
    _
  $region5: #{mobilenet_v3_forward.16} parent=0 // pred_fallthru
    _
  // Predicated region
  $region6: #{mobilenet_v3_forward.16} parent=0 // pred_check
    _
  $region7: #{mobilenet_v3_forward.16} parent=0 // pred_check_branch
    %13 = sbr.rel (0) target = $region9
  $region8: #{mobilenet_v3_forward.16} parent=0 // pred_region
    _
  $region9: #{mobilenet_v3_forward.16} parent=0 // pred_fallthru
    _
  // Predicated region
  $region10: #{mobilenet_v3_forward.16} parent=0 // pred_check
    _
  $region11: #{mobilenet_v3_forward.16} parent=0 // pred_check_branch
    %15 = sbr.rel (0) target = $region13
  $region12: #{mobilenet_v3_forward.16} parent=0 // pred_region
    _
  $region13: #{mobilenet_v3_forward.16} parent=0 // pred_fallthru
    _
  // Predicated region
  $region14: #{mobilenet_v3_forward.16} parent=0 // pred_check
    _
  $region15: #{mobilenet_v3_forward.16} parent=0 // pred_check_branch
    %17 = sbr.rel (0) target = $region17
  $region16: #{mobilenet_v3_forward.16} parent=0 // pred_region
    _
  $region17: #{mobilenet_v3_forward.16} parent=0 // pred_fallthru
    _
  // Predicated region
  $region18: #{mobilenet_v3_forward.16} parent=0 // pred_check
    _
  $region19: #{mobilenet_v3_forward.16} parent=0 // pred_check_branch
    %19 = sbr.rel (0) target = $region21
  $region20: #{mobilenet_v3_forward.16} parent=0 // pred_region
    _
  $region21: #{mobilenet_v3_forward.16} parent=0 // pred_fallthru
    _
  %v20 = vld [vmem:[%s0] sm:$0x3]
  %v21 = vmul.f32 %v20, 0.0625
  %v22 = vpack.c.bf16 %v21, %v21
  %v23 = vld [vmem:[%s1] sm:$0xf]
  %v24 = vld [vmem:[%s1 + $0x4] sm:$0xf]
  %v25 = vld [vmem:[%s1 + $0x8] sm:$0xf]
  %v26 = vld [vmem:[%s1 + $0xc] sm:$0xf]
  %v27 = vld [vmem:[%s1 + $0x10] sm:$0xf]
  %v28 = vld [vmem:[%s1 + $0x14] sm:$0xf]
  %v29 = vld [vmem:[%s1 + $0x18] sm:$0xf]
  %v30 = vld [vmem:[%s1 + $0x1c] sm:$0xf]
  %v31 = vld [vmem:[%s1 + $0x20] sm:$0xf]
  %v32 = vld [vmem:[%s1 + $0x24] sm:$0xf]
  %v33 = vld [vmem:[%s1 + $0x28] sm:$0xf]
  %v34 = vld [vmem:[%s1 + $0x2c] sm:$0xf]
  %v35 = vld [vmem:[%s1 + $0x30] sm:$0xf]
  %v36 = vld [vmem:[%s1 + $0x34] sm:$0xf]
  %v37 = vld [vmem:[%s1 + $0x38] sm:$0xf]
  %v38 = vld [vmem:[%s1 + $0x3c] sm:$0xf]
  %v39 = vld [vmem:[%s2] sm:$0x1]
  %v41 = vperm.slane %v39, 0
  %v59 = vunpack.c.l.b16 %v23
  %v60 = vunpack.c.l.b16 %v24
  %v61 = vunpack.c.l.b16 %v25
  %v62 = vunpack.c.l.b16 %v26
  %v63 = vunpack.c.l.b16 %v27
  %v64 = vunpack.c.l.b16 %v28
  %v65 = vunpack.c.l.b16 %v29
  %v66 = vunpack.c.l.b16 %v30
  %v67 = vunpack.c.l.b16 %v31
  %v68 = vunpack.c.l.b16 %v32
  %v69 = vunpack.c.l.b16 %v33
  %v70 = vunpack.c.l.b16 %v34
  %v71 = vunpack.c.l.b16 %v35
  %v72 = vunpack.c.l.b16 %v36
  %v73 = vunpack.c.l.b16 %v37
  %v74 = vunpack.c.l.b16 %v38
  %v75 = vpack.c.b16 %v60, %v59
  %v76 = vpack.c.b16 %v62, %v61
  %v77 = vpack.c.b16 %v64, %v63
  %v78 = vpack.c.b16 %v66, %v65
  %v79 = vpack.c.b16 %v68, %v67
  %v80 = vpack.c.b16 %v70, %v69
  %v81 = vpack.c.b16 %v72, %v71
  %v82 = vpack.c.b16 %v74, %v73
  %91 = vmatpush.bf16.msra.mxu0 %v82
  %92 = vmatpush.bf16.msra.mxu0 %v81
  %93 = vmatpush.bf16.msra.mxu0 %v80
  %94 = vmatpush.bf16.msra.mxu0 %v79
  %95 = vmatpush.bf16.msra.mxu0 %v78
  %96 = vmatpush.bf16.msra.mxu0 %v77
  %97 = vmatpush.bf16.msra.mxu0 %v76
  %98 = vmatpush.bf16.msra.mxu0 %v75
  %99 = vmatmul.bf16.gmra.mxu0 %v22
  %v100 = vpop.f32.mrf.mxu0
  %v101 = vadd.f32 %v41, %v100
  %v102 = vpop.f32.mrf.mxu0
  %103 = vdwg.mxu0
  %v104 = vmax.f32 %v101, 0.0
  %v105 = vpack.c.bf16 %v104, %v104
  %v106 = vld [vmem:[%s3] sm:$0xf]
  %v107 = vld [vmem:[%s3 + $0x4] sm:$0xf]
  %v108 = vld [vmem:[%s3 + $0x8] sm:$0xf]
  %v109 = vld [vmem:[%s3 + $0xc] sm:$0xf]
  %v110 = vld [vmem:[%s3 + $0x10] sm:$0xf]
  %v111 = vld [vmem:[%s3 + $0x14] sm:$0xf]
  %v112 = vld [vmem:[%s3 + $0x18] sm:$0xf]
  %v113 = vld [vmem:[%s3 + $0x1c] sm:$0xf]
  %v114 = vld [vmem:[%s3 + $0x20] sm:$0xf]
  %v115 = vld [vmem:[%s3 + $0x24] sm:$0xf]
  %v116 = vld [vmem:[%s3 + $0x28] sm:$0xf]
  %v117 = vld [vmem:[%s3 + $0x2c] sm:$0xf]
  %v118 = vld [vmem:[%s3 + $0x30] sm:$0xf]
  %v119 = vld [vmem:[%s3 + $0x34] sm:$0xf]
  %v120 = vld [vmem:[%s3 + $0x38] sm:$0xf]
  %v121 = vld [vmem:[%s3 + $0x3c] sm:$0xf]
  %v122 = vld [vmem:[%s4] sm:$0x1]
  %v124 = vperm.slane %v122, 0
  %v142 = vunpack.c.l.b16 %v106
  %v143 = vunpack.c.l.b16 %v107
  %v144 = vunpack.c.l.b16 %v108
  %v145 = vunpack.c.l.b16 %v109
  %v146 = vunpack.c.l.b16 %v110
  %v147 = vunpack.c.l.b16 %v111
  %v148 = vunpack.c.l.b16 %v112
  %v149 = vunpack.c.l.b16 %v113
  %v150 = vunpack.c.l.b16 %v114
  %v151 = vunpack.c.l.b16 %v115
  %v152 = vunpack.c.l.b16 %v116
  %v153 = vunpack.c.l.b16 %v117
  %v154 = vunpack.c.l.b16 %v118
  %v155 = vunpack.c.l.b16 %v119
  %v156 = vunpack.c.l.b16 %v120
  %v157 = vunpack.c.l.b16 %v121
  %v158 = vpack.c.b16 %v143, %v142
  %v159 = vpack.c.b16 %v145, %v144
  %v160 = vpack.c.b16 %v147, %v146
  %v161 = vpack.c.b16 %v149, %v148
  %v162 = vpack.c.b16 %v151, %v150
  %v163 = vpack.c.b16 %v153, %v152
  %v164 = vpack.c.b16 %v155, %v154
  %v165 = vpack.c.b16 %v157, %v156
  %174 = vmatpush.bf16.msra.mxu0 %v165
  %175 = vmatpush.bf16.msra.mxu0 %v164
  %176 = vmatpush.bf16.msra.mxu0 %v163
  %177 = vmatpush.bf16.msra.mxu0 %v162
  %178 = vmatpush.bf16.msra.mxu0 %v161
  %179 = vmatpush.bf16.msra.mxu0 %v160
  %180 = vmatpush.bf16.msra.mxu0 %v159
  %181 = vmatpush.bf16.msra.mxu0 %v158
  %182 = vmatmul.bf16.gmra.mxu0 %v105
  %v183 = vpop.f32.mrf.mxu0
  %v184 = vadd.f32 %v124, %v183
  %v185 = vpop.f32.mrf.mxu0
  %186 = vdwg.mxu0
  %v187 = vadd.f32 %v184, 3.0
  %v188 = vmax.f32 %v187, 0.0
  %v189 = vmin.f32 %v188, 6.0
  %v190 = vmul.f32 %v189, 0.16666667
  %v192 = vrot.slane %v190, 1
  %194 = vst [vmem:[%s5] sm:$0x1] %v190
  %195 = vst [vmem:[%s5 + $0x1] sm:$0x1] %v192
  // Predicated region
  $region22: #{mobilenet_v3_forward.16} parent=0 // pred_check
    _
  $region23: #{mobilenet_v3_forward.16} parent=0 // pred_check_branch
    %197 = sbr.rel (0) target = $region25
  $region24: #{mobilenet_v3_forward.16} parent=0 // pred_region
    _
  $region25: #{mobilenet_v3_forward.16} parent=0 // pred_fallthru
    _
  // Predicated region
  $region26: #{mobilenet_v3_forward.16} parent=0 // pred_check
    _
  $region27: #{mobilenet_v3_forward.16} parent=0 // pred_check_branch
    %199 = sbr.rel (0) target = $region29
  $region28: #{mobilenet_v3_forward.16} parent=0 // pred_region
    _
  $region29: #{mobilenet_v3_forward.16} parent=0 // pred_fallthru
    _

// kernel: mobilenet_v3_forward.17
$region0: #{mobilenet_v3_forward.17}
  #allocation0 [shape = 'u32[]', space=smem, size = 0x4, offset = 0x4, fixed_abs, tag = 'smem constant byte address 0x4 - core index']
  #allocation1 [shape = 'u32[72,128]{1,0:T(1,128)}', space=vmem, size = 0x9000, scoped, tag = 'internal scratch']
  %s0 = inlined_call_operand.vmem [shape: bf16[2,16,128], index: 0, kind: input, shape index: {}]
  %s1 = inlined_call_operand.vmem [shape: f32[2,1,128], index: 1, kind: input, shape index: {}]
  %s2 = inlined_call_operand.vmem [shape: bf16[128,128], index: 2, kind: input, shape index: {}]
  %s3 = inlined_call_operand.vmem [shape: f32[1,128], index: 3, kind: input, shape index: {}]
  %s4 = inlined_call_operand.vmem [shape: bf16[2,16,128], index: 4, kind: output, shape index: {}]
  %s5 = sld [smem:[#allocation0]]
  $region49: #{mobilenet_v3_forward.17} parent=0
    _
  %s7 = ssub.s32 1, %s5
  %s8 = scalar_select 0, %s7, %s5
  loop: start=0, step=1, limit=4
  $region2: #{mobilenet_v3_forward.17} parent=0 // loop_pre_header
    _
  $region3: #{mobilenet_v3_forward.17} parent=0 // loop_header
    %s10 = sphi 0, %s14
    %p11 = scmp.ge.s32.totalorder %s10, 4
    %s17 = sphi 0, %s29
    %s18 = sphi 0, %s25
    %s19 = sphi 0, %s17
    %s20 = sphi 0, %s18
    %s21 = sphi 0, %s19
    %s22 = sphi 0, %s20
    %s34 = sphi 0, %s36
    %s37 = sphi 0, %s34
    %s38 = sphi 0, %s37
    %s54 = sphi 0, %s38
    %s60 = sphi 0, %s62
    %s63 = sphi 0, %s60
    %s64 = sphi 0, %s63
    %s80 = sphi 0, %s64
    %s84 = sphi 0, %s84
    %s86 = sphi 0, %s84
    %s87 = sphi 0, %s86
    %s101 = sphi 0, %s87
    %s105 = sphi 0, %s105
    %s107 = sphi 0, %s105
    %s108 = sphi 0, %s107
    %s122 = sphi 0, %s108
    %s130 = sphi 0, %s132
    %s133 = sphi 0, %s130
    %s134 = sphi 0, %s133
    %s150 = sphi 0, %s134
  $region4: #{mobilenet_v3_forward.17} parent=0 // loop_header_branch
    %13 = sbr.rel (%p11) target = $region8
  $region5: #{mobilenet_v3_forward.17} parent=0 // loop_body
    %s15 = ssub.s32 %s10, 1
    %s16 = ssub.s32 %s10, 2
    %s23 = sadd.s32 1, %s18
    %p24 = scmp.ge.s32.totalorder %s23, 1
    %s25 = scalar_select %p24, 0, %s23
    %s26 = sadd.s32 1, %s17
    %s27 = scalar_select %p24, %s26, %s17
    %p28 = scmp.ge.s32.totalorder %s27, 2
    %s29 = scalar_select %p28, 0, %s27
    %s30 = ssub.s32 %s17, %s29
    %s31 = ssub.s32 %s18, %s25
    %s32 = sor.u32 %s30, %s31
    %p33 = scmp.eq.s32.totalorder %s32, 0
    %s35 = sadd.s32 %s34, 1
    %s36 = scalar_select %p33, %s34, %s35
    %p39 = pneg %p33
    %p40 = scmp.eq.s32.totalorder %s10, 1
    %p41 = por %p39, %p40
    %p42 = scmp.ne.s32.totalorder %s34, %s37
    %p43 = scmp.eq.s32.totalorder %s10, 0
    %p44 = por %p42, %p43
    %p45 = scmp.ne.s32.totalorder %s34, %s37
    %p46 = scmp.eq.s32.totalorder %s15, 1
    %p47 = por %p45, %p46
    %p48 = scmp.ne.s32.totalorder %s37, %s38
    %p49 = scmp.eq.s32.totalorder %s15, 0
    %p50 = por %p48, %p49
    %p51 = scmp.ne.s32.totalorder %s37, %s38
    %p52 = scmp.eq.s32.totalorder %s16, 1
    %p53 = por %p51, %p52
    %p55 = scmp.ne.s32.totalorder %s38, %s54
    %p56 = scmp.eq.s32.totalorder %s16, 0
    %p57 = por %p55, %p56
    %s58 = ssub.s32 %s17, %s29
    %p59 = scmp.eq.s32.totalorder %s58, 0
    %s61 = sadd.s32 %s60, 1
    %s62 = scalar_select %p59, %s60, %s61
    %p65 = pneg %p59
    %p66 = scmp.eq.s32.totalorder %s10, 1
    %p67 = por %p65, %p66
    %p68 = scmp.ne.s32.totalorder %s60, %s63
    %p69 = scmp.eq.s32.totalorder %s10, 0
    %p70 = por %p68, %p69
    %p71 = scmp.ne.s32.totalorder %s60, %s63
    %p72 = scmp.eq.s32.totalorder %s15, 1
    %p73 = por %p71, %p72
    %p74 = scmp.ne.s32.totalorder %s63, %s64
    %p75 = scmp.eq.s32.totalorder %s15, 0
    %p76 = por %p74, %p75
    %p77 = scmp.ne.s32.totalorder %s63, %s64
    %p78 = scmp.eq.s32.totalorder %s16, 1
    %p79 = por %p77, %p78
    %p81 = scmp.ne.s32.totalorder %s64, %s80
    %p82 = scmp.eq.s32.totalorder %s16, 0
    %p83 = por %p81, %p82
    %s85 = sadd.s32 %s84, 1
    %p88 = scmp.eq.s32.totalorder %s10, 1
    %p89 = scmp.ne.s32.totalorder %s84, %s86
    %p90 = scmp.eq.s32.totalorder %s10, 0
    %p91 = por %p89, %p90
    %p92 = scmp.ne.s32.totalorder %s84, %s86
    %p93 = scmp.eq.s32.totalorder %s15, 1
    %p94 = por %p92, %p93
    %p95 = scmp.ne.s32.totalorder %s86, %s87
    %p96 = scmp.eq.s32.totalorder %s15, 0
    %p97 = por %p95, %p96
    %p98 = scmp.ne.s32.totalorder %s86, %s87
    %p99 = scmp.eq.s32.totalorder %s16, 1
    %p100 = por %p98, %p99
    %p102 = scmp.ne.s32.totalorder %s87, %s101
    %p103 = scmp.eq.s32.totalorder %s16, 0
    %p104 = por %p102, %p103
    %s106 = sadd.s32 %s105, 1
    %p109 = scmp.eq.s32.totalorder %s10, 1
    %p110 = scmp.ne.s32.totalorder %s105, %s107
    %p111 = scmp.eq.s32.totalorder %s10, 0
    %p112 = por %p110, %p111
    %p113 = scmp.ne.s32.totalorder %s105, %s107
    %p114 = scmp.eq.s32.totalorder %s15, 1
    %p115 = por %p113, %p114
    %p116 = scmp.ne.s32.totalorder %s107, %s108
    %p117 = scmp.eq.s32.totalorder %s15, 0
    %p118 = por %p116, %p117
    %p119 = scmp.ne.s32.totalorder %s107, %s108
    %p120 = scmp.eq.s32.totalorder %s16, 1
    %p121 = por %p119, %p120
    %p123 = scmp.ne.s32.totalorder %s108, %s122
    %p124 = scmp.eq.s32.totalorder %s16, 0
    %p125 = por %p123, %p124
    %s126 = ssub.s32 %s17, %s29
    %s127 = ssub.s32 %s18, %s25
    %s128 = sor.u32 %s126, %s127
    %p129 = scmp.eq.s32.totalorder %s128, 0
    %s131 = sadd.s32 %s130, 1
    %s132 = scalar_select %p129, %s130, %s131
    %p135 = pneg %p129
    %p136 = scmp.eq.s32.totalorder %s10, 1
    %p137 = por %p135, %p136
    %p138 = scmp.ne.s32.totalorder %s130, %s133
    %p139 = scmp.eq.s32.totalorder %s10, 0
    %p140 = por %p138, %p139
    %p141 = scmp.ne.s32.totalorder %s130, %s133
    %p142 = scmp.eq.s32.totalorder %s15, 1
    %p143 = por %p141, %p142
    %p144 = scmp.ne.s32.totalorder %s133, %s134
    %p145 = scmp.eq.s32.totalorder %s15, 0
    %p146 = por %p144, %p145
    %p147 = scmp.ne.s32.totalorder %s133, %s134
    %p148 = scmp.eq.s32.totalorder %s16, 1
    %p149 = por %p147, %p148
    %p151 = scmp.ne.s32.totalorder %s134, %s150
    %p152 = scmp.eq.s32.totalorder %s16, 0
    %p153 = por %p151, %p152
    %p154 = scmp.le.s32.totalorder 1, %s10
    %p155 = scmp.lt.s32.totalorder %s10, 3
    %p156 = pnand %p154, %p155
    %p157 = pneg %p156
    // Predicated region
    $region9: #{mobilenet_v3_forward.17} parent=5 // pred_check
      _
    $region10: #{mobilenet_v3_forward.17} parent=5 // pred_check_branch
      %159 = sbr.rel (%p156) target = $region12
    $region11: #{mobilenet_v3_forward.17} parent=5 // pred_region
      %s160 = ssub.s32 %s10, 1
      // Predicated region
      $region13: #{mobilenet_v3_forward.17} parent=11 // pred_check
        %p161 = pneg %p97
      $region14: #{mobilenet_v3_forward.17} parent=11 // pred_check_branch
        %163 = sbr.rel (%p161) target = $region16
      $region15: #{mobilenet_v3_forward.17} parent=11 // pred_region
        _
      $region16: #{mobilenet_v3_forward.17} parent=11 // pred_fallthru
        _
      // Predicated region
      $region17: #{mobilenet_v3_forward.17} parent=11 // pred_check
        %p164 = pneg %p118
      $region18: #{mobilenet_v3_forward.17} parent=11 // pred_check_branch
        %166 = sbr.rel (%p164) target = $region20
      $region19: #{mobilenet_v3_forward.17} parent=11 // pred_region
        _
      $region20: #{mobilenet_v3_forward.17} parent=11 // pred_fallthru
        _
    $region12: #{mobilenet_v3_forward.17} parent=5 // pred_fallthru
      _
    %p167 = scmp.lt.s32.totalorder %s10, 2
    // Predicated region
    $region21: #{mobilenet_v3_forward.17} parent=5 // pred_check
      %p168 = pneg %p167
    $region22: #{mobilenet_v3_forward.17} parent=5 // pred_check_branch
      %170 = sbr.rel (%p168) target = $region24
    $region23: #{mobilenet_v3_forward.17} parent=5 // pred_region
      // Predicated region
      $region25: #{mobilenet_v3_forward.17} parent=23 // pred_check
        %p171 = pneg %p44
      $region26: #{mobilenet_v3_forward.17} parent=23 // pred_check_branch
        %173 = sbr.rel (%p171) target = $region28
      $region27: #{mobilenet_v3_forward.17} parent=23 // pred_region
        %s174 = smul.u32 2, %s18
        %p175 = scmp.lt.s32.totalorder %s17, 1
        %s176 = scalar_select %p175, %s17, 1
        %p177 = scmp.lt.s32.totalorder %s174, 1
        %s178 = scalar_select %p177, %s174, 1
        %s179 = smul.addr %s176, 2
        %s180 = sadd.s32 %s178, %s179
        %s181 = smul.addr %s180, 4
        %s182 = scalar_lea.vmem %s0, %s181
        %s183 = smul.u32 2, %s18
      $region28: #{mobilenet_v3_forward.17} parent=23 // pred_fallthru
        _
      // Predicated region
      $region29: #{mobilenet_v3_forward.17} parent=23 // pred_check
        %p184 = pneg %p70
      $region30: #{mobilenet_v3_forward.17} parent=23 // pred_check_branch
        %186 = sbr.rel (%p184) target = $region32
      $region31: #{mobilenet_v3_forward.17} parent=23 // pred_region
        %p187 = scmp.lt.s32.totalorder %s17, 1
        %s188 = scalar_select %p187, %s17, 1
        %s189 = scalar_lea.vmem %s1, %s188
      $region32: #{mobilenet_v3_forward.17} parent=23 // pred_fallthru
        _
    $region24: #{mobilenet_v3_forward.17} parent=5 // pred_fallthru
      _
    %p190 = scmp.le.s32.totalorder 1, %s10
    %p191 = scmp.lt.s32.totalorder %s10, 3
    %p192 = pnand %p190, %p191
    %p193 = pneg %p192
    // Predicated region
    $region33: #{mobilenet_v3_forward.17} parent=5 // pred_check
      _
    $region34: #{mobilenet_v3_forward.17} parent=5 // pred_check_branch
      %195 = sbr.rel (%p192) target = $region36
    $region35: #{mobilenet_v3_forward.17} parent=5 // pred_region
      %s196 = ssub.s32 %s10, 1
      %s197 = smul.u32 2, %s20
      %p198 = scmp.lt.s32.totalorder %s19, 1
      %s199 = scalar_select %p198, %s19, 1
      %p200 = scmp.lt.s32.totalorder %s197, 1
      %s201 = scalar_select %p200, %s197, 1
      %s202 = smul.addr %s199, 2
      %s203 = sadd.s32 %s201, %s202
      %s204 = smul.addr %s203, 4
      %s205 = scalar_lea.vmem %s0, %s204
      %p206 = pneg %p50
      %p207 = pneg %p47
      %p208 = scmp.lt.s32.totalorder %s19, 1
      %s209 = scalar_select %p208, %s19, 1
      %s210 = scalar_lea.vmem %s1, %s209
      %p211 = pneg %p76
      %p212 = pneg %p73
      %p213 = pneg %p97
      %p214 = pneg %p94
      %p215 = pneg %p118
      %p216 = pneg %p115
      %p217 = pneg %p146
      %p218 = pneg %p143
      %s219 = smul.u32 2, %s20
      %p220 = scmp.lt.s32.totalorder %s19, 1
      %s221 = scalar_select %p220, %s19, 1
      %p222 = scmp.lt.s32.totalorder %s219, 1
      %s223 = scalar_select %p222, %s219, 1
      %s224 = smul.addr %s221, 2
      %s225 = sadd.s32 %s223, %s224
      %s226 = smul.addr %s225, 4
      %s227 = scalar_lea.vmem %s4, %s226
      %s228 = smul.u32 2, %s20
      %p229 = scmp.lt.s32.totalorder %s19, 1
      %s230 = scalar_select %p229, %s19, 1
      %p231 = scmp.lt.s32.totalorder %s228, 1
      %s232 = scalar_select %p231, %s228, 1
      %s233 = smul.addr %s230, 2
      %s234 = sadd.s32 %s232, %s233
      %s235 = smul.addr %s234, 4
      %s236 = scalar_lea.vmem %s0, %s235
      %s237 = smul.u32 2, %s20
      %p238 = scmp.lt.s32.totalorder %s19, 1
      %s239 = scalar_select %p238, %s19, 1
      %s240 = scalar_lea.vmem %s1, %s239
      %s241 = smul.u32 2, %s20
      %p242 = scmp.lt.s32.totalorder %s19, 1
      %s243 = scalar_select %p242, %s19, 1
      %p244 = scmp.lt.s32.totalorder %s241, 1
      %s245 = scalar_select %p244, %s241, 1
      %s246 = smul.addr %s243, 2
      %s247 = sadd.s32 %s245, %s246
      %s248 = smul.addr %s247, 4
      %s249 = scalar_lea.vmem %s4, %s248
      %s250 = smul.u32 2, %s20
      %v251 = vld [vmem:[%s236] sm:$0xf]
      %v252 = vld [vmem:[%s236 + $0x4] sm:$0xf]
      %v253 = vunpack.c.l.bf16 %v251
      %v254 = vunpack.c.l.bf16 %v252
      %v255 = vld [vmem:[%s240] sm:$0x1]
      %v257 = vperm.slane %v255, 0
      %v259 = vmul.f32 %v253, %v257
      %v260 = vmul.f32 %v254, %v257
      %v261 = vpack.c.bf16 %v260, %v259
      %v262 = vld [vmem:[%s2] sm:$0xf]
      %v263 = vld [vmem:[%s2 + $0x4] sm:$0xf]
      %v264 = vld [vmem:[%s2 + $0x8] sm:$0xf]
      %v265 = vld [vmem:[%s2 + $0xc] sm:$0xf]
      %v266 = vld [vmem:[%s2 + $0x10] sm:$0xf]
      %v267 = vld [vmem:[%s2 + $0x14] sm:$0xf]
      %v268 = vld [vmem:[%s2 + $0x18] sm:$0xf]
      %v269 = vld [vmem:[%s2 + $0x1c] sm:$0xf]
      %v270 = vld [vmem:[%s2 + $0x20] sm:$0xf]
      %v271 = vld [vmem:[%s2 + $0x24] sm:$0xf]
      %v272 = vld [vmem:[%s2 + $0x28] sm:$0xf]
      %v273 = vld [vmem:[%s2 + $0x2c] sm:$0xf]
      %v274 = vld [vmem:[%s2 + $0x30] sm:$0xf]
      %v275 = vld [vmem:[%s2 + $0x34] sm:$0xf]
      %v276 = vld [vmem:[%s2 + $0x38] sm:$0xf]
      %v277 = vld [vmem:[%s2 + $0x3c] sm:$0xf]
      %v278 = vld [vmem:[%s3] sm:$0x1]
      %v280 = vperm.slane %v278, 0
      %v298 = vunpack.c.l.b16 %v262
      %v299 = vunpack.c.l.b16 %v263
      %v300 = vunpack.c.l.b16 %v264
      %v301 = vunpack.c.l.b16 %v265
      %v302 = vunpack.c.l.b16 %v266
      %v303 = vunpack.c.l.b16 %v267
      %v304 = vunpack.c.l.b16 %v268
      %v305 = vunpack.c.l.b16 %v269
      %v306 = vunpack.c.l.b16 %v270
      %v307 = vunpack.c.l.b16 %v271
      %v308 = vunpack.c.l.b16 %v272
      %v309 = vunpack.c.l.b16 %v273
      %v310 = vunpack.c.l.b16 %v274
      %v311 = vunpack.c.l.b16 %v275
      %v312 = vunpack.c.l.b16 %v276
      %v313 = vunpack.c.l.b16 %v277
      %v314 = vpack.c.b16 %v299, %v298
      %v315 = vpack.c.b16 %v301, %v300
      %v316 = vpack.c.b16 %v303, %v302
      %v317 = vpack.c.b16 %v305, %v304
      %v318 = vpack.c.b16 %v307, %v306
      %v319 = vpack.c.b16 %v309, %v308
      %v320 = vpack.c.b16 %v311, %v310
      %v321 = vpack.c.b16 %v313, %v312
      %330 = vmatpush.bf16.msra.mxu0 %v321
      %331 = vmatpush.bf16.msra.mxu0 %v320
      %332 = vmatpush.bf16.msra.mxu0 %v319
      %333 = vmatpush.bf16.msra.mxu0 %v318
      %334 = vmatpush.bf16.msra.mxu0 %v317
      %335 = vmatpush.bf16.msra.mxu0 %v316
      %336 = vmatpush.bf16.msra.mxu0 %v315
      %337 = vmatpush.bf16.msra.mxu0 %v314
      %338 = vmatmul.bf16.gmra.mxu0 %v261
      %v339 = vpop.f32.mrf.mxu0
      %v340 = vadd.f32 %v280, %v339
      %v341 = vpop.f32.mrf.mxu0
      %v342 = vadd.f32 %v280, %v341
      %343 = vdwg.mxu0
      %v344 = vpack.c.bf16 %v340, %v340
      %v345 = vpack.c.bf16 %v342, %v342
      %346 = vst [vmem:[%s249] sm:$0xf] %v344
      %347 = vst [vmem:[%s249 + $0x4] sm:$0xf] %v345
      %s348 = smul.u32 2, %s20
      %p349 = scmp.lt.s32.totalorder %s19, 1
      %s350 = scalar_select %p349, %s19, 1
      %p351 = scmp.lt.s32.totalorder %s348, 1
      %s352 = scalar_select %p351, %s348, 1
      %s353 = smul.addr %s350, 2
      %s354 = sadd.s32 %s352, %s353
      %s355 = smul.addr %s354, 4
      %s356 = scalar_lea.vmem %s4, %s355
      // Predicated region
      $region37: #{mobilenet_v3_forward.17} parent=35 // pred_check
        %p357 = pneg %p143
      $region38: #{mobilenet_v3_forward.17} parent=35 // pred_check_branch
        %359 = sbr.rel (%p357) target = $region40
      $region39: #{mobilenet_v3_forward.17} parent=35 // pred_region
        %s360 = smul.u32 2, %s20
      $region40: #{mobilenet_v3_forward.17} parent=35 // pred_fallthru
        _
    $region36: #{mobilenet_v3_forward.17} parent=5 // pred_fallthru
      _
    %p361 = scmp.le.s32.totalorder 2, %s10
    // Predicated region
    $region41: #{mobilenet_v3_forward.17} parent=5 // pred_check
      %p362 = pneg %p361
    $region42: #{mobilenet_v3_forward.17} parent=5 // pred_check_branch
      %364 = sbr.rel (%p362) target = $region44
    $region43: #{mobilenet_v3_forward.17} parent=5 // pred_region
      %s365 = ssub.s32 %s10, 2
      // Predicated region
      $region45: #{mobilenet_v3_forward.17} parent=43 // pred_check
        %p366 = pneg %p149
      $region46: #{mobilenet_v3_forward.17} parent=43 // pred_check_branch
        %368 = sbr.rel (%p366) target = $region48
      $region47: #{mobilenet_v3_forward.17} parent=43 // pred_region
        %s369 = smul.u32 2, %s22
        %p370 = scmp.lt.s32.totalorder %s21, 1
        %s371 = scalar_select %p370, %s21, 1
        %p372 = scmp.lt.s32.totalorder %s369, 1
        %s373 = scalar_select %p372, %s369, 1
        %s374 = smul.addr %s371, 2
        %s375 = sadd.s32 %s373, %s374
        %s376 = smul.addr %s375, 4
        %s377 = scalar_lea.vmem %s4, %s376
      $region48: #{mobilenet_v3_forward.17} parent=43 // pred_fallthru
        _
    $region44: #{mobilenet_v3_forward.17} parent=5 // pred_fallthru
      _
  $region6: #{mobilenet_v3_forward.17} parent=0 // loop_footer
    %s14 = sadd.s32 1, %s10
  $region7: #{mobilenet_v3_forward.17} parent=0 // loop_footer_branch
    %9 = sbr.rel target = $region3
  $region8: #{mobilenet_v3_forward.17} parent=0 // loop_exit
    _

// kernel: mobilenet_v3_forward.18
$region0: #{mobilenet_v3_forward.18}
  #allocation0 [shape = 'u32[]', space=smem, size = 0x4, offset = 0x4, fixed_abs, tag = 'smem constant byte address 0x4 - core index']
  #allocation1 [shape = 'u32[72,128]{1,0:T(1,128)}', space=vmem, size = 0x9000, scoped, tag = 'internal scratch']
  %s0 = inlined_call_operand.vmem [shape: bf16[2,16,128], index: 0, kind: input, shape index: {}]
  %s1 = inlined_call_operand.vmem [shape: bf16[128,128], index: 1, kind: input, shape index: {}]
  %s2 = inlined_call_operand.vmem [shape: f32[1,128], index: 2, kind: input, shape index: {}]
  %s3 = inlined_call_operand.vmem [shape: bf16[2,16,128], index: 3, kind: output, shape index: {}]
  %s4 = sld [smem:[#allocation0]]
  $region45: #{mobilenet_v3_forward.18} parent=0
    _
  %s6 = ssub.s32 1, %s4
  %s7 = scalar_select 0, %s6, %s4
  loop: start=0, step=1, limit=4
  $region2: #{mobilenet_v3_forward.18} parent=0 // loop_pre_header
    _
  $region3: #{mobilenet_v3_forward.18} parent=0 // loop_header
    %s9 = sphi 0, %s13
    %p10 = scmp.ge.s32.totalorder %s9, 4
    %s16 = sphi 0, %s28
    %s17 = sphi 0, %s24
    %s18 = sphi 0, %s16
    %s19 = sphi 0, %s17
    %s20 = sphi 0, %s18
    %s21 = sphi 0, %s19
    %s33 = sphi 0, %s35
    %s36 = sphi 0, %s33
    %s37 = sphi 0, %s36
    %s53 = sphi 0, %s37
    %s57 = sphi 0, %s57
    %s59 = sphi 0, %s57
    %s60 = sphi 0, %s59
    %s74 = sphi 0, %s60
    %s78 = sphi 0, %s78
    %s80 = sphi 0, %s78
    %s81 = sphi 0, %s80
    %s95 = sphi 0, %s81
    %s103 = sphi 0, %s105
    %s106 = sphi 0, %s103
    %s107 = sphi 0, %s106
    %s123 = sphi 0, %s107
  $region4: #{mobilenet_v3_forward.18} parent=0 // loop_header_branch
    %12 = sbr.rel (%p10) target = $region8
  $region5: #{mobilenet_v3_forward.18} parent=0 // loop_body
    %s14 = ssub.s32 %s9, 1
    %s15 = ssub.s32 %s9, 2
    %s22 = sadd.s32 1, %s17
    %p23 = scmp.ge.s32.totalorder %s22, 1
    %s24 = scalar_select %p23, 0, %s22
    %s25 = sadd.s32 1, %s16
    %s26 = scalar_select %p23, %s25, %s16
    %p27 = scmp.ge.s32.totalorder %s26, 2
    %s28 = scalar_select %p27, 0, %s26
    %s29 = ssub.s32 %s16, %s28
    %s30 = ssub.s32 %s17, %s24
    %s31 = sor.u32 %s29, %s30
    %p32 = scmp.eq.s32.totalorder %s31, 0
    %s34 = sadd.s32 %s33, 1
    %s35 = scalar_select %p32, %s33, %s34
    %p38 = pneg %p32
    %p39 = scmp.eq.s32.totalorder %s9, 1
    %p40 = por %p38, %p39
    %p41 = scmp.ne.s32.totalorder %s33, %s36
    %p42 = scmp.eq.s32.totalorder %s9, 0
    %p43 = por %p41, %p42
    %p44 = scmp.ne.s32.totalorder %s33, %s36
    %p45 = scmp.eq.s32.totalorder %s14, 1
    %p46 = por %p44, %p45
    %p47 = scmp.ne.s32.totalorder %s36, %s37
    %p48 = scmp.eq.s32.totalorder %s14, 0
    %p49 = por %p47, %p48
    %p50 = scmp.ne.s32.totalorder %s36, %s37
    %p51 = scmp.eq.s32.totalorder %s15, 1
    %p52 = por %p50, %p51
    %p54 = scmp.ne.s32.totalorder %s37, %s53
    %p55 = scmp.eq.s32.totalorder %s15, 0
    %p56 = por %p54, %p55
    %s58 = sadd.s32 %s57, 1
    %p61 = scmp.eq.s32.totalorder %s9, 1
    %p62 = scmp.ne.s32.totalorder %s57, %s59
    %p63 = scmp.eq.s32.totalorder %s9, 0
    %p64 = por %p62, %p63
    %p65 = scmp.ne.s32.totalorder %s57, %s59
    %p66 = scmp.eq.s32.totalorder %s14, 1
    %p67 = por %p65, %p66
    %p68 = scmp.ne.s32.totalorder %s59, %s60
    %p69 = scmp.eq.s32.totalorder %s14, 0
    %p70 = por %p68, %p69
    %p71 = scmp.ne.s32.totalorder %s59, %s60
    %p72 = scmp.eq.s32.totalorder %s15, 1
    %p73 = por %p71, %p72
    %p75 = scmp.ne.s32.totalorder %s60, %s74
    %p76 = scmp.eq.s32.totalorder %s15, 0
    %p77 = por %p75, %p76
    %s79 = sadd.s32 %s78, 1
    %p82 = scmp.eq.s32.totalorder %s9, 1
    %p83 = scmp.ne.s32.totalorder %s78, %s80
    %p84 = scmp.eq.s32.totalorder %s9, 0
    %p85 = por %p83, %p84
    %p86 = scmp.ne.s32.totalorder %s78, %s80
    %p87 = scmp.eq.s32.totalorder %s14, 1
    %p88 = por %p86, %p87
    %p89 = scmp.ne.s32.totalorder %s80, %s81
    %p90 = scmp.eq.s32.totalorder %s14, 0
    %p91 = por %p89, %p90
    %p92 = scmp.ne.s32.totalorder %s80, %s81
    %p93 = scmp.eq.s32.totalorder %s15, 1
    %p94 = por %p92, %p93
    %p96 = scmp.ne.s32.totalorder %s81, %s95
    %p97 = scmp.eq.s32.totalorder %s15, 0
    %p98 = por %p96, %p97
    %s99 = ssub.s32 %s16, %s28
    %s100 = ssub.s32 %s17, %s24
    %s101 = sor.u32 %s99, %s100
    %p102 = scmp.eq.s32.totalorder %s101, 0
    %s104 = sadd.s32 %s103, 1
    %s105 = scalar_select %p102, %s103, %s104
    %p108 = pneg %p102
    %p109 = scmp.eq.s32.totalorder %s9, 1
    %p110 = por %p108, %p109
    %p111 = scmp.ne.s32.totalorder %s103, %s106
    %p112 = scmp.eq.s32.totalorder %s9, 0
    %p113 = por %p111, %p112
    %p114 = scmp.ne.s32.totalorder %s103, %s106
    %p115 = scmp.eq.s32.totalorder %s14, 1
    %p116 = por %p114, %p115
    %p117 = scmp.ne.s32.totalorder %s106, %s107
    %p118 = scmp.eq.s32.totalorder %s14, 0
    %p119 = por %p117, %p118
    %p120 = scmp.ne.s32.totalorder %s106, %s107
    %p121 = scmp.eq.s32.totalorder %s15, 1
    %p122 = por %p120, %p121
    %p124 = scmp.ne.s32.totalorder %s107, %s123
    %p125 = scmp.eq.s32.totalorder %s15, 0
    %p126 = por %p124, %p125
    %p127 = scmp.le.s32.totalorder 1, %s9
    %p128 = scmp.lt.s32.totalorder %s9, 3
    %p129 = pnand %p127, %p128
    %p130 = pneg %p129
    // Predicated region
    $region9: #{mobilenet_v3_forward.18} parent=5 // pred_check
      _
    $region10: #{mobilenet_v3_forward.18} parent=5 // pred_check_branch
      %132 = sbr.rel (%p129) target = $region12
    $region11: #{mobilenet_v3_forward.18} parent=5 // pred_region
      %s133 = ssub.s32 %s9, 1
      // Predicated region
      $region13: #{mobilenet_v3_forward.18} parent=11 // pred_check
        %p134 = pneg %p70
      $region14: #{mobilenet_v3_forward.18} parent=11 // pred_check_branch
        %136 = sbr.rel (%p134) target = $region16
      $region15: #{mobilenet_v3_forward.18} parent=11 // pred_region
        _
      $region16: #{mobilenet_v3_forward.18} parent=11 // pred_fallthru
        _
      // Predicated region
      $region17: #{mobilenet_v3_forward.18} parent=11 // pred_check
        %p137 = pneg %p91
      $region18: #{mobilenet_v3_forward.18} parent=11 // pred_check_branch
        %139 = sbr.rel (%p137) target = $region20
      $region19: #{mobilenet_v3_forward.18} parent=11 // pred_region
        _
      $region20: #{mobilenet_v3_forward.18} parent=11 // pred_fallthru
        _
    $region12: #{mobilenet_v3_forward.18} parent=5 // pred_fallthru
      _
    %p140 = scmp.lt.s32.totalorder %s9, 2
    // Predicated region
    $region21: #{mobilenet_v3_forward.18} parent=5 // pred_check
      %p141 = pneg %p140
    $region22: #{mobilenet_v3_forward.18} parent=5 // pred_check_branch
      %143 = sbr.rel (%p141) target = $region24
    $region23: #{mobilenet_v3_forward.18} parent=5 // pred_region
      // Predicated region
      $region25: #{mobilenet_v3_forward.18} parent=23 // pred_check
        %p144 = pneg %p43
      $region26: #{mobilenet_v3_forward.18} parent=23 // pred_check_branch
        %146 = sbr.rel (%p144) target = $region28
      $region27: #{mobilenet_v3_forward.18} parent=23 // pred_region
        %s147 = smul.u32 2, %s17
        %p148 = scmp.lt.s32.totalorder %s16, 1
        %s149 = scalar_select %p148, %s16, 1
        %p150 = scmp.lt.s32.totalorder %s147, 1
        %s151 = scalar_select %p150, %s147, 1
        %s152 = smul.addr %s149, 2
        %s153 = sadd.s32 %s151, %s152
        %s154 = smul.addr %s153, 4
        %s155 = scalar_lea.vmem %s0, %s154
        %s156 = smul.u32 2, %s17
      $region28: #{mobilenet_v3_forward.18} parent=23 // pred_fallthru
        _
    $region24: #{mobilenet_v3_forward.18} parent=5 // pred_fallthru
      _
    %p157 = scmp.le.s32.totalorder 1, %s9
    %p158 = scmp.lt.s32.totalorder %s9, 3
    %p159 = pnand %p157, %p158
    %p160 = pneg %p159
    // Predicated region
    $region29: #{mobilenet_v3_forward.18} parent=5 // pred_check
      _
    $region30: #{mobilenet_v3_forward.18} parent=5 // pred_check_branch
      %162 = sbr.rel (%p159) target = $region32
    $region31: #{mobilenet_v3_forward.18} parent=5 // pred_region
      %s163 = ssub.s32 %s9, 1
      %s164 = smul.u32 2, %s19
      %p165 = scmp.lt.s32.totalorder %s18, 1
      %s166 = scalar_select %p165, %s18, 1
      %p167 = scmp.lt.s32.totalorder %s164, 1
      %s168 = scalar_select %p167, %s164, 1
      %s169 = smul.addr %s166, 2
      %s170 = sadd.s32 %s168, %s169
      %s171 = smul.addr %s170, 4
      %s172 = scalar_lea.vmem %s0, %s171
      %p173 = pneg %p49
      %p174 = pneg %p46
      %p175 = pneg %p70
      %p176 = pneg %p67
      %p177 = pneg %p91
      %p178 = pneg %p88
      %p179 = pneg %p119
      %p180 = pneg %p116
      %s181 = smul.u32 2, %s19
      %p182 = scmp.lt.s32.totalorder %s18, 1
      %s183 = scalar_select %p182, %s18, 1
      %p184 = scmp.lt.s32.totalorder %s181, 1
      %s185 = scalar_select %p184, %s181, 1
      %s186 = smul.addr %s183, 2
      %s187 = sadd.s32 %s185, %s186
      %s188 = smul.addr %s187, 4
      %s189 = scalar_lea.vmem %s3, %s188
      %s190 = smul.u32 2, %s19
      %p191 = scmp.lt.s32.totalorder %s18, 1
      %s192 = scalar_select %p191, %s18, 1
      %p193 = scmp.lt.s32.totalorder %s190, 1
      %s194 = scalar_select %p193, %s190, 1
      %s195 = smul.addr %s192, 2
      %s196 = sadd.s32 %s194, %s195
      %s197 = smul.addr %s196, 4
      %s198 = scalar_lea.vmem %s0, %s197
      %s199 = smul.u32 2, %s19
      %s200 = smul.u32 2, %s19
      %p201 = scmp.lt.s32.totalorder %s18, 1
      %s202 = scalar_select %p201, %s18, 1
      %p203 = scmp.lt.s32.totalorder %s200, 1
      %s204 = scalar_select %p203, %s200, 1
      %s205 = smul.addr %s202, 2
      %s206 = sadd.s32 %s204, %s205
      %s207 = smul.addr %s206, 4
      %s208 = scalar_lea.vmem %s3, %s207
      %s209 = smul.u32 2, %s19
      %v210 = vld [vmem:[%s198] sm:$0xf]
      %v211 = vld [vmem:[%s198 + $0x4] sm:$0xf]
      %v212 = vld [vmem:[%s1] sm:$0xf]
      %v213 = vld [vmem:[%s1 + $0x4] sm:$0xf]
      %v214 = vld [vmem:[%s1 + $0x8] sm:$0xf]
      %v215 = vld [vmem:[%s1 + $0xc] sm:$0xf]
      %v216 = vld [vmem:[%s1 + $0x10] sm:$0xf]
      %v217 = vld [vmem:[%s1 + $0x14] sm:$0xf]
      %v218 = vld [vmem:[%s1 + $0x18] sm:$0xf]
      %v219 = vld [vmem:[%s1 + $0x1c] sm:$0xf]
      %v220 = vld [vmem:[%s1 + $0x20] sm:$0xf]
      %v221 = vld [vmem:[%s1 + $0x24] sm:$0xf]
      %v222 = vld [vmem:[%s1 + $0x28] sm:$0xf]
      %v223 = vld [vmem:[%s1 + $0x2c] sm:$0xf]
      %v224 = vld [vmem:[%s1 + $0x30] sm:$0xf]
      %v225 = vld [vmem:[%s1 + $0x34] sm:$0xf]
      %v226 = vld [vmem:[%s1 + $0x38] sm:$0xf]
      %v227 = vld [vmem:[%s1 + $0x3c] sm:$0xf]
      %v228 = vld [vmem:[%s2] sm:$0x1]
      %v230 = vperm.slane %v228, 0
      %v234 = vunpack.c.l.b16 %v210
      %v235 = vunpack.c.l.b16 %v211
      %v236 = vpack.c.b16 %v235, %v234
      %v254 = vunpack.c.l.b16 %v212
      %v255 = vunpack.c.l.b16 %v213
      %v256 = vunpack.c.l.b16 %v214
      %v257 = vunpack.c.l.b16 %v215
      %v258 = vunpack.c.l.b16 %v216
      %v259 = vunpack.c.l.b16 %v217
      %v260 = vunpack.c.l.b16 %v218
      %v261 = vunpack.c.l.b16 %v219
      %v262 = vunpack.c.l.b16 %v220
      %v263 = vunpack.c.l.b16 %v221
      %v264 = vunpack.c.l.b16 %v222
      %v265 = vunpack.c.l.b16 %v223
      %v266 = vunpack.c.l.b16 %v224
      %v267 = vunpack.c.l.b16 %v225
      %v268 = vunpack.c.l.b16 %v226
      %v269 = vunpack.c.l.b16 %v227
      %v270 = vpack.c.b16 %v255, %v254
      %v271 = vpack.c.b16 %v257, %v256
      %v272 = vpack.c.b16 %v259, %v258
      %v273 = vpack.c.b16 %v261, %v260
      %v274 = vpack.c.b16 %v263, %v262
      %v275 = vpack.c.b16 %v265, %v264
      %v276 = vpack.c.b16 %v267, %v266
      %v277 = vpack.c.b16 %v269, %v268
      %286 = vmatpush.bf16.msra.mxu0 %v277
      %287 = vmatpush.bf16.msra.mxu0 %v276
      %288 = vmatpush.bf16.msra.mxu0 %v275
      %289 = vmatpush.bf16.msra.mxu0 %v274
      %290 = vmatpush.bf16.msra.mxu0 %v273
      %291 = vmatpush.bf16.msra.mxu0 %v272
      %292 = vmatpush.bf16.msra.mxu0 %v271
      %293 = vmatpush.bf16.msra.mxu0 %v270
      %294 = vmatmul.bf16.gmra.mxu0 %v236
      %v295 = vpop.f32.mrf.mxu0
      %v296 = vadd.f32 %v230, %v295
      %v297 = vpop.f32.mrf.mxu0
      %v298 = vadd.f32 %v230, %v297
      %299 = vdwg.mxu0
      %v300 = vmax.f32 %v296, 0.0
      %v301 = vmax.f32 %v298, 0.0
      %v302 = vpack.c.bf16 %v300, %v300
      %v303 = vpack.c.bf16 %v301, %v301
      %304 = vst [vmem:[%s208] sm:$0xf] %v302
      %305 = vst [vmem:[%s208 + $0x4] sm:$0xf] %v303
      %s306 = smul.u32 2, %s19
      %p307 = scmp.lt.s32.totalorder %s18, 1
      %s308 = scalar_select %p307, %s18, 1
      %p309 = scmp.lt.s32.totalorder %s306, 1
      %s310 = scalar_select %p309, %s306, 1
      %s311 = smul.addr %s308, 2
      %s312 = sadd.s32 %s310, %s311
      %s313 = smul.addr %s312, 4
      %s314 = scalar_lea.vmem %s3, %s313
      // Predicated region
      $region33: #{mobilenet_v3_forward.18} parent=31 // pred_check
        %p315 = pneg %p116
      $region34: #{mobilenet_v3_forward.18} parent=31 // pred_check_branch
        %317 = sbr.rel (%p315) target = $region36
      $region35: #{mobilenet_v3_forward.18} parent=31 // pred_region
        %s318 = smul.u32 2, %s19
      $region36: #{mobilenet_v3_forward.18} parent=31 // pred_fallthru
        _
    $region32: #{mobilenet_v3_forward.18} parent=5 // pred_fallthru
      _
    %p319 = scmp.le.s32.totalorder 2, %s9
    // Predicated region
    $region37: #{mobilenet_v3_forward.18} parent=5 // pred_check
      %p320 = pneg %p319
    $region38: #{mobilenet_v3_forward.18} parent=5 // pred_check_branch
      %322 = sbr.rel (%p320) target = $region40
    $region39: #{mobilenet_v3_forward.18} parent=5 // pred_region
      %s323 = ssub.s32 %s9, 2
      // Predicated region
      $region41: #{mobilenet_v3_forward.18} parent=39 // pred_check
        %p324 = pneg %p122
      $region42: #{mobilenet_v3_forward.18} parent=39 // pred_check_branch
        %326 = sbr.rel (%p324) target = $region44
      $region43: #{mobilenet_v3_forward.18} parent=39 // pred_region
        %s327 = smul.u32 2, %s21
        %p328 = scmp.lt.s32.totalorder %s20, 1
        %s329 = scalar_select %p328, %s20, 1
        %p330 = scmp.lt.s32.totalorder %s327, 1
        %s331 = scalar_select %p330, %s327, 1
        %s332 = smul.addr %s329, 2
        %s333 = sadd.s32 %s331, %s332
        %s334 = smul.addr %s333, 4
        %s335 = scalar_lea.vmem %s3, %s334
      $region44: #{mobilenet_v3_forward.18} parent=39 // pred_fallthru
        _
    $region40: #{mobilenet_v3_forward.18} parent=5 // pred_fallthru
      _
  $region6: #{mobilenet_v3_forward.18} parent=0 // loop_footer
    %s13 = sadd.s32 1, %s9
  $region7: #{mobilenet_v3_forward.18} parent=0 // loop_footer_branch
    %8 = sbr.rel target = $region3
  $region8: #{mobilenet_v3_forward.18} parent=0 // loop_exit
    _

// kernel: mobilenet_v3_forward.20
$region0: #{mobilenet_v3_forward.20}
  #allocation0 [shape = 'u32[]', space=smem, size = 0x4, offset = 0x4, fixed_abs, tag = 'smem constant byte address 0x4 - core index']
  #allocation1 [shape = 'u32[72,128]{1,0:T(1,128)}', space=vmem, size = 0x9000, scoped, tag = 'internal scratch']
  %s0 = inlined_call_operand.vmem [shape: bf16[2,16,128], index: 0, kind: input, shape index: {}]
  %s1 = inlined_call_operand.vmem [shape: bf16[128,128], index: 1, kind: input, shape index: {}]
  %s2 = inlined_call_operand.vmem [shape: f32[1,128], index: 2, kind: input, shape index: {}]
  %s3 = inlined_call_operand.vmem [shape: bf16[2,16,128], index: 3, kind: output, shape index: {}]
  %s4 = sld [smem:[#allocation0]]
  $region45: #{mobilenet_v3_forward.20} parent=0
    _
  %s6 = ssub.s32 1, %s4
  %s7 = scalar_select 0, %s6, %s4
  loop: start=0, step=1, limit=4
  $region2: #{mobilenet_v3_forward.20} parent=0 // loop_pre_header
    _
  $region3: #{mobilenet_v3_forward.20} parent=0 // loop_header
    %s9 = sphi 0, %s13
    %p10 = scmp.ge.s32.totalorder %s9, 4
    %s16 = sphi 0, %s28
    %s17 = sphi 0, %s24
    %s18 = sphi 0, %s16
    %s19 = sphi 0, %s17
    %s20 = sphi 0, %s18
    %s21 = sphi 0, %s19
    %s33 = sphi 0, %s35
    %s36 = sphi 0, %s33
    %s37 = sphi 0, %s36
    %s53 = sphi 0, %s37
    %s57 = sphi 0, %s57
    %s59 = sphi 0, %s57
    %s60 = sphi 0, %s59
    %s74 = sphi 0, %s60
    %s78 = sphi 0, %s78
    %s80 = sphi 0, %s78
    %s81 = sphi 0, %s80
    %s95 = sphi 0, %s81
    %s103 = sphi 0, %s105
    %s106 = sphi 0, %s103
    %s107 = sphi 0, %s106
    %s123 = sphi 0, %s107
  $region4: #{mobilenet_v3_forward.20} parent=0 // loop_header_branch
    %12 = sbr.rel (%p10) target = $region8
  $region5: #{mobilenet_v3_forward.20} parent=0 // loop_body
    %s14 = ssub.s32 %s9, 1
    %s15 = ssub.s32 %s9, 2
    %s22 = sadd.s32 1, %s17
    %p23 = scmp.ge.s32.totalorder %s22, 1
    %s24 = scalar_select %p23, 0, %s22
    %s25 = sadd.s32 1, %s16
    %s26 = scalar_select %p23, %s25, %s16
    %p27 = scmp.ge.s32.totalorder %s26, 2
    %s28 = scalar_select %p27, 0, %s26
    %s29 = ssub.s32 %s16, %s28
    %s30 = ssub.s32 %s17, %s24
    %s31 = sor.u32 %s29, %s30
    %p32 = scmp.eq.s32.totalorder %s31, 0
    %s34 = sadd.s32 %s33, 1
    %s35 = scalar_select %p32, %s33, %s34
    %p38 = pneg %p32
    %p39 = scmp.eq.s32.totalorder %s9, 1
    %p40 = por %p38, %p39
    %p41 = scmp.ne.s32.totalorder %s33, %s36
    %p42 = scmp.eq.s32.totalorder %s9, 0
    %p43 = por %p41, %p42
    %p44 = scmp.ne.s32.totalorder %s33, %s36
    %p45 = scmp.eq.s32.totalorder %s14, 1
    %p46 = por %p44, %p45
    %p47 = scmp.ne.s32.totalorder %s36, %s37
    %p48 = scmp.eq.s32.totalorder %s14, 0
    %p49 = por %p47, %p48
    %p50 = scmp.ne.s32.totalorder %s36, %s37
    %p51 = scmp.eq.s32.totalorder %s15, 1
    %p52 = por %p50, %p51
    %p54 = scmp.ne.s32.totalorder %s37, %s53
    %p55 = scmp.eq.s32.totalorder %s15, 0
    %p56 = por %p54, %p55
    %s58 = sadd.s32 %s57, 1
    %p61 = scmp.eq.s32.totalorder %s9, 1
    %p62 = scmp.ne.s32.totalorder %s57, %s59
    %p63 = scmp.eq.s32.totalorder %s9, 0
    %p64 = por %p62, %p63
    %p65 = scmp.ne.s32.totalorder %s57, %s59
    %p66 = scmp.eq.s32.totalorder %s14, 1
    %p67 = por %p65, %p66
    %p68 = scmp.ne.s32.totalorder %s59, %s60
    %p69 = scmp.eq.s32.totalorder %s14, 0
    %p70 = por %p68, %p69
    %p71 = scmp.ne.s32.totalorder %s59, %s60
    %p72 = scmp.eq.s32.totalorder %s15, 1
    %p73 = por %p71, %p72
    %p75 = scmp.ne.s32.totalorder %s60, %s74
    %p76 = scmp.eq.s32.totalorder %s15, 0
    %p77 = por %p75, %p76
    %s79 = sadd.s32 %s78, 1
    %p82 = scmp.eq.s32.totalorder %s9, 1
    %p83 = scmp.ne.s32.totalorder %s78, %s80
    %p84 = scmp.eq.s32.totalorder %s9, 0
    %p85 = por %p83, %p84
    %p86 = scmp.ne.s32.totalorder %s78, %s80
    %p87 = scmp.eq.s32.totalorder %s14, 1
    %p88 = por %p86, %p87
    %p89 = scmp.ne.s32.totalorder %s80, %s81
    %p90 = scmp.eq.s32.totalorder %s14, 0
    %p91 = por %p89, %p90
    %p92 = scmp.ne.s32.totalorder %s80, %s81
    %p93 = scmp.eq.s32.totalorder %s15, 1
    %p94 = por %p92, %p93
    %p96 = scmp.ne.s32.totalorder %s81, %s95
    %p97 = scmp.eq.s32.totalorder %s15, 0
    %p98 = por %p96, %p97
    %s99 = ssub.s32 %s16, %s28
    %s100 = ssub.s32 %s17, %s24
    %s101 = sor.u32 %s99, %s100
    %p102 = scmp.eq.s32.totalorder %s101, 0
    %s104 = sadd.s32 %s103, 1
    %s105 = scalar_select %p102, %s103, %s104
    %p108 = pneg %p102
    %p109 = scmp.eq.s32.totalorder %s9, 1
    %p110 = por %p108, %p109
    %p111 = scmp.ne.s32.totalorder %s103, %s106
    %p112 = scmp.eq.s32.totalorder %s9, 0
    %p113 = por %p111, %p112
    %p114 = scmp.ne.s32.totalorder %s103, %s106
    %p115 = scmp.eq.s32.totalorder %s14, 1
    %p116 = por %p114, %p115
    %p117 = scmp.ne.s32.totalorder %s106, %s107
    %p118 = scmp.eq.s32.totalorder %s14, 0
    %p119 = por %p117, %p118
    %p120 = scmp.ne.s32.totalorder %s106, %s107
    %p121 = scmp.eq.s32.totalorder %s15, 1
    %p122 = por %p120, %p121
    %p124 = scmp.ne.s32.totalorder %s107, %s123
    %p125 = scmp.eq.s32.totalorder %s15, 0
    %p126 = por %p124, %p125
    %p127 = scmp.le.s32.totalorder 1, %s9
    %p128 = scmp.lt.s32.totalorder %s9, 3
    %p129 = pnand %p127, %p128
    %p130 = pneg %p129
    // Predicated region
    $region9: #{mobilenet_v3_forward.20} parent=5 // pred_check
      _
    $region10: #{mobilenet_v3_forward.20} parent=5 // pred_check_branch
      %132 = sbr.rel (%p129) target = $region12
    $region11: #{mobilenet_v3_forward.20} parent=5 // pred_region
      %s133 = ssub.s32 %s9, 1
      // Predicated region
      $region13: #{mobilenet_v3_forward.20} parent=11 // pred_check
        %p134 = pneg %p70
      $region14: #{mobilenet_v3_forward.20} parent=11 // pred_check_branch
        %136 = sbr.rel (%p134) target = $region16
      $region15: #{mobilenet_v3_forward.20} parent=11 // pred_region
        _
      $region16: #{mobilenet_v3_forward.20} parent=11 // pred_fallthru
        _
      // Predicated region
      $region17: #{mobilenet_v3_forward.20} parent=11 // pred_check
        %p137 = pneg %p91
      $region18: #{mobilenet_v3_forward.20} parent=11 // pred_check_branch
        %139 = sbr.rel (%p137) target = $region20
      $region19: #{mobilenet_v3_forward.20} parent=11 // pred_region
        _
      $region20: #{mobilenet_v3_forward.20} parent=11 // pred_fallthru
        _
    $region12: #{mobilenet_v3_forward.20} parent=5 // pred_fallthru
      _
    %p140 = scmp.lt.s32.totalorder %s9, 2
    // Predicated region
    $region21: #{mobilenet_v3_forward.20} parent=5 // pred_check
      %p141 = pneg %p140
    $region22: #{mobilenet_v3_forward.20} parent=5 // pred_check_branch
      %143 = sbr.rel (%p141) target = $region24
    $region23: #{mobilenet_v3_forward.20} parent=5 // pred_region
      // Predicated region
      $region25: #{mobilenet_v3_forward.20} parent=23 // pred_check
        %p144 = pneg %p43
      $region26: #{mobilenet_v3_forward.20} parent=23 // pred_check_branch
        %146 = sbr.rel (%p144) target = $region28
      $region27: #{mobilenet_v3_forward.20} parent=23 // pred_region
        %s147 = smul.u32 2, %s17
        %p148 = scmp.lt.s32.totalorder %s16, 1
        %s149 = scalar_select %p148, %s16, 1
        %p150 = scmp.lt.s32.totalorder %s147, 1
        %s151 = scalar_select %p150, %s147, 1
        %s152 = smul.addr %s149, 2
        %s153 = sadd.s32 %s151, %s152
        %s154 = smul.addr %s153, 4
        %s155 = scalar_lea.vmem %s0, %s154
        %s156 = smul.u32 2, %s17
      $region28: #{mobilenet_v3_forward.20} parent=23 // pred_fallthru
        _
    $region24: #{mobilenet_v3_forward.20} parent=5 // pred_fallthru
      _
    %p157 = scmp.le.s32.totalorder 1, %s9
    %p158 = scmp.lt.s32.totalorder %s9, 3
    %p159 = pnand %p157, %p158
    %p160 = pneg %p159
    // Predicated region
    $region29: #{mobilenet_v3_forward.20} parent=5 // pred_check
      _
    $region30: #{mobilenet_v3_forward.20} parent=5 // pred_check_branch
      %162 = sbr.rel (%p159) target = $region32
    $region31: #{mobilenet_v3_forward.20} parent=5 // pred_region
      %s163 = ssub.s32 %s9, 1
      %s164 = smul.u32 2, %s19
      %p165 = scmp.lt.s32.totalorder %s18, 1
      %s166 = scalar_select %p165, %s18, 1
      %p167 = scmp.lt.s32.totalorder %s164, 1
      %s168 = scalar_select %p167, %s164, 1
      %s169 = smul.addr %s166, 2
      %s170 = sadd.s32 %s168, %s169
      %s171 = smul.addr %s170, 4
      %s172 = scalar_lea.vmem %s0, %s171
      %p173 = pneg %p49
      %p174 = pneg %p46
      %p175 = pneg %p70
      %p176 = pneg %p67
      %p177 = pneg %p91
      %p178 = pneg %p88
      %p179 = pneg %p119
      %p180 = pneg %p116
      %s181 = smul.u32 2, %s19
      %p182 = scmp.lt.s32.totalorder %s18, 1
      %s183 = scalar_select %p182, %s18, 1
      %p184 = scmp.lt.s32.totalorder %s181, 1
      %s185 = scalar_select %p184, %s181, 1
      %s186 = smul.addr %s183, 2
      %s187 = sadd.s32 %s185, %s186
      %s188 = smul.addr %s187, 4
      %s189 = scalar_lea.vmem %s3, %s188
      %s190 = smul.u32 2, %s19
      %p191 = scmp.lt.s32.totalorder %s18, 1
      %s192 = scalar_select %p191, %s18, 1
      %p193 = scmp.lt.s32.totalorder %s190, 1
      %s194 = scalar_select %p193, %s190, 1
      %s195 = smul.addr %s192, 2
      %s196 = sadd.s32 %s194, %s195
      %s197 = smul.addr %s196, 4
      %s198 = scalar_lea.vmem %s0, %s197
      %s199 = smul.u32 2, %s19
      %s200 = smul.u32 2, %s19
      %p201 = scmp.lt.s32.totalorder %s18, 1
      %s202 = scalar_select %p201, %s18, 1
      %p203 = scmp.lt.s32.totalorder %s200, 1
      %s204 = scalar_select %p203, %s200, 1
      %s205 = smul.addr %s202, 2
      %s206 = sadd.s32 %s204, %s205
      %s207 = smul.addr %s206, 4
      %s208 = scalar_lea.vmem %s3, %s207
      %s209 = smul.u32 2, %s19
      %v210 = vld [vmem:[%s198] sm:$0xf]
      %v211 = vld [vmem:[%s198 + $0x4] sm:$0xf]
      %v212 = vld [vmem:[%s1] sm:$0xf]
      %v213 = vld [vmem:[%s1 + $0x4] sm:$0xf]
      %v214 = vld [vmem:[%s1 + $0x8] sm:$0xf]
      %v215 = vld [vmem:[%s1 + $0xc] sm:$0xf]
      %v216 = vld [vmem:[%s1 + $0x10] sm:$0xf]
      %v217 = vld [vmem:[%s1 + $0x14] sm:$0xf]
      %v218 = vld [vmem:[%s1 + $0x18] sm:$0xf]
      %v219 = vld [vmem:[%s1 + $0x1c] sm:$0xf]
      %v220 = vld [vmem:[%s1 + $0x20] sm:$0xf]
      %v221 = vld [vmem:[%s1 + $0x24] sm:$0xf]
      %v222 = vld [vmem:[%s1 + $0x28] sm:$0xf]
      %v223 = vld [vmem:[%s1 + $0x2c] sm:$0xf]
      %v224 = vld [vmem:[%s1 + $0x30] sm:$0xf]
      %v225 = vld [vmem:[%s1 + $0x34] sm:$0xf]
      %v226 = vld [vmem:[%s1 + $0x38] sm:$0xf]
      %v227 = vld [vmem:[%s1 + $0x3c] sm:$0xf]
      %v228 = vld [vmem:[%s2] sm:$0x1]
      %v230 = vperm.slane %v228, 0
      %v234 = vunpack.c.l.b16 %v210
      %v235 = vunpack.c.l.b16 %v211
      %v236 = vpack.c.b16 %v235, %v234
      %v254 = vunpack.c.l.b16 %v212
      %v255 = vunpack.c.l.b16 %v213
      %v256 = vunpack.c.l.b16 %v214
      %v257 = vunpack.c.l.b16 %v215
      %v258 = vunpack.c.l.b16 %v216
      %v259 = vunpack.c.l.b16 %v217
      %v260 = vunpack.c.l.b16 %v218
      %v261 = vunpack.c.l.b16 %v219
      %v262 = vunpack.c.l.b16 %v220
      %v263 = vunpack.c.l.b16 %v221
      %v264 = vunpack.c.l.b16 %v222
      %v265 = vunpack.c.l.b16 %v223
      %v266 = vunpack.c.l.b16 %v224
      %v267 = vunpack.c.l.b16 %v225
      %v268 = vunpack.c.l.b16 %v226
      %v269 = vunpack.c.l.b16 %v227
      %v270 = vpack.c.b16 %v255, %v254
      %v271 = vpack.c.b16 %v257, %v256
      %v272 = vpack.c.b16 %v259, %v258
      %v273 = vpack.c.b16 %v261, %v260
      %v274 = vpack.c.b16 %v263, %v262
      %v275 = vpack.c.b16 %v265, %v264
      %v276 = vpack.c.b16 %v267, %v266
      %v277 = vpack.c.b16 %v269, %v268
      %286 = vmatpush.bf16.msra.mxu0 %v277
      %287 = vmatpush.bf16.msra.mxu0 %v276
      %288 = vmatpush.bf16.msra.mxu0 %v275
      %289 = vmatpush.bf16.msra.mxu0 %v274
      %290 = vmatpush.bf16.msra.mxu0 %v273
      %291 = vmatpush.bf16.msra.mxu0 %v272
      %292 = vmatpush.bf16.msra.mxu0 %v271
      %293 = vmatpush.bf16.msra.mxu0 %v270
      %294 = vmatmul.bf16.gmra.mxu0 %v236
      %v295 = vpop.f32.mrf.mxu0
      %v296 = vadd.f32 %v230, %v295
      %v297 = vpop.f32.mrf.mxu0
      %v298 = vadd.f32 %v230, %v297
      %299 = vdwg.mxu0
      %v300 = vpack.c.bf16 %v296, %v296
      %v301 = vpack.c.bf16 %v298, %v298
      %302 = vst [vmem:[%s208] sm:$0xf] %v300
      %303 = vst [vmem:[%s208 + $0x4] sm:$0xf] %v301
      %s304 = smul.u32 2, %s19
      %p305 = scmp.lt.s32.totalorder %s18, 1
      %s306 = scalar_select %p305, %s18, 1
      %p307 = scmp.lt.s32.totalorder %s304, 1
      %s308 = scalar_select %p307, %s304, 1
      %s309 = smul.addr %s306, 2
      %s310 = sadd.s32 %s308, %s309
      %s311 = smul.addr %s310, 4
      %s312 = scalar_lea.vmem %s3, %s311
      // Predicated region
      $region33: #{mobilenet_v3_forward.20} parent=31 // pred_check
        %p313 = pneg %p116
      $region34: #{mobilenet_v3_forward.20} parent=31 // pred_check_branch
        %315 = sbr.rel (%p313) target = $region36
      $region35: #{mobilenet_v3_forward.20} parent=31 // pred_region
        %s316 = smul.u32 2, %s19
      $region36: #{mobilenet_v3_forward.20} parent=31 // pred_fallthru
        _
    $region32: #{mobilenet_v3_forward.20} parent=5 // pred_fallthru
      _
    %p317 = scmp.le.s32.totalorder 2, %s9
    // Predicated region
    $region37: #{mobilenet_v3_forward.20} parent=5 // pred_check
      %p318 = pneg %p317
    $region38: #{mobilenet_v3_forward.20} parent=5 // pred_check_branch
      %320 = sbr.rel (%p318) target = $region40
    $region39: #{mobilenet_v3_forward.20} parent=5 // pred_region
      %s321 = ssub.s32 %s9, 2
      // Predicated region
      $region41: #{mobilenet_v3_forward.20} parent=39 // pred_check
        %p322 = pneg %p122
      $region42: #{mobilenet_v3_forward.20} parent=39 // pred_check_branch
        %324 = sbr.rel (%p322) target = $region44
      $region43: #{mobilenet_v3_forward.20} parent=39 // pred_region
        %s325 = smul.u32 2, %s21
        %p326 = scmp.lt.s32.totalorder %s20, 1
        %s327 = scalar_select %p326, %s20, 1
        %p328 = scmp.lt.s32.totalorder %s325, 1
        %s329 = scalar_select %p328, %s325, 1
        %s330 = smul.addr %s327, 2
        %s331 = sadd.s32 %s329, %s330
        %s332 = smul.addr %s331, 4
        %s333 = scalar_lea.vmem %s3, %s332
      $region44: #{mobilenet_v3_forward.20} parent=39 // pred_fallthru
        _
    $region40: #{mobilenet_v3_forward.20} parent=5 // pred_fallthru
      _
  $region6: #{mobilenet_v3_forward.20} parent=0 // loop_footer
    %s13 = sadd.s32 1, %s9
  $region7: #{mobilenet_v3_forward.20} parent=0 // loop_footer_branch
    %8 = sbr.rel target = $region3
  $region8: #{mobilenet_v3_forward.20} parent=0 // loop_exit
    _

// kernel: mobilenet_v3_forward.19
$region0: #{mobilenet_v3_forward.19}
  #allocation0 [shape = 'u32[]', space=smem, size = 0x4, offset = 0x4, fixed_abs, tag = 'smem constant byte address 0x4 - core index']
  #allocation1 [shape = 'u32[72,128]{1,0:T(1,128)}', space=vmem, size = 0x9000, scoped, tag = 'internal scratch']
  #allocation2 [shape = 'f32[16,128]{1,0:T(8,128)}', space=vmem, size = 0x2000, scoped, tag = 'scratch operand']
  %s0 = inlined_call_operand.vmem [shape: bf16[9,2,16,128], index: 0, kind: input, shape index: {}]
  %s1 = inlined_call_operand.vmem [shape: f32[9,1,128], index: 1, kind: input, shape index: {}]
  %s2 = inlined_call_operand.vmem [shape: f32[1,128], index: 2, kind: input, shape index: {}]
  %s3 = inlined_call_operand.vmem [shape: bf16[2,16,128], index: 3, kind: output, shape index: {}]
  %s4 = sld [smem:[#allocation0]]
  $region53: #{mobilenet_v3_forward.19} parent=0
    _
  %s6 = ssub.s32 1, %s4
  %s7 = scalar_select 0, %s6, %s4
  loop: start=0, step=1, limit=20
  $region2: #{mobilenet_v3_forward.19} parent=0 // loop_pre_header
    _
  $region3: #{mobilenet_v3_forward.19} parent=0 // loop_header
    %s9 = sphi 0, %s13
    %p10 = scmp.ge.s32.totalorder %s9, 20
    %s16 = sphi 0, %s35
    %s17 = sphi 0, %s31
    %s18 = sphi 0, %s27
    %s19 = sphi 0, %s16
    %s20 = sphi 0, %s17
    %s21 = sphi 0, %s18
    %s22 = sphi 0, %s19
    %s23 = sphi 0, %s20
    %s24 = sphi 0, %s21
    %s42 = sphi 0, %s44
    %s45 = sphi 0, %s42
    %s46 = sphi 0, %s45
    %s62 = sphi 0, %s46
    %s68 = sphi 0, %s70
    %s71 = sphi 0, %s68
    %s72 = sphi 0, %s71
    %s88 = sphi 0, %s72
    %s92 = sphi 0, %s92
    %s94 = sphi 0, %s92
    %s95 = sphi 0, %s94
    %s109 = sphi 0, %s95
    %s117 = sphi 0, %s119
    %s120 = sphi 0, %s117
    %s121 = sphi 0, %s120
    %s137 = sphi 0, %s121
  $region4: #{mobilenet_v3_forward.19} parent=0 // loop_header_branch
    %12 = sbr.rel (%p10) target = $region8
  $region5: #{mobilenet_v3_forward.19} parent=0 // loop_body
    %s14 = ssub.s32 %s9, 1
    %s15 = ssub.s32 %s9, 2
    %s25 = sadd.s32 1, %s18
    %p26 = scmp.ge.s32.totalorder %s25, 9
    %s27 = scalar_select %p26, 0, %s25
    %s28 = sadd.s32 1, %s17
    %s29 = scalar_select %p26, %s28, %s17
    %p30 = scmp.ge.s32.totalorder %s29, 1
    %s31 = scalar_select %p30, 0, %s29
    %s32 = sadd.s32 1, %s16
    %s33 = scalar_select %p30, %s32, %s16
    %p34 = scmp.ge.s32.totalorder %s33, 2
    %s35 = scalar_select %p34, 0, %s33
    %s36 = ssub.s32 %s18, %s27
    %s37 = ssub.s32 %s16, %s35
    %s38 = sor.u32 %s36, %s37
    %s39 = ssub.s32 %s17, %s31
    %s40 = sor.u32 %s38, %s39
    %p41 = scmp.eq.s32.totalorder %s40, 0
    %s43 = sadd.s32 %s42, 1
    %s44 = scalar_select %p41, %s42, %s43
    %p47 = pneg %p41
    %p48 = scmp.eq.s32.totalorder %s9, 17
    %p49 = por %p47, %p48
    %p50 = scmp.ne.s32.totalorder %s42, %s45
    %p51 = scmp.eq.s32.totalorder %s9, 0
    %p52 = por %p50, %p51
    %p53 = scmp.ne.s32.totalorder %s42, %s45
    %p54 = scmp.eq.s32.totalorder %s14, 17
    %p55 = por %p53, %p54
    %p56 = scmp.ne.s32.totalorder %s45, %s46
    %p57 = scmp.eq.s32.totalorder %s14, 0
    %p58 = por %p56, %p57
    %p59 = scmp.ne.s32.totalorder %s45, %s46
    %p60 = scmp.eq.s32.totalorder %s15, 17
    %p61 = por %p59, %p60
    %p63 = scmp.ne.s32.totalorder %s46, %s62
    %p64 = scmp.eq.s32.totalorder %s15, 0
    %p65 = por %p63, %p64
    %s66 = ssub.s32 %s18, %s27
    %p67 = scmp.eq.s32.totalorder %s66, 0
    %s69 = sadd.s32 %s68, 1
    %s70 = scalar_select %p67, %s68, %s69
    %p73 = pneg %p67
    %p74 = scmp.eq.s32.totalorder %s9, 17
    %p75 = por %p73, %p74
    %p76 = scmp.ne.s32.totalorder %s68, %s71
    %p77 = scmp.eq.s32.totalorder %s9, 0
    %p78 = por %p76, %p77
    %p79 = scmp.ne.s32.totalorder %s68, %s71
    %p80 = scmp.eq.s32.totalorder %s14, 17
    %p81 = por %p79, %p80
    %p82 = scmp.ne.s32.totalorder %s71, %s72
    %p83 = scmp.eq.s32.totalorder %s14, 0
    %p84 = por %p82, %p83
    %p85 = scmp.ne.s32.totalorder %s71, %s72
    %p86 = scmp.eq.s32.totalorder %s15, 17
    %p87 = por %p85, %p86
    %p89 = scmp.ne.s32.totalorder %s72, %s88
    %p90 = scmp.eq.s32.totalorder %s15, 0
    %p91 = por %p89, %p90
    %s93 = sadd.s32 %s92, 1
    %p96 = scmp.eq.s32.totalorder %s9, 17
    %p97 = scmp.ne.s32.totalorder %s92, %s94
    %p98 = scmp.eq.s32.totalorder %s9, 0
    %p99 = por %p97, %p98
    %p100 = scmp.ne.s32.totalorder %s92, %s94
    %p101 = scmp.eq.s32.totalorder %s14, 17
    %p102 = por %p100, %p101
    %p103 = scmp.ne.s32.totalorder %s94, %s95
    %p104 = scmp.eq.s32.totalorder %s14, 0
    %p105 = por %p103, %p104
    %p106 = scmp.ne.s32.totalorder %s94, %s95
    %p107 = scmp.eq.s32.totalorder %s15, 17
    %p108 = por %p106, %p107
    %p110 = scmp.ne.s32.totalorder %s95, %s109
    %p111 = scmp.eq.s32.totalorder %s15, 0
    %p112 = por %p110, %p111
    %s113 = ssub.s32 %s16, %s35
    %s114 = ssub.s32 %s17, %s31
    %s115 = sor.u32 %s113, %s114
    %p116 = scmp.eq.s32.totalorder %s115, 0
    %s118 = sadd.s32 %s117, 1
    %s119 = scalar_select %p116, %s117, %s118
    %p122 = pneg %p116
    %p123 = scmp.eq.s32.totalorder %s9, 17
    %p124 = por %p122, %p123
    %p125 = scmp.ne.s32.totalorder %s117, %s120
    %p126 = scmp.eq.s32.totalorder %s9, 0
    %p127 = por %p125, %p126
    %p128 = scmp.ne.s32.totalorder %s117, %s120
    %p129 = scmp.eq.s32.totalorder %s14, 17
    %p130 = por %p128, %p129
    %p131 = scmp.ne.s32.totalorder %s120, %s121
    %p132 = scmp.eq.s32.totalorder %s14, 0
    %p133 = por %p131, %p132
    %p134 = scmp.ne.s32.totalorder %s120, %s121
    %p135 = scmp.eq.s32.totalorder %s15, 17
    %p136 = por %p134, %p135
    %p138 = scmp.ne.s32.totalorder %s121, %s137
    %p139 = scmp.eq.s32.totalorder %s15, 0
    %p140 = por %p138, %p139
    %p141 = scmp.le.s32.totalorder 1, %s9
    %p142 = scmp.lt.s32.totalorder %s9, 19
    %p143 = pnand %p141, %p142
    %p144 = pneg %p143
    // Predicated region
    $region9: #{mobilenet_v3_forward.19} parent=5 // pred_check
      _
    $region10: #{mobilenet_v3_forward.19} parent=5 // pred_check_branch
      %146 = sbr.rel (%p143) target = $region12
    $region11: #{mobilenet_v3_forward.19} parent=5 // pred_region
      %s147 = ssub.s32 %s9, 1
      // Predicated region
      $region13: #{mobilenet_v3_forward.19} parent=11 // pred_check
        %p148 = pneg %p105
      $region14: #{mobilenet_v3_forward.19} parent=11 // pred_check_branch
        %150 = sbr.rel (%p148) target = $region16
      $region15: #{mobilenet_v3_forward.19} parent=11 // pred_region
        _
      $region16: #{mobilenet_v3_forward.19} parent=11 // pred_fallthru
        _
    $region12: #{mobilenet_v3_forward.19} parent=5 // pred_fallthru
      _
    %p151 = scmp.lt.s32.totalorder %s9, 18
    // Predicated region
    $region17: #{mobilenet_v3_forward.19} parent=5 // pred_check
      %p152 = pneg %p151
    $region18: #{mobilenet_v3_forward.19} parent=5 // pred_check_branch
      %154 = sbr.rel (%p152) target = $region20
    $region19: #{mobilenet_v3_forward.19} parent=5 // pred_region
      // Predicated region
      $region21: #{mobilenet_v3_forward.19} parent=19 // pred_check
        %p155 = pneg %p52
      $region22: #{mobilenet_v3_forward.19} parent=19 // pred_check_branch
        %157 = sbr.rel (%p155) target = $region24
      $region23: #{mobilenet_v3_forward.19} parent=19 // pred_region
        %s158 = smul.u32 2, %s17
        %p159 = scmp.lt.s32.totalorder %s18, 8
        %s160 = scalar_select %p159, %s18, 8
        %p161 = scmp.lt.s32.totalorder %s16, 1
        %s162 = scalar_select %p161, %s16, 1
        %p163 = scmp.lt.s32.totalorder %s158, 1
        %s164 = scalar_select %p163, %s158, 1
        %s165 = smul.addr %s162, 2
        %s166 = sadd.s32 %s164, %s165
        %s167 = smul.addr %s160, 4
        %s168 = sadd.s32 %s166, %s167
        %s169 = smul.addr %s168, 4
        %s170 = scalar_lea.vmem %s0, %s169
        %s171 = smul.u32 2, %s17
      $region24: #{mobilenet_v3_forward.19} parent=19 // pred_fallthru
        _
      // Predicated region
      $region25: #{mobilenet_v3_forward.19} parent=19 // pred_check
        %p172 = pneg %p78
      $region26: #{mobilenet_v3_forward.19} parent=19 // pred_check_branch
        %174 = sbr.rel (%p172) target = $region28
      $region27: #{mobilenet_v3_forward.19} parent=19 // pred_region
        %p175 = scmp.lt.s32.totalorder %s18, 8
        %s176 = scalar_select %p175, %s18, 8
        %s177 = scalar_lea.vmem %s1, %s176
      $region28: #{mobilenet_v3_forward.19} parent=19 // pred_fallthru
        _
    $region20: #{mobilenet_v3_forward.19} parent=5 // pred_fallthru
      _
    %p178 = scmp.le.s32.totalorder 1, %s9
    %p179 = scmp.lt.s32.totalorder %s9, 19
    %p180 = pnand %p178, %p179
    %p181 = pneg %p180
    // Predicated region
    $region29: #{mobilenet_v3_forward.19} parent=5 // pred_check
      _
    $region30: #{mobilenet_v3_forward.19} parent=5 // pred_check_branch
      %183 = sbr.rel (%p180) target = $region32
    $region31: #{mobilenet_v3_forward.19} parent=5 // pred_region
      %s184 = ssub.s32 %s9, 1
      %s185 = smul.u32 2, %s20
      %p186 = scmp.lt.s32.totalorder %s21, 8
      %s187 = scalar_select %p186, %s21, 8
      %p188 = scmp.lt.s32.totalorder %s19, 1
      %s189 = scalar_select %p188, %s19, 1
      %p190 = scmp.lt.s32.totalorder %s185, 1
      %s191 = scalar_select %p190, %s185, 1
      %s192 = smul.addr %s189, 2
      %s193 = sadd.s32 %s191, %s192
      %s194 = smul.addr %s187, 4
      %s195 = sadd.s32 %s193, %s194
      %s196 = smul.addr %s195, 4
      %s197 = scalar_lea.vmem %s0, %s196
      %p198 = pneg %p58
      %p199 = pneg %p55
      %p200 = scmp.lt.s32.totalorder %s21, 8
      %s201 = scalar_select %p200, %s21, 8
      %s202 = scalar_lea.vmem %s1, %s201
      %p203 = pneg %p84
      %p204 = pneg %p81
      %p205 = pneg %p105
      %p206 = pneg %p102
      %p207 = pneg %p133
      %p208 = pneg %p130
      %s209 = smul.u32 2, %s20
      %p210 = scmp.lt.s32.totalorder %s19, 1
      %s211 = scalar_select %p210, %s19, 1
      %p212 = scmp.lt.s32.totalorder %s209, 1
      %s213 = scalar_select %p212, %s209, 1
      %s214 = smul.addr %s211, 2
      %s215 = sadd.s32 %s213, %s214
      %s216 = smul.addr %s215, 4
      %s217 = scalar_lea.vmem %s3, %s216
      %s218 = smul.u32 2, %s20
      %p219 = scmp.lt.s32.totalorder %s21, 8
      %s220 = scalar_select %p219, %s21, 8
      %p221 = scmp.lt.s32.totalorder %s19, 1
      %s222 = scalar_select %p221, %s19, 1
      %p223 = scmp.lt.s32.totalorder %s218, 1
      %s224 = scalar_select %p223, %s218, 1
      %s225 = smul.addr %s222, 2
      %s226 = sadd.s32 %s224, %s225
      %s227 = smul.addr %s220, 4
      %s228 = sadd.s32 %s226, %s227
      %s229 = smul.addr %s228, 4
      %s230 = scalar_lea.vmem %s0, %s229
      %s231 = smul.u32 2, %s20
      %p232 = scmp.lt.s32.totalorder %s21, 8
      %s233 = scalar_select %p232, %s21, 8
      %s234 = scalar_lea.vmem %s1, %s233
      %s235 = smul.u32 2, %s20
      %p236 = scmp.lt.s32.totalorder %s19, 1
      %s237 = scalar_select %p236, %s19, 1
      %p238 = scmp.lt.s32.totalorder %s235, 1
      %s239 = scalar_select %p238, %s235, 1
      %s240 = smul.addr %s237, 2
      %s241 = sadd.s32 %s239, %s240
      %s242 = smul.addr %s241, 4
      %s243 = scalar_lea.vmem %s3, %s242
      %s244 = smul.u32 2, %s20
      %p245 = scmp.eq.s32.totalorder %s21, 0
      // Predicated region
      $region33: #{mobilenet_v3_forward.19} parent=31 // pred_check
        %p246 = pneg %p245
      $region34: #{mobilenet_v3_forward.19} parent=31 // pred_check_branch
        %248 = sbr.rel (%p246) target = $region36
      $region35: #{mobilenet_v3_forward.19} parent=31 // pred_region
        %249 = vst [vmem:[#allocation2] sm:$0xff] 0.0
        %250 = vst [vmem:[#allocation2 + $0x8] sm:$0xff] 0.0
      $region36: #{mobilenet_v3_forward.19} parent=31 // pred_fallthru
        _
      %v251 = vld [vmem:[#allocation2] sm:$0xff]
      %v252 = vld [vmem:[#allocation2 + $0x8] sm:$0xff]
      %v253 = vld [vmem:[%s230] sm:$0xf]
      %v254 = vld [vmem:[%s230 + $0x4] sm:$0xf]
      %v255 = vunpack.c.l.bf16 %v253
      %v256 = vunpack.c.l.bf16 %v254
      %v257 = vld [vmem:[%s234] sm:$0x1]
      %v259 = vperm.slane %v257, 0
      %v261 = vmul.f32 %v255, %v259
      %v262 = vmul.f32 %v256, %v259
      %v263 = vadd.f32 %v251, %v261
      %v264 = vadd.f32 %v252, %v262
      %265 = vst [vmem:[#allocation2] sm:$0xff] %v263
      %266 = vst [vmem:[#allocation2 + $0x8] sm:$0xff] %v264
      %p267 = scmp.eq.s32.totalorder %s21, 8
      // Predicated region
      $region37: #{mobilenet_v3_forward.19} parent=31 // pred_check
        %p268 = pneg %p267
      $region38: #{mobilenet_v3_forward.19} parent=31 // pred_check_branch
        %270 = sbr.rel (%p268) target = $region40
      $region39: #{mobilenet_v3_forward.19} parent=31 // pred_region
        %v271 = vld [vmem:[#allocation2] sm:$0xff]
        %v272 = vld [vmem:[#allocation2 + $0x8] sm:$0xff]
        %v273 = vld [vmem:[%s2] sm:$0x1]
        %v275 = vperm.slane %v273, 0
        %v277 = vadd.f32 %v271, %v275
        %v278 = vadd.f32 %v272, %v275
        %v279 = vmax.f32 %v277, 0.0
        %v280 = vmax.f32 %v278, 0.0
        %v281 = vpack.c.bf16 %v279, %v279
        %v282 = vpack.c.bf16 %v280, %v280
        %283 = vst [vmem:[%s243] sm:$0xf] %v281
        %284 = vst [vmem:[%s243 + $0x4] sm:$0xf] %v282
      $region40: #{mobilenet_v3_forward.19} parent=31 // pred_fallthru
        _
      %s285 = smul.u32 2, %s20
      %p286 = scmp.lt.s32.totalorder %s19, 1
      %s287 = scalar_select %p286, %s19, 1
      %p288 = scmp.lt.s32.totalorder %s285, 1
      %s289 = scalar_select %p288, %s285, 1
      %s290 = smul.addr %s287, 2
      %s291 = sadd.s32 %s289, %s290
      %s292 = smul.addr %s291, 4
      %s293 = scalar_lea.vmem %s3, %s292
      // Predicated region
      $region41: #{mobilenet_v3_forward.19} parent=31 // pred_check
        %p294 = pneg %p130
      $region42: #{mobilenet_v3_forward.19} parent=31 // pred_check_branch
        %296 = sbr.rel (%p294) target = $region44
      $region43: #{mobilenet_v3_forward.19} parent=31 // pred_region
        %s297 = smul.u32 2, %s20
      $region44: #{mobilenet_v3_forward.19} parent=31 // pred_fallthru
        _
    $region32: #{mobilenet_v3_forward.19} parent=5 // pred_fallthru
      _
    %p298 = scmp.le.s32.totalorder 2, %s9
    // Predicated region
    $region45: #{mobilenet_v3_forward.19} parent=5 // pred_check
      %p299 = pneg %p298
    $region46: #{mobilenet_v3_forward.19} parent=5 // pred_check_branch
      %301 = sbr.rel (%p299) target = $region48
    $region47: #{mobilenet_v3_forward.19} parent=5 // pred_region
      %s302 = ssub.s32 %s9, 2
      // Predicated region
      $region49: #{mobilenet_v3_forward.19} parent=47 // pred_check
        %p303 = pneg %p136
      $region50: #{mobilenet_v3_forward.19} parent=47 // pred_check_branch
        %305 = sbr.rel (%p303) target = $region52
      $region51: #{mobilenet_v3_forward.19} parent=47 // pred_region
        %s306 = smul.u32 2, %s23
        %p307 = scmp.lt.s32.totalorder %s22, 1
        %s308 = scalar_select %p307, %s22, 1
        %p309 = scmp.lt.s32.totalorder %s306, 1
        %s310 = scalar_select %p309, %s306, 1
        %s311 = smul.addr %s308, 2
        %s312 = sadd.s32 %s310, %s311
        %s313 = smul.addr %s312, 4
        %s314 = scalar_lea.vmem %s3, %s313
      $region52: #{mobilenet_v3_forward.19} parent=47 // pred_fallthru
        _
    $region48: #{mobilenet_v3_forward.19} parent=5 // pred_fallthru
      _
  $region6: #{mobilenet_v3_forward.19} parent=0 // loop_footer
    %s13 = sadd.s32 1, %s9
  $region7: #{mobilenet_v3_forward.19} parent=0 // loop_footer_branch
    %8 = sbr.rel target = $region3
  $region8: #{mobilenet_v3_forward.19} parent=0 // loop_exit
    _

// kernel: mobilenet_v3_forward.21
$region0: #{mobilenet_v3_forward.21}
  #allocation0 [shape = 'u32[]', space=smem, size = 0x4, offset = 0x4, fixed_abs, tag = 'smem constant byte address 0x4 - core index']
  #allocation1 [shape = 'u32[72,128]{1,0:T(1,128)}', space=vmem, size = 0x9000, scoped, tag = 'internal scratch']
  %s0 = inlined_call_operand.vmem [shape: bf16[2,16,128], index: 0, kind: input, shape index: {}]
  %s1 = inlined_call_operand.vmem [shape: bf16[128,128], index: 1, kind: input, shape index: {}]
  %s2 = inlined_call_operand.vmem [shape: f32[1,128], index: 2, kind: input, shape index: {}]
  %s3 = inlined_call_operand.vmem [shape: bf16[2,16,128], index: 3, kind: output, shape index: {}]
  %s4 = sld [smem:[#allocation0]]
  $region45: #{mobilenet_v3_forward.21} parent=0
    _
  %s6 = ssub.s32 1, %s4
  %s7 = scalar_select 0, %s6, %s4
  loop: start=0, step=1, limit=4
  $region2: #{mobilenet_v3_forward.21} parent=0 // loop_pre_header
    _
  $region3: #{mobilenet_v3_forward.21} parent=0 // loop_header
    %s9 = sphi 0, %s13
    %p10 = scmp.ge.s32.totalorder %s9, 4
    %s16 = sphi 0, %s28
    %s17 = sphi 0, %s24
    %s18 = sphi 0, %s16
    %s19 = sphi 0, %s17
    %s20 = sphi 0, %s18
    %s21 = sphi 0, %s19
    %s33 = sphi 0, %s35
    %s36 = sphi 0, %s33
    %s37 = sphi 0, %s36
    %s53 = sphi 0, %s37
    %s57 = sphi 0, %s57
    %s59 = sphi 0, %s57
    %s60 = sphi 0, %s59
    %s74 = sphi 0, %s60
    %s78 = sphi 0, %s78
    %s80 = sphi 0, %s78
    %s81 = sphi 0, %s80
    %s95 = sphi 0, %s81
    %s103 = sphi 0, %s105
    %s106 = sphi 0, %s103
    %s107 = sphi 0, %s106
    %s123 = sphi 0, %s107
  $region4: #{mobilenet_v3_forward.21} parent=0 // loop_header_branch
    %12 = sbr.rel (%p10) target = $region8
  $region5: #{mobilenet_v3_forward.21} parent=0 // loop_body
    %s14 = ssub.s32 %s9, 1
    %s15 = ssub.s32 %s9, 2
    %s22 = sadd.s32 1, %s17
    %p23 = scmp.ge.s32.totalorder %s22, 1
    %s24 = scalar_select %p23, 0, %s22
    %s25 = sadd.s32 1, %s16
    %s26 = scalar_select %p23, %s25, %s16
    %p27 = scmp.ge.s32.totalorder %s26, 2
    %s28 = scalar_select %p27, 0, %s26
    %s29 = ssub.s32 %s16, %s28
    %s30 = ssub.s32 %s17, %s24
    %s31 = sor.u32 %s29, %s30
    %p32 = scmp.eq.s32.totalorder %s31, 0
    %s34 = sadd.s32 %s33, 1
    %s35 = scalar_select %p32, %s33, %s34
    %p38 = pneg %p32
    %p39 = scmp.eq.s32.totalorder %s9, 1
    %p40 = por %p38, %p39
    %p41 = scmp.ne.s32.totalorder %s33, %s36
    %p42 = scmp.eq.s32.totalorder %s9, 0
    %p43 = por %p41, %p42
    %p44 = scmp.ne.s32.totalorder %s33, %s36
    %p45 = scmp.eq.s32.totalorder %s14, 1
    %p46 = por %p44, %p45
    %p47 = scmp.ne.s32.totalorder %s36, %s37
    %p48 = scmp.eq.s32.totalorder %s14, 0
    %p49 = por %p47, %p48
    %p50 = scmp.ne.s32.totalorder %s36, %s37
    %p51 = scmp.eq.s32.totalorder %s15, 1
    %p52 = por %p50, %p51
    %p54 = scmp.ne.s32.totalorder %s37, %s53
    %p55 = scmp.eq.s32.totalorder %s15, 0
    %p56 = por %p54, %p55
    %s58 = sadd.s32 %s57, 1
    %p61 = scmp.eq.s32.totalorder %s9, 1
    %p62 = scmp.ne.s32.totalorder %s57, %s59
    %p63 = scmp.eq.s32.totalorder %s9, 0
    %p64 = por %p62, %p63
    %p65 = scmp.ne.s32.totalorder %s57, %s59
    %p66 = scmp.eq.s32.totalorder %s14, 1
    %p67 = por %p65, %p66
    %p68 = scmp.ne.s32.totalorder %s59, %s60
    %p69 = scmp.eq.s32.totalorder %s14, 0
    %p70 = por %p68, %p69
    %p71 = scmp.ne.s32.totalorder %s59, %s60
    %p72 = scmp.eq.s32.totalorder %s15, 1
    %p73 = por %p71, %p72
    %p75 = scmp.ne.s32.totalorder %s60, %s74
    %p76 = scmp.eq.s32.totalorder %s15, 0
    %p77 = por %p75, %p76
    %s79 = sadd.s32 %s78, 1
    %p82 = scmp.eq.s32.totalorder %s9, 1
    %p83 = scmp.ne.s32.totalorder %s78, %s80
    %p84 = scmp.eq.s32.totalorder %s9, 0
    %p85 = por %p83, %p84
    %p86 = scmp.ne.s32.totalorder %s78, %s80
    %p87 = scmp.eq.s32.totalorder %s14, 1
    %p88 = por %p86, %p87
    %p89 = scmp.ne.s32.totalorder %s80, %s81
    %p90 = scmp.eq.s32.totalorder %s14, 0
    %p91 = por %p89, %p90
    %p92 = scmp.ne.s32.totalorder %s80, %s81
    %p93 = scmp.eq.s32.totalorder %s15, 1
    %p94 = por %p92, %p93
    %p96 = scmp.ne.s32.totalorder %s81, %s95
    %p97 = scmp.eq.s32.totalorder %s15, 0
    %p98 = por %p96, %p97
    %s99 = ssub.s32 %s16, %s28
    %s100 = ssub.s32 %s17, %s24
    %s101 = sor.u32 %s99, %s100
    %p102 = scmp.eq.s32.totalorder %s101, 0
    %s104 = sadd.s32 %s103, 1
    %s105 = scalar_select %p102, %s103, %s104
    %p108 = pneg %p102
    %p109 = scmp.eq.s32.totalorder %s9, 1
    %p110 = por %p108, %p109
    %p111 = scmp.ne.s32.totalorder %s103, %s106
    %p112 = scmp.eq.s32.totalorder %s9, 0
    %p113 = por %p111, %p112
    %p114 = scmp.ne.s32.totalorder %s103, %s106
    %p115 = scmp.eq.s32.totalorder %s14, 1
    %p116 = por %p114, %p115
    %p117 = scmp.ne.s32.totalorder %s106, %s107
    %p118 = scmp.eq.s32.totalorder %s14, 0
    %p119 = por %p117, %p118
    %p120 = scmp.ne.s32.totalorder %s106, %s107
    %p121 = scmp.eq.s32.totalorder %s15, 1
    %p122 = por %p120, %p121
    %p124 = scmp.ne.s32.totalorder %s107, %s123
    %p125 = scmp.eq.s32.totalorder %s15, 0
    %p126 = por %p124, %p125
    %p127 = scmp.le.s32.totalorder 1, %s9
    %p128 = scmp.lt.s32.totalorder %s9, 3
    %p129 = pnand %p127, %p128
    %p130 = pneg %p129
    // Predicated region
    $region9: #{mobilenet_v3_forward.21} parent=5 // pred_check
      _
    $region10: #{mobilenet_v3_forward.21} parent=5 // pred_check_branch
      %132 = sbr.rel (%p129) target = $region12
    $region11: #{mobilenet_v3_forward.21} parent=5 // pred_region
      %s133 = ssub.s32 %s9, 1
      // Predicated region
      $region13: #{mobilenet_v3_forward.21} parent=11 // pred_check
        %p134 = pneg %p70
      $region14: #{mobilenet_v3_forward.21} parent=11 // pred_check_branch
        %136 = sbr.rel (%p134) target = $region16
      $region15: #{mobilenet_v3_forward.21} parent=11 // pred_region
        _
      $region16: #{mobilenet_v3_forward.21} parent=11 // pred_fallthru
        _
      // Predicated region
      $region17: #{mobilenet_v3_forward.21} parent=11 // pred_check
        %p137 = pneg %p91
      $region18: #{mobilenet_v3_forward.21} parent=11 // pred_check_branch
        %139 = sbr.rel (%p137) target = $region20
      $region19: #{mobilenet_v3_forward.21} parent=11 // pred_region
        _
      $region20: #{mobilenet_v3_forward.21} parent=11 // pred_fallthru
        _
    $region12: #{mobilenet_v3_forward.21} parent=5 // pred_fallthru
      _
    %p140 = scmp.lt.s32.totalorder %s9, 2
    // Predicated region
    $region21: #{mobilenet_v3_forward.21} parent=5 // pred_check
      %p141 = pneg %p140
    $region22: #{mobilenet_v3_forward.21} parent=5 // pred_check_branch
      %143 = sbr.rel (%p141) target = $region24
    $region23: #{mobilenet_v3_forward.21} parent=5 // pred_region
      // Predicated region
      $region25: #{mobilenet_v3_forward.21} parent=23 // pred_check
        %p144 = pneg %p43
      $region26: #{mobilenet_v3_forward.21} parent=23 // pred_check_branch
        %146 = sbr.rel (%p144) target = $region28
      $region27: #{mobilenet_v3_forward.21} parent=23 // pred_region
        %s147 = smul.u32 2, %s17
        %p148 = scmp.lt.s32.totalorder %s16, 1
        %s149 = scalar_select %p148, %s16, 1
        %p150 = scmp.lt.s32.totalorder %s147, 1
        %s151 = scalar_select %p150, %s147, 1
        %s152 = smul.addr %s149, 2
        %s153 = sadd.s32 %s151, %s152
        %s154 = smul.addr %s153, 4
        %s155 = scalar_lea.vmem %s0, %s154
        %s156 = smul.u32 2, %s17
      $region28: #{mobilenet_v3_forward.21} parent=23 // pred_fallthru
        _
    $region24: #{mobilenet_v3_forward.21} parent=5 // pred_fallthru
      _
    %p157 = scmp.le.s32.totalorder 1, %s9
    %p158 = scmp.lt.s32.totalorder %s9, 3
    %p159 = pnand %p157, %p158
    %p160 = pneg %p159
    // Predicated region
    $region29: #{mobilenet_v3_forward.21} parent=5 // pred_check
      _
    $region30: #{mobilenet_v3_forward.21} parent=5 // pred_check_branch
      %162 = sbr.rel (%p159) target = $region32
    $region31: #{mobilenet_v3_forward.21} parent=5 // pred_region
      %s163 = ssub.s32 %s9, 1
      %s164 = smul.u32 2, %s19
      %p165 = scmp.lt.s32.totalorder %s18, 1
      %s166 = scalar_select %p165, %s18, 1
      %p167 = scmp.lt.s32.totalorder %s164, 1
      %s168 = scalar_select %p167, %s164, 1
      %s169 = smul.addr %s166, 2
      %s170 = sadd.s32 %s168, %s169
      %s171 = smul.addr %s170, 4
      %s172 = scalar_lea.vmem %s0, %s171
      %p173 = pneg %p49
      %p174 = pneg %p46
      %p175 = pneg %p70
      %p176 = pneg %p67
      %p177 = pneg %p91
      %p178 = pneg %p88
      %p179 = pneg %p119
      %p180 = pneg %p116
      %s181 = smul.u32 2, %s19
      %p182 = scmp.lt.s32.totalorder %s18, 1
      %s183 = scalar_select %p182, %s18, 1
      %p184 = scmp.lt.s32.totalorder %s181, 1
      %s185 = scalar_select %p184, %s181, 1
      %s186 = smul.addr %s183, 2
      %s187 = sadd.s32 %s185, %s186
      %s188 = smul.addr %s187, 4
      %s189 = scalar_lea.vmem %s3, %s188
      %s190 = smul.u32 2, %s19
      %p191 = scmp.lt.s32.totalorder %s18, 1
      %s192 = scalar_select %p191, %s18, 1
      %p193 = scmp.lt.s32.totalorder %s190, 1
      %s194 = scalar_select %p193, %s190, 1
      %s195 = smul.addr %s192, 2
      %s196 = sadd.s32 %s194, %s195
      %s197 = smul.addr %s196, 4
      %s198 = scalar_lea.vmem %s0, %s197
      %s199 = smul.u32 2, %s19
      %s200 = smul.u32 2, %s19
      %p201 = scmp.lt.s32.totalorder %s18, 1
      %s202 = scalar_select %p201, %s18, 1
      %p203 = scmp.lt.s32.totalorder %s200, 1
      %s204 = scalar_select %p203, %s200, 1
      %s205 = smul.addr %s202, 2
      %s206 = sadd.s32 %s204, %s205
      %s207 = smul.addr %s206, 4
      %s208 = scalar_lea.vmem %s3, %s207
      %s209 = smul.u32 2, %s19
      %v210 = vld [vmem:[%s198] sm:$0xf]
      %v211 = vld [vmem:[%s198 + $0x4] sm:$0xf]
      %v212 = vld [vmem:[%s1] sm:$0xf]
      %v213 = vld [vmem:[%s1 + $0x4] sm:$0xf]
      %v214 = vld [vmem:[%s1 + $0x8] sm:$0xf]
      %v215 = vld [vmem:[%s1 + $0xc] sm:$0xf]
      %v216 = vld [vmem:[%s1 + $0x10] sm:$0xf]
      %v217 = vld [vmem:[%s1 + $0x14] sm:$0xf]
      %v218 = vld [vmem:[%s1 + $0x18] sm:$0xf]
      %v219 = vld [vmem:[%s1 + $0x1c] sm:$0xf]
      %v220 = vld [vmem:[%s1 + $0x20] sm:$0xf]
      %v221 = vld [vmem:[%s1 + $0x24] sm:$0xf]
      %v222 = vld [vmem:[%s1 + $0x28] sm:$0xf]
      %v223 = vld [vmem:[%s1 + $0x2c] sm:$0xf]
      %v224 = vld [vmem:[%s1 + $0x30] sm:$0xf]
      %v225 = vld [vmem:[%s1 + $0x34] sm:$0xf]
      %v226 = vld [vmem:[%s1 + $0x38] sm:$0xf]
      %v227 = vld [vmem:[%s1 + $0x3c] sm:$0xf]
      %v228 = vld [vmem:[%s2] sm:$0x1]
      %v230 = vperm.slane %v228, 0
      %v234 = vunpack.c.l.b16 %v210
      %v235 = vunpack.c.l.b16 %v211
      %v236 = vpack.c.b16 %v235, %v234
      %v254 = vunpack.c.l.b16 %v212
      %v255 = vunpack.c.l.b16 %v213
      %v256 = vunpack.c.l.b16 %v214
      %v257 = vunpack.c.l.b16 %v215
      %v258 = vunpack.c.l.b16 %v216
      %v259 = vunpack.c.l.b16 %v217
      %v260 = vunpack.c.l.b16 %v218
      %v261 = vunpack.c.l.b16 %v219
      %v262 = vunpack.c.l.b16 %v220
      %v263 = vunpack.c.l.b16 %v221
      %v264 = vunpack.c.l.b16 %v222
      %v265 = vunpack.c.l.b16 %v223
      %v266 = vunpack.c.l.b16 %v224
      %v267 = vunpack.c.l.b16 %v225
      %v268 = vunpack.c.l.b16 %v226
      %v269 = vunpack.c.l.b16 %v227
      %v270 = vpack.c.b16 %v255, %v254
      %v271 = vpack.c.b16 %v257, %v256
      %v272 = vpack.c.b16 %v259, %v258
      %v273 = vpack.c.b16 %v261, %v260
      %v274 = vpack.c.b16 %v263, %v262
      %v275 = vpack.c.b16 %v265, %v264
      %v276 = vpack.c.b16 %v267, %v266
      %v277 = vpack.c.b16 %v269, %v268
      %286 = vmatpush.bf16.msra.mxu0 %v277
      %287 = vmatpush.bf16.msra.mxu0 %v276
      %288 = vmatpush.bf16.msra.mxu0 %v275
      %289 = vmatpush.bf16.msra.mxu0 %v274
      %290 = vmatpush.bf16.msra.mxu0 %v273
      %291 = vmatpush.bf16.msra.mxu0 %v272
      %292 = vmatpush.bf16.msra.mxu0 %v271
      %293 = vmatpush.bf16.msra.mxu0 %v270
      %294 = vmatmul.bf16.gmra.mxu0 %v236
      %v295 = vpop.f32.mrf.mxu0
      %v296 = vadd.f32 %v230, %v295
      %v297 = vpop.f32.mrf.mxu0
      %v298 = vadd.f32 %v230, %v297
      %299 = vdwg.mxu0
      %v300 = vadd.f32 %v296, 3.0
      %v301 = vadd.f32 %v298, 3.0
      %v302 = vmax.f32 %v300, 0.0
      %v303 = vmax.f32 %v301, 0.0
      %v304 = vmin.f32 %v302, 6.0
      %v305 = vmin.f32 %v303, 6.0
      %v306 = vmul.f32 %v296, %v304
      %v307 = vmul.f32 %v298, %v305
      %v308 = vmul.f32 %v306, 0.16666667
      %v309 = vmul.f32 %v307, 0.16666667
      %v310 = vpack.c.bf16 %v308, %v308
      %v311 = vpack.c.bf16 %v309, %v309
      %312 = vst [vmem:[%s208] sm:$0xf] %v310
      %313 = vst [vmem:[%s208 + $0x4] sm:$0xf] %v311
      %s314 = smul.u32 2, %s19
      %p315 = scmp.lt.s32.totalorder %s18, 1
      %s316 = scalar_select %p315, %s18, 1
      %p317 = scmp.lt.s32.totalorder %s314, 1
      %s318 = scalar_select %p317, %s314, 1
      %s319 = smul.addr %s316, 2
      %s320 = sadd.s32 %s318, %s319
      %s321 = smul.addr %s320, 4
      %s322 = scalar_lea.vmem %s3, %s321
      // Predicated region
      $region33: #{mobilenet_v3_forward.21} parent=31 // pred_check
        %p323 = pneg %p116
      $region34: #{mobilenet_v3_forward.21} parent=31 // pred_check_branch
        %325 = sbr.rel (%p323) target = $region36
      $region35: #{mobilenet_v3_forward.21} parent=31 // pred_region
        %s326 = smul.u32 2, %s19
      $region36: #{mobilenet_v3_forward.21} parent=31 // pred_fallthru
        _
    $region32: #{mobilenet_v3_forward.21} parent=5 // pred_fallthru
      _
    %p327 = scmp.le.s32.totalorder 2, %s9
    // Predicated region
    $region37: #{mobilenet_v3_forward.21} parent=5 // pred_check
      %p328 = pneg %p327
    $region38: #{mobilenet_v3_forward.21} parent=5 // pred_check_branch
      %330 = sbr.rel (%p328) target = $region40
    $region39: #{mobilenet_v3_forward.21} parent=5 // pred_region
      %s331 = ssub.s32 %s9, 2
      // Predicated region
      $region41: #{mobilenet_v3_forward.21} parent=39 // pred_check
        %p332 = pneg %p122
      $region42: #{mobilenet_v3_forward.21} parent=39 // pred_check_branch
        %334 = sbr.rel (%p332) target = $region44
      $region43: #{mobilenet_v3_forward.21} parent=39 // pred_region
        %s335 = smul.u32 2, %s21
        %p336 = scmp.lt.s32.totalorder %s20, 1
        %s337 = scalar_select %p336, %s20, 1
        %p338 = scmp.lt.s32.totalorder %s335, 1
        %s339 = scalar_select %p338, %s335, 1
        %s340 = smul.addr %s337, 2
        %s341 = sadd.s32 %s339, %s340
        %s342 = smul.addr %s341, 4
        %s343 = scalar_lea.vmem %s3, %s342
      $region44: #{mobilenet_v3_forward.21} parent=39 // pred_fallthru
        _
    $region40: #{mobilenet_v3_forward.21} parent=5 // pred_fallthru
      _
  $region6: #{mobilenet_v3_forward.21} parent=0 // loop_footer
    %s13 = sadd.s32 1, %s9
  $region7: #{mobilenet_v3_forward.21} parent=0 // loop_footer_branch
    %8 = sbr.rel target = $region3
  $region8: #{mobilenet_v3_forward.21} parent=0 // loop_exit
    _

// kernel: mobilenet_v3_forward.25
$region0: #{mobilenet_v3_forward.25}
  #allocation0 [shape = 'u32[]', space=smem, size = 0x4, offset = 0x4, fixed_abs, tag = 'smem constant byte address 0x4 - core index']
  #allocation1 [shape = 'u32[72,128]{1,0:T(1,128)}', space=vmem, size = 0x9000, scoped, tag = 'internal scratch']
  %s0 = inlined_call_operand.vmem [shape: bf16[2,16,128], index: 0, kind: input, shape index: {}]
  %s1 = inlined_call_operand.vmem [shape: bf16[128,256], index: 1, kind: input, shape index: {}]
  %s2 = inlined_call_operand.vmem [shape: f32[1,256], index: 2, kind: input, shape index: {}]
  %s3 = inlined_call_operand.vmem [shape: f32[2,1,256], index: 3, kind: output, shape index: {}]
  %s4 = sld [smem:[#allocation0]]
  $region49: #{mobilenet_v3_forward.25} parent=0
    _
  %s6 = ssub.s32 1, %s4
  %s7 = scalar_select 0, %s6, %s4
  loop: start=0, step=1, limit=4
  $region2: #{mobilenet_v3_forward.25} parent=0 // loop_pre_header
    _
  $region3: #{mobilenet_v3_forward.25} parent=0 // loop_header
    %s9 = sphi 0, %s13
    %p10 = scmp.ge.s32.totalorder %s9, 4
    %s16 = sphi 0, %s28
    %s17 = sphi 0, %s24
    %s18 = sphi 0, %s16
    %s19 = sphi 0, %s17
    %s20 = sphi 0, %s18
    %s21 = sphi 0, %s19
    %s33 = sphi 0, %s35
    %s36 = sphi 0, %s33
    %s37 = sphi 0, %s36
    %s53 = sphi 0, %s37
    %s57 = sphi 0, %s57
    %s59 = sphi 0, %s57
    %s60 = sphi 0, %s59
    %s74 = sphi 0, %s60
    %s78 = sphi 0, %s78
    %s80 = sphi 0, %s78
    %s81 = sphi 0, %s80
    %s95 = sphi 0, %s81
    %s101 = sphi 0, %s103
    %s104 = sphi 0, %s101
    %s105 = sphi 0, %s104
    %s121 = sphi 0, %s105
  $region4: #{mobilenet_v3_forward.25} parent=0 // loop_header_branch
    %12 = sbr.rel (%p10) target = $region8
  $region5: #{mobilenet_v3_forward.25} parent=0 // loop_body
    %s14 = ssub.s32 %s9, 1
    %s15 = ssub.s32 %s9, 2
    %s22 = sadd.s32 1, %s17
    %p23 = scmp.ge.s32.totalorder %s22, 1
    %s24 = scalar_select %p23, 0, %s22
    %s25 = sadd.s32 1, %s16
    %s26 = scalar_select %p23, %s25, %s16
    %p27 = scmp.ge.s32.totalorder %s26, 2
    %s28 = scalar_select %p27, 0, %s26
    %s29 = ssub.s32 %s16, %s28
    %s30 = ssub.s32 %s17, %s24
    %s31 = sor.u32 %s29, %s30
    %p32 = scmp.eq.s32.totalorder %s31, 0
    %s34 = sadd.s32 %s33, 1
    %s35 = scalar_select %p32, %s33, %s34
    %p38 = pneg %p32
    %p39 = scmp.eq.s32.totalorder %s9, 1
    %p40 = por %p38, %p39
    %p41 = scmp.ne.s32.totalorder %s33, %s36
    %p42 = scmp.eq.s32.totalorder %s9, 0
    %p43 = por %p41, %p42
    %p44 = scmp.ne.s32.totalorder %s33, %s36
    %p45 = scmp.eq.s32.totalorder %s14, 1
    %p46 = por %p44, %p45
    %p47 = scmp.ne.s32.totalorder %s36, %s37
    %p48 = scmp.eq.s32.totalorder %s14, 0
    %p49 = por %p47, %p48
    %p50 = scmp.ne.s32.totalorder %s36, %s37
    %p51 = scmp.eq.s32.totalorder %s15, 1
    %p52 = por %p50, %p51
    %p54 = scmp.ne.s32.totalorder %s37, %s53
    %p55 = scmp.eq.s32.totalorder %s15, 0
    %p56 = por %p54, %p55
    %s58 = sadd.s32 %s57, 1
    %p61 = scmp.eq.s32.totalorder %s9, 1
    %p62 = scmp.ne.s32.totalorder %s57, %s59
    %p63 = scmp.eq.s32.totalorder %s9, 0
    %p64 = por %p62, %p63
    %p65 = scmp.ne.s32.totalorder %s57, %s59
    %p66 = scmp.eq.s32.totalorder %s14, 1
    %p67 = por %p65, %p66
    %p68 = scmp.ne.s32.totalorder %s59, %s60
    %p69 = scmp.eq.s32.totalorder %s14, 0
    %p70 = por %p68, %p69
    %p71 = scmp.ne.s32.totalorder %s59, %s60
    %p72 = scmp.eq.s32.totalorder %s15, 1
    %p73 = por %p71, %p72
    %p75 = scmp.ne.s32.totalorder %s60, %s74
    %p76 = scmp.eq.s32.totalorder %s15, 0
    %p77 = por %p75, %p76
    %s79 = sadd.s32 %s78, 1
    %p82 = scmp.eq.s32.totalorder %s9, 1
    %p83 = scmp.ne.s32.totalorder %s78, %s80
    %p84 = scmp.eq.s32.totalorder %s9, 0
    %p85 = por %p83, %p84
    %p86 = scmp.ne.s32.totalorder %s78, %s80
    %p87 = scmp.eq.s32.totalorder %s14, 1
    %p88 = por %p86, %p87
    %p89 = scmp.ne.s32.totalorder %s80, %s81
    %p90 = scmp.eq.s32.totalorder %s14, 0
    %p91 = por %p89, %p90
    %p92 = scmp.ne.s32.totalorder %s80, %s81
    %p93 = scmp.eq.s32.totalorder %s15, 1
    %p94 = por %p92, %p93
    %p96 = scmp.ne.s32.totalorder %s81, %s95
    %p97 = scmp.eq.s32.totalorder %s15, 0
    %p98 = por %p96, %p97
    %s99 = ssub.s32 %s16, %s28
    %p100 = scmp.eq.s32.totalorder %s99, 0
    %s102 = sadd.s32 %s101, 1
    %s103 = scalar_select %p100, %s101, %s102
    %p106 = pneg %p100
    %p107 = scmp.eq.s32.totalorder %s9, 1
    %p108 = por %p106, %p107
    %p109 = scmp.ne.s32.totalorder %s101, %s104
    %p110 = scmp.eq.s32.totalorder %s9, 0
    %p111 = por %p109, %p110
    %p112 = scmp.ne.s32.totalorder %s101, %s104
    %p113 = scmp.eq.s32.totalorder %s14, 1
    %p114 = por %p112, %p113
    %p115 = scmp.ne.s32.totalorder %s104, %s105
    %p116 = scmp.eq.s32.totalorder %s14, 0
    %p117 = por %p115, %p116
    %p118 = scmp.ne.s32.totalorder %s104, %s105
    %p119 = scmp.eq.s32.totalorder %s15, 1
    %p120 = por %p118, %p119
    %p122 = scmp.ne.s32.totalorder %s105, %s121
    %p123 = scmp.eq.s32.totalorder %s15, 0
    %p124 = por %p122, %p123
    %p125 = scmp.le.s32.totalorder 1, %s9
    %p126 = scmp.lt.s32.totalorder %s9, 3
    %p127 = pnand %p125, %p126
    %p128 = pneg %p127
    // Predicated region
    $region9: #{mobilenet_v3_forward.25} parent=5 // pred_check
      _
    $region10: #{mobilenet_v3_forward.25} parent=5 // pred_check_branch
      %130 = sbr.rel (%p127) target = $region12
    $region11: #{mobilenet_v3_forward.25} parent=5 // pred_region
      %s131 = ssub.s32 %s9, 1
      // Predicated region
      $region13: #{mobilenet_v3_forward.25} parent=11 // pred_check
        %p132 = pneg %p70
      $region14: #{mobilenet_v3_forward.25} parent=11 // pred_check_branch
        %134 = sbr.rel (%p132) target = $region16
      $region15: #{mobilenet_v3_forward.25} parent=11 // pred_region
        _
      $region16: #{mobilenet_v3_forward.25} parent=11 // pred_fallthru
        _
      // Predicated region
      $region17: #{mobilenet_v3_forward.25} parent=11 // pred_check
        %p135 = pneg %p91
      $region18: #{mobilenet_v3_forward.25} parent=11 // pred_check_branch
        %137 = sbr.rel (%p135) target = $region20
      $region19: #{mobilenet_v3_forward.25} parent=11 // pred_region
        _
      $region20: #{mobilenet_v3_forward.25} parent=11 // pred_fallthru
        _
    $region12: #{mobilenet_v3_forward.25} parent=5 // pred_fallthru
      _
    %p138 = scmp.lt.s32.totalorder %s9, 2
    // Predicated region
    $region21: #{mobilenet_v3_forward.25} parent=5 // pred_check
      %p139 = pneg %p138
    $region22: #{mobilenet_v3_forward.25} parent=5 // pred_check_branch
      %141 = sbr.rel (%p139) target = $region24
    $region23: #{mobilenet_v3_forward.25} parent=5 // pred_region
      // Predicated region
      $region25: #{mobilenet_v3_forward.25} parent=23 // pred_check
        %p142 = pneg %p43
      $region26: #{mobilenet_v3_forward.25} parent=23 // pred_check_branch
        %144 = sbr.rel (%p142) target = $region28
      $region27: #{mobilenet_v3_forward.25} parent=23 // pred_region
        %s145 = smul.u32 2, %s17
        %p146 = scmp.lt.s32.totalorder %s16, 1
        %s147 = scalar_select %p146, %s16, 1
        %p148 = scmp.lt.s32.totalorder %s145, 1
        %s149 = scalar_select %p148, %s145, 1
        %s150 = smul.addr %s147, 2
        %s151 = sadd.s32 %s149, %s150
        %s152 = smul.addr %s151, 4
        %s153 = scalar_lea.vmem %s0, %s152
        %s154 = smul.u32 2, %s17
      $region28: #{mobilenet_v3_forward.25} parent=23 // pred_fallthru
        _
    $region24: #{mobilenet_v3_forward.25} parent=5 // pred_fallthru
      _
    %p155 = scmp.le.s32.totalorder 1, %s9
    %p156 = scmp.lt.s32.totalorder %s9, 3
    %p157 = pnand %p155, %p156
    %p158 = pneg %p157
    // Predicated region
    $region29: #{mobilenet_v3_forward.25} parent=5 // pred_check
      _
    $region30: #{mobilenet_v3_forward.25} parent=5 // pred_check_branch
      %160 = sbr.rel (%p157) target = $region32
    $region31: #{mobilenet_v3_forward.25} parent=5 // pred_region
      %s161 = ssub.s32 %s9, 1
      %s162 = smul.u32 2, %s19
      %p163 = scmp.lt.s32.totalorder %s18, 1
      %s164 = scalar_select %p163, %s18, 1
      %p165 = scmp.lt.s32.totalorder %s162, 1
      %s166 = scalar_select %p165, %s162, 1
      %s167 = smul.addr %s164, 2
      %s168 = sadd.s32 %s166, %s167
      %s169 = smul.addr %s168, 4
      %s170 = scalar_lea.vmem %s0, %s169
      %p171 = pneg %p49
      %p172 = pneg %p46
      %p173 = pneg %p70
      %p174 = pneg %p67
      %p175 = pneg %p91
      %p176 = pneg %p88
      %p177 = pneg %p117
      %p178 = pneg %p114
      %p179 = scmp.lt.s32.totalorder %s18, 1
      %s180 = scalar_select %p179, %s18, 1
      %s181 = smul.addr %s180, 2
      %s182 = scalar_lea.vmem %s3, %s181
      %s183 = smul.u32 2, %s19
      %p184 = scmp.lt.s32.totalorder %s18, 1
      %s185 = scalar_select %p184, %s18, 1
      %p186 = scmp.lt.s32.totalorder %s183, 1
      %s187 = scalar_select %p186, %s183, 1
      %s188 = smul.addr %s185, 2
      %s189 = sadd.s32 %s187, %s188
      %s190 = smul.addr %s189, 4
      %s191 = scalar_lea.vmem %s0, %s190
      %s192 = smul.u32 2, %s19
      %p193 = scmp.lt.s32.totalorder %s18, 1
      %s194 = scalar_select %p193, %s18, 1
      %s195 = smul.addr %s194, 2
      %s196 = scalar_lea.vmem %s3, %s195
      %p197 = scmp.eq.s32.totalorder %s19, 0
      // Predicated region
      $region33: #{mobilenet_v3_forward.25} parent=31 // pred_check
        %p198 = pneg %p197
      $region34: #{mobilenet_v3_forward.25} parent=31 // pred_check_branch
        %200 = sbr.rel (%p198) target = $region36
      $region35: #{mobilenet_v3_forward.25} parent=31 // pred_region
        %v201 = vlaneseq
        %vm202 = vcmp.ge.s32.totalorder %v201, 0
        %vm203 = vcmp.lt.s32.totalorder %v201, 256
        %vm204 = vmand %vm202, %vm203
        %205 = vst.msk [vmem:[%s196] sm:$0x3] %vm204, 0.0
      $region36: #{mobilenet_v3_forward.25} parent=31 // pred_fallthru
        _
      %v206 = vld [vmem:[%s191] sm:$0xf]
      %v207 = vld [vmem:[%s191 + $0x4] sm:$0xf]
      %v208 = vld [vmem:[%s1] sm:$0xff]
      %v209 = vld [vmem:[%s1 + $0x8] sm:$0xff]
      %v210 = vld [vmem:[%s1 + $0x10] sm:$0xff]
      %v211 = vld [vmem:[%s1 + $0x18] sm:$0xff]
      %v212 = vld [vmem:[%s1 + $0x20] sm:$0xff]
      %v213 = vld [vmem:[%s1 + $0x28] sm:$0xff]
      %v214 = vld [vmem:[%s1 + $0x30] sm:$0xff]
      %v215 = vld [vmem:[%s1 + $0x38] sm:$0xff]
      %v216 = vld [vmem:[%s1 + $0x40] sm:$0xff]
      %v217 = vld [vmem:[%s1 + $0x48] sm:$0xff]
      %v218 = vld [vmem:[%s1 + $0x50] sm:$0xff]
      %v219 = vld [vmem:[%s1 + $0x58] sm:$0xff]
      %v220 = vld [vmem:[%s1 + $0x60] sm:$0xff]
      %v221 = vld [vmem:[%s1 + $0x68] sm:$0xff]
      %v222 = vld [vmem:[%s1 + $0x70] sm:$0xff]
      %v223 = vld [vmem:[%s1 + $0x78] sm:$0xff]
      %v224 = vld [vmem:[%s2] sm:$0x3]
      %v226 = vperm.slane %v224, 0
      %v227 = vperm.slane %v224, 1
      %v232 = vunpack.c.l.b16 %v206
      %v233 = vunpack.c.l.b16 %v207
      %v234 = vpack.c.b16 %v233, %v232
      %v252 = vunpack.c.l.b16 %v208
      %v253 = vunpack.c.h.b16 %v208
      %v254 = vunpack.c.l.b16 %v209
      %v255 = vunpack.c.h.b16 %v209
      %v256 = vunpack.c.l.b16 %v210
      %v257 = vunpack.c.h.b16 %v210
      %v258 = vunpack.c.l.b16 %v211
      %v259 = vunpack.c.h.b16 %v211
      %v260 = vunpack.c.l.b16 %v212
      %v261 = vunpack.c.h.b16 %v212
      %v262 = vunpack.c.l.b16 %v213
      %v263 = vunpack.c.h.b16 %v213
      %v264 = vunpack.c.l.b16 %v214
      %v265 = vunpack.c.h.b16 %v214
      %v266 = vunpack.c.l.b16 %v215
      %v267 = vunpack.c.h.b16 %v215
      %v268 = vunpack.c.l.b16 %v216
      %v269 = vunpack.c.h.b16 %v216
      %v270 = vunpack.c.l.b16 %v217
      %v271 = vunpack.c.h.b16 %v217
      %v272 = vunpack.c.l.b16 %v218
      %v273 = vunpack.c.h.b16 %v218
      %v274 = vunpack.c.l.b16 %v219
      %v275 = vunpack.c.h.b16 %v219
      %v276 = vunpack.c.l.b16 %v220
      %v277 = vunpack.c.h.b16 %v220
      %v278 = vunpack.c.l.b16 %v221
      %v279 = vunpack.c.h.b16 %v221
      %v280 = vunpack.c.l.b16 %v222
      %v281 = vunpack.c.h.b16 %v222
      %v282 = vunpack.c.l.b16 %v223
      %v283 = vunpack.c.h.b16 %v223
      %v284 = vpack.c.b16 %v254, %v252
      %v285 = vpack.c.b16 %v255, %v253
      %v286 = vpack.c.b16 %v258, %v256
      %v287 = vpack.c.b16 %v259, %v257
      %v288 = vpack.c.b16 %v262, %v260
      %v289 = vpack.c.b16 %v263, %v261
      %v290 = vpack.c.b16 %v266, %v264
      %v291 = vpack.c.b16 %v267, %v265
      %v292 = vpack.c.b16 %v270, %v268
      %v293 = vpack.c.b16 %v271, %v269
      %v294 = vpack.c.b16 %v274, %v272
      %v295 = vpack.c.b16 %v275, %v273
      %v296 = vpack.c.b16 %v278, %v276
      %v297 = vpack.c.b16 %v279, %v277
      %v298 = vpack.c.b16 %v282, %v280
      %v299 = vpack.c.b16 %v283, %v281
      %316 = vmatpush.bf16.msra.mxu0 %v298
      %317 = vmatpush.bf16.msra.mxu0 %v296
      %318 = vmatpush.bf16.msra.mxu0 %v294
      %319 = vmatpush.bf16.msra.mxu0 %v292
      %320 = vmatpush.bf16.msra.mxu0 %v290
      %321 = vmatpush.bf16.msra.mxu0 %v288
      %322 = vmatpush.bf16.msra.mxu0 %v286
      %323 = vmatpush.bf16.msra.mxu0 %v284
      %324 = vmatmul.bf16.gmra.mxu0 %v234
      %v325 = vpop.f32.mrf.mxu0
      %v326 = vadd.f32 %v226, %v325
      %v327 = vpop.f32.mrf.mxu0
      %v328 = vadd.f32 %v226, %v327
      %329 = vdwg.mxu0
      %330 = vmatpush.bf16.msra.mxu0 %v299
      %331 = vmatpush.bf16.msra.mxu0 %v297
      %332 = vmatpush.bf16.msra.mxu0 %v295
      %333 = vmatpush.bf16.msra.mxu0 %v293
      %334 = vmatpush.bf16.msra.mxu0 %v291
      %335 = vmatpush.bf16.msra.mxu0 %v289
      %336 = vmatpush.bf16.msra.mxu0 %v287
      %337 = vmatpush.bf16.msra.mxu0 %v285
      %338 = vmatmul.bf16.gmra.mxu0 %v234
      %v339 = vpop.f32.mrf.mxu0
      %v340 = vadd.f32 %v227, %v339
      %v341 = vpop.f32.mrf.mxu0
      %v342 = vadd.f32 %v227, %v341
      %343 = vdwg.mxu0
      %v344 = vadd.f32 %v326, 3.0
      %v345 = vadd.f32 %v340, 3.0
      %v346 = vadd.f32 %v328, 3.0
      %v347 = vadd.f32 %v342, 3.0
      %v348 = vmax.f32 %v344, 0.0
      %v349 = vmax.f32 %v345, 0.0
      %v350 = vmax.f32 %v346, 0.0
      %v351 = vmax.f32 %v347, 0.0
      %v352 = vmin.f32 %v348, 6.0
      %v353 = vmin.f32 %v349, 6.0
      %v354 = vmin.f32 %v350, 6.0
      %v355 = vmin.f32 %v351, 6.0
      %v356 = vmul.f32 %v326, %v352
      %v357 = vmul.f32 %v340, %v353
      %v358 = vmul.f32 %v328, %v354
      %v359 = vmul.f32 %v342, %v355
      %v360 = vmul.f32 %v356, 0.16666667
      %v361 = vmul.f32 %v357, 0.16666667
      %v362 = vmul.f32 %v358, 0.16666667
      %v363 = vmul.f32 %v359, 0.16666667
      %v364 = vld [vmem:[%s196] sm:$0x3]
      %v365 = vadd.f32 %v360, %v362
      %v366 = vrot.slane %v365, 4
      %v367 = vadd.f32 %v365, %v366
      %v368 = vrot.slane %v367, 2
      %v369 = vadd.f32 %v367, %v368
      %v370 = vrot.slane %v369, 1
      %v371 = vadd.f32 %v369, %v370
      %v372 = vadd.f32 %v361, %v363
      %v373 = vrot.slane %v372, 4
      %v374 = vadd.f32 %v372, %v373
      %v375 = vrot.slane %v374, 2
      %v376 = vadd.f32 %v374, %v375
      %v377 = vrot.slane %v376, 1
      %v378 = vadd.f32 %v376, %v377
      %v381 = vrot.slane %v378, 7
      %vm382 = vcmask 1040384
      %v383 = vsel %vm382, %v371, %v381
      %v385 = vadd.f32 %v364, %v383
      %v386 = vlaneseq
      %vm387 = vcmp.ge.s32.totalorder %v386, 0
      %vm388 = vcmp.lt.s32.totalorder %v386, 256
      %vm389 = vmand %vm387, %vm388
      %390 = vst.msk [vmem:[%s196] sm:$0x3] %vm389, %v385
      %p391 = scmp.lt.s32.totalorder %s18, 1
      %s392 = scalar_select %p391, %s18, 1
      %s393 = smul.addr %s392, 2
      %s394 = scalar_lea.vmem %s3, %s393
      // Predicated region
      $region37: #{mobilenet_v3_forward.25} parent=31 // pred_check
        %p395 = pneg %p114
      $region38: #{mobilenet_v3_forward.25} parent=31 // pred_check_branch
        %397 = sbr.rel (%p395) target = $region40
      $region39: #{mobilenet_v3_forward.25} parent=31 // pred_region
        _
      $region40: #{mobilenet_v3_forward.25} parent=31 // pred_fallthru
        _
    $region32: #{mobilenet_v3_forward.25} parent=5 // pred_fallthru
      _
    %p398 = scmp.le.s32.totalorder 2, %s9
    // Predicated region
    $region41: #{mobilenet_v3_forward.25} parent=5 // pred_check
      %p399 = pneg %p398
    $region42: #{mobilenet_v3_forward.25} parent=5 // pred_check_branch
      %401 = sbr.rel (%p399) target = $region44
    $region43: #{mobilenet_v3_forward.25} parent=5 // pred_region
      %s402 = ssub.s32 %s9, 2
      // Predicated region
      $region45: #{mobilenet_v3_forward.25} parent=43 // pred_check
        %p403 = pneg %p120
      $region46: #{mobilenet_v3_forward.25} parent=43 // pred_check_branch
        %405 = sbr.rel (%p403) target = $region48
      $region47: #{mobilenet_v3_forward.25} parent=43 // pred_region
        %p406 = scmp.lt.s32.totalorder %s20, 1
        %s407 = scalar_select %p406, %s20, 1
        %s408 = smul.addr %s407, 2
        %s409 = scalar_lea.vmem %s3, %s408
      $region48: #{mobilenet_v3_forward.25} parent=43 // pred_fallthru
        _
    $region44: #{mobilenet_v3_forward.25} parent=5 // pred_fallthru
      _
  $region6: #{mobilenet_v3_forward.25} parent=0 // loop_footer
    %s13 = sadd.s32 1, %s9
  $region7: #{mobilenet_v3_forward.25} parent=0 // loop_footer_branch
    %8 = sbr.rel target = $region3
  $region8: #{mobilenet_v3_forward.25} parent=0 // loop_exit
    _

// kernel: mobilenet_v3_forward.22
$region0: #{mobilenet_v3_forward.22}
  #allocation0 [shape = 'u32[]', space=smem, size = 0x4, offset = 0x4, fixed_abs, tag = 'smem constant byte address 0x4 - core index']
  #allocation1 [shape = 'u32[72,128]{1,0:T(1,128)}', space=vmem, size = 0x9000, scoped, tag = 'internal scratch']
  #allocation2 [shape = 'f32[16,128]{1,0:T(8,128)}', space=vmem, size = 0x2000, scoped, tag = 'scratch operand']
  %s0 = inlined_call_operand.vmem [shape: bf16[25,2,16,128], index: 0, kind: input, shape index: {}]
  %s1 = inlined_call_operand.vmem [shape: f32[25,1,128], index: 1, kind: input, shape index: {}]
  %s2 = inlined_call_operand.vmem [shape: f32[1,128], index: 2, kind: input, shape index: {}]
  %s3 = inlined_call_operand.vmem [shape: bf16[2,16,128], index: 3, kind: output, shape index: {0}]
  %s4 = inlined_call_operand.vmem [shape: f32[2,1,128], index: 4, kind: output, shape index: {1}]
  %5 = xla_tuple %s3, %s4
  %s6 = sld [smem:[#allocation0]]
  $region65: #{mobilenet_v3_forward.22} parent=0
    _
  %s8 = ssub.s32 1, %s6
  %s9 = scalar_select 0, %s8, %s6
  loop: start=0, step=1, limit=52
  $region2: #{mobilenet_v3_forward.22} parent=0 // loop_pre_header
    _
  $region3: #{mobilenet_v3_forward.22} parent=0 // loop_header
    %s11 = sphi 0, %s15
    %p12 = scmp.ge.s32.totalorder %s11, 52
    %s18 = sphi 0, %s37
    %s19 = sphi 0, %s33
    %s20 = sphi 0, %s29
    %s21 = sphi 0, %s18
    %s22 = sphi 0, %s19
    %s23 = sphi 0, %s20
    %s24 = sphi 0, %s21
    %s25 = sphi 0, %s22
    %s26 = sphi 0, %s23
    %s44 = sphi 0, %s46
    %s47 = sphi 0, %s44
    %s48 = sphi 0, %s47
    %s64 = sphi 0, %s48
    %s70 = sphi 0, %s72
    %s73 = sphi 0, %s70
    %s74 = sphi 0, %s73
    %s90 = sphi 0, %s74
    %s94 = sphi 0, %s94
    %s96 = sphi 0, %s94
    %s97 = sphi 0, %s96
    %s111 = sphi 0, %s97
    %s119 = sphi 0, %s121
    %s122 = sphi 0, %s119
    %s123 = sphi 0, %s122
    %s139 = sphi 0, %s123
    %s145 = sphi 0, %s147
    %s148 = sphi 0, %s145
    %s149 = sphi 0, %s148
    %s165 = sphi 0, %s149
  $region4: #{mobilenet_v3_forward.22} parent=0 // loop_header_branch
    %14 = sbr.rel (%p12) target = $region8
  $region5: #{mobilenet_v3_forward.22} parent=0 // loop_body
    %s16 = ssub.s32 %s11, 1
    %s17 = ssub.s32 %s11, 2
    %s27 = sadd.s32 1, %s20
    %p28 = scmp.ge.s32.totalorder %s27, 25
    %s29 = scalar_select %p28, 0, %s27
    %s30 = sadd.s32 1, %s19
    %s31 = scalar_select %p28, %s30, %s19
    %p32 = scmp.ge.s32.totalorder %s31, 1
    %s33 = scalar_select %p32, 0, %s31
    %s34 = sadd.s32 1, %s18
    %s35 = scalar_select %p32, %s34, %s18
    %p36 = scmp.ge.s32.totalorder %s35, 2
    %s37 = scalar_select %p36, 0, %s35
    %s38 = ssub.s32 %s20, %s29
    %s39 = ssub.s32 %s18, %s37
    %s40 = sor.u32 %s38, %s39
    %s41 = ssub.s32 %s19, %s33
    %s42 = sor.u32 %s40, %s41
    %p43 = scmp.eq.s32.totalorder %s42, 0
    %s45 = sadd.s32 %s44, 1
    %s46 = scalar_select %p43, %s44, %s45
    %p49 = pneg %p43
    %p50 = scmp.eq.s32.totalorder %s11, 49
    %p51 = por %p49, %p50
    %p52 = scmp.ne.s32.totalorder %s44, %s47
    %p53 = scmp.eq.s32.totalorder %s11, 0
    %p54 = por %p52, %p53
    %p55 = scmp.ne.s32.totalorder %s44, %s47
    %p56 = scmp.eq.s32.totalorder %s16, 49
    %p57 = por %p55, %p56
    %p58 = scmp.ne.s32.totalorder %s47, %s48
    %p59 = scmp.eq.s32.totalorder %s16, 0
    %p60 = por %p58, %p59
    %p61 = scmp.ne.s32.totalorder %s47, %s48
    %p62 = scmp.eq.s32.totalorder %s17, 49
    %p63 = por %p61, %p62
    %p65 = scmp.ne.s32.totalorder %s48, %s64
    %p66 = scmp.eq.s32.totalorder %s17, 0
    %p67 = por %p65, %p66
    %s68 = ssub.s32 %s20, %s29
    %p69 = scmp.eq.s32.totalorder %s68, 0
    %s71 = sadd.s32 %s70, 1
    %s72 = scalar_select %p69, %s70, %s71
    %p75 = pneg %p69
    %p76 = scmp.eq.s32.totalorder %s11, 49
    %p77 = por %p75, %p76
    %p78 = scmp.ne.s32.totalorder %s70, %s73
    %p79 = scmp.eq.s32.totalorder %s11, 0
    %p80 = por %p78, %p79
    %p81 = scmp.ne.s32.totalorder %s70, %s73
    %p82 = scmp.eq.s32.totalorder %s16, 49
    %p83 = por %p81, %p82
    %p84 = scmp.ne.s32.totalorder %s73, %s74
    %p85 = scmp.eq.s32.totalorder %s16, 0
    %p86 = por %p84, %p85
    %p87 = scmp.ne.s32.totalorder %s73, %s74
    %p88 = scmp.eq.s32.totalorder %s17, 49
    %p89 = por %p87, %p88
    %p91 = scmp.ne.s32.totalorder %s74, %s90
    %p92 = scmp.eq.s32.totalorder %s17, 0
    %p93 = por %p91, %p92
    %s95 = sadd.s32 %s94, 1
    %p98 = scmp.eq.s32.totalorder %s11, 49
    %p99 = scmp.ne.s32.totalorder %s94, %s96
    %p100 = scmp.eq.s32.totalorder %s11, 0
    %p101 = por %p99, %p100
    %p102 = scmp.ne.s32.totalorder %s94, %s96
    %p103 = scmp.eq.s32.totalorder %s16, 49
    %p104 = por %p102, %p103
    %p105 = scmp.ne.s32.totalorder %s96, %s97
    %p106 = scmp.eq.s32.totalorder %s16, 0
    %p107 = por %p105, %p106
    %p108 = scmp.ne.s32.totalorder %s96, %s97
    %p109 = scmp.eq.s32.totalorder %s17, 49
    %p110 = por %p108, %p109
    %p112 = scmp.ne.s32.totalorder %s97, %s111
    %p113 = scmp.eq.s32.totalorder %s17, 0
    %p114 = por %p112, %p113
    %s115 = ssub.s32 %s18, %s37
    %s116 = ssub.s32 %s19, %s33
    %s117 = sor.u32 %s115, %s116
    %p118 = scmp.eq.s32.totalorder %s117, 0
    %s120 = sadd.s32 %s119, 1
    %s121 = scalar_select %p118, %s119, %s120
    %p124 = pneg %p118
    %p125 = scmp.eq.s32.totalorder %s11, 49
    %p126 = por %p124, %p125
    %p127 = scmp.ne.s32.totalorder %s119, %s122
    %p128 = scmp.eq.s32.totalorder %s11, 0
    %p129 = por %p127, %p128
    %p130 = scmp.ne.s32.totalorder %s119, %s122
    %p131 = scmp.eq.s32.totalorder %s16, 49
    %p132 = por %p130, %p131
    %p133 = scmp.ne.s32.totalorder %s122, %s123
    %p134 = scmp.eq.s32.totalorder %s16, 0
    %p135 = por %p133, %p134
    %p136 = scmp.ne.s32.totalorder %s122, %s123
    %p137 = scmp.eq.s32.totalorder %s17, 49
    %p138 = por %p136, %p137
    %p140 = scmp.ne.s32.totalorder %s123, %s139
    %p141 = scmp.eq.s32.totalorder %s17, 0
    %p142 = por %p140, %p141
    %s143 = ssub.s32 %s18, %s37
    %p144 = scmp.eq.s32.totalorder %s143, 0
    %s146 = sadd.s32 %s145, 1
    %s147 = scalar_select %p144, %s145, %s146
    %p150 = pneg %p144
    %p151 = scmp.eq.s32.totalorder %s11, 49
    %p152 = por %p150, %p151
    %p153 = scmp.ne.s32.totalorder %s145, %s148
    %p154 = scmp.eq.s32.totalorder %s11, 0
    %p155 = por %p153, %p154
    %p156 = scmp.ne.s32.totalorder %s145, %s148
    %p157 = scmp.eq.s32.totalorder %s16, 49
    %p158 = por %p156, %p157
    %p159 = scmp.ne.s32.totalorder %s148, %s149
    %p160 = scmp.eq.s32.totalorder %s16, 0
    %p161 = por %p159, %p160
    %p162 = scmp.ne.s32.totalorder %s148, %s149
    %p163 = scmp.eq.s32.totalorder %s17, 49
    %p164 = por %p162, %p163
    %p166 = scmp.ne.s32.totalorder %s149, %s165
    %p167 = scmp.eq.s32.totalorder %s17, 0
    %p168 = por %p166, %p167
    %p169 = scmp.le.s32.totalorder 1, %s11
    %p170 = scmp.lt.s32.totalorder %s11, 51
    %p171 = pnand %p169, %p170
    %p172 = pneg %p171
    // Predicated region
    $region9: #{mobilenet_v3_forward.22} parent=5 // pred_check
      _
    $region10: #{mobilenet_v3_forward.22} parent=5 // pred_check_branch
      %174 = sbr.rel (%p171) target = $region12
    $region11: #{mobilenet_v3_forward.22} parent=5 // pred_region
      %s175 = ssub.s32 %s11, 1
      // Predicated region
      $region13: #{mobilenet_v3_forward.22} parent=11 // pred_check
        %p176 = pneg %p107
      $region14: #{mobilenet_v3_forward.22} parent=11 // pred_check_branch
        %178 = sbr.rel (%p176) target = $region16
      $region15: #{mobilenet_v3_forward.22} parent=11 // pred_region
        _
      $region16: #{mobilenet_v3_forward.22} parent=11 // pred_fallthru
        _
    $region12: #{mobilenet_v3_forward.22} parent=5 // pred_fallthru
      _
    %p179 = scmp.lt.s32.totalorder %s11, 50
    // Predicated region
    $region17: #{mobilenet_v3_forward.22} parent=5 // pred_check
      %p180 = pneg %p179
    $region18: #{mobilenet_v3_forward.22} parent=5 // pred_check_branch
      %182 = sbr.rel (%p180) target = $region20
    $region19: #{mobilenet_v3_forward.22} parent=5 // pred_region
      // Predicated region
      $region21: #{mobilenet_v3_forward.22} parent=19 // pred_check
        %p183 = pneg %p54
      $region22: #{mobilenet_v3_forward.22} parent=19 // pred_check_branch
        %185 = sbr.rel (%p183) target = $region24
      $region23: #{mobilenet_v3_forward.22} parent=19 // pred_region
        %s186 = smul.u32 2, %s19
        %p187 = scmp.lt.s32.totalorder %s20, 24
        %s188 = scalar_select %p187, %s20, 24
        %p189 = scmp.lt.s32.totalorder %s18, 1
        %s190 = scalar_select %p189, %s18, 1
        %p191 = scmp.lt.s32.totalorder %s186, 1
        %s192 = scalar_select %p191, %s186, 1
        %s193 = smul.addr %s190, 2
        %s194 = sadd.s32 %s192, %s193
        %s195 = smul.addr %s188, 4
        %s196 = sadd.s32 %s194, %s195
        %s197 = smul.addr %s196, 4
        %s198 = scalar_lea.vmem %s0, %s197
        %s199 = smul.u32 2, %s19
      $region24: #{mobilenet_v3_forward.22} parent=19 // pred_fallthru
        _
      // Predicated region
      $region25: #{mobilenet_v3_forward.22} parent=19 // pred_check
        %p200 = pneg %p80
      $region26: #{mobilenet_v3_forward.22} parent=19 // pred_check_branch
        %202 = sbr.rel (%p200) target = $region28
      $region27: #{mobilenet_v3_forward.22} parent=19 // pred_region
        %p203 = scmp.lt.s32.totalorder %s20, 24
        %s204 = scalar_select %p203, %s20, 24
        %s205 = scalar_lea.vmem %s1, %s204
      $region28: #{mobilenet_v3_forward.22} parent=19 // pred_fallthru
        _
    $region20: #{mobilenet_v3_forward.22} parent=5 // pred_fallthru
      _
    %p206 = scmp.le.s32.totalorder 1, %s11
    %p207 = scmp.lt.s32.totalorder %s11, 51
    %p208 = pnand %p206, %p207
    %p209 = pneg %p208
    // Predicated region
    $region29: #{mobilenet_v3_forward.22} parent=5 // pred_check
      _
    $region30: #{mobilenet_v3_forward.22} parent=5 // pred_check_branch
      %211 = sbr.rel (%p208) target = $region32
    $region31: #{mobilenet_v3_forward.22} parent=5 // pred_region
      %s212 = ssub.s32 %s11, 1
      %s213 = smul.u32 2, %s22
      %p214 = scmp.lt.s32.totalorder %s23, 24
      %s215 = scalar_select %p214, %s23, 24
      %p216 = scmp.lt.s32.totalorder %s21, 1
      %s217 = scalar_select %p216, %s21, 1
      %p218 = scmp.lt.s32.totalorder %s213, 1
      %s219 = scalar_select %p218, %s213, 1
      %s220 = smul.addr %s217, 2
      %s221 = sadd.s32 %s219, %s220
      %s222 = smul.addr %s215, 4
      %s223 = sadd.s32 %s221, %s222
      %s224 = smul.addr %s223, 4
      %s225 = scalar_lea.vmem %s0, %s224
      %p226 = pneg %p60
      %p227 = pneg %p57
      %p228 = scmp.lt.s32.totalorder %s23, 24
      %s229 = scalar_select %p228, %s23, 24
      %s230 = scalar_lea.vmem %s1, %s229
      %p231 = pneg %p86
      %p232 = pneg %p83
      %p233 = pneg %p107
      %p234 = pneg %p104
      %p235 = pneg %p135
      %p236 = pneg %p132
      %s237 = smul.u32 2, %s22
      %p238 = scmp.lt.s32.totalorder %s21, 1
      %s239 = scalar_select %p238, %s21, 1
      %p240 = scmp.lt.s32.totalorder %s237, 1
      %s241 = scalar_select %p240, %s237, 1
      %s242 = smul.addr %s239, 2
      %s243 = sadd.s32 %s241, %s242
      %s244 = smul.addr %s243, 4
      %s245 = scalar_lea.vmem %s3, %s244
      %p246 = pneg %p161
      %p247 = pneg %p158
      %p248 = scmp.lt.s32.totalorder %s21, 1
      %s249 = scalar_select %p248, %s21, 1
      %s250 = scalar_lea.vmem %s4, %s249
      %s251 = smul.u32 2, %s22
      %p252 = scmp.lt.s32.totalorder %s23, 24
      %s253 = scalar_select %p252, %s23, 24
      %p254 = scmp.lt.s32.totalorder %s21, 1
      %s255 = scalar_select %p254, %s21, 1
      %p256 = scmp.lt.s32.totalorder %s251, 1
      %s257 = scalar_select %p256, %s251, 1
      %s258 = smul.addr %s255, 2
      %s259 = sadd.s32 %s257, %s258
      %s260 = smul.addr %s253, 4
      %s261 = sadd.s32 %s259, %s260
      %s262 = smul.addr %s261, 4
      %s263 = scalar_lea.vmem %s0, %s262
      %s264 = smul.u32 2, %s22
      %p265 = scmp.lt.s32.totalorder %s23, 24
      %s266 = scalar_select %p265, %s23, 24
      %s267 = scalar_lea.vmem %s1, %s266
      %s268 = smul.u32 2, %s22
      %p269 = scmp.lt.s32.totalorder %s21, 1
      %s270 = scalar_select %p269, %s21, 1
      %p271 = scmp.lt.s32.totalorder %s268, 1
      %s272 = scalar_select %p271, %s268, 1
      %s273 = smul.addr %s270, 2
      %s274 = sadd.s32 %s272, %s273
      %s275 = smul.addr %s274, 4
      %s276 = scalar_lea.vmem %s3, %s275
      %s277 = smul.u32 2, %s22
      %p278 = scmp.lt.s32.totalorder %s21, 1
      %s279 = scalar_select %p278, %s21, 1
      %s280 = scalar_lea.vmem %s4, %s279
      %p281 = scmp.eq.s32.totalorder %s23, 0
      // Predicated region
      $region33: #{mobilenet_v3_forward.22} parent=31 // pred_check
        %p282 = pneg %p281
      $region34: #{mobilenet_v3_forward.22} parent=31 // pred_check_branch
        %284 = sbr.rel (%p282) target = $region36
      $region35: #{mobilenet_v3_forward.22} parent=31 // pred_region
        %285 = vst [vmem:[#allocation2] sm:$0xff] 0.0
        %286 = vst [vmem:[#allocation2 + $0x8] sm:$0xff] 0.0
      $region36: #{mobilenet_v3_forward.22} parent=31 // pred_fallthru
        _
      %p287 = scmp.eq.s32.totalorder %s22, 0
      %p288 = pnand %p281, %p287
      %p289 = pneg %p288
      // Predicated region
      $region37: #{mobilenet_v3_forward.22} parent=31 // pred_check
        _
      $region38: #{mobilenet_v3_forward.22} parent=31 // pred_check_branch
        %291 = sbr.rel (%p288) target = $region40
      $region39: #{mobilenet_v3_forward.22} parent=31 // pred_region
        %292 = vst [vmem:[%s280] sm:$0x1] 0.0
      $region40: #{mobilenet_v3_forward.22} parent=31 // pred_fallthru
        _
      %v293 = vld [vmem:[#allocation2] sm:$0xff]
      %v294 = vld [vmem:[#allocation2 + $0x8] sm:$0xff]
      %v295 = vld [vmem:[%s263] sm:$0xf]
      %v296 = vld [vmem:[%s263 + $0x4] sm:$0xf]
      %v297 = vunpack.c.l.bf16 %v295
      %v298 = vunpack.c.l.bf16 %v296
      %v299 = vld [vmem:[%s267] sm:$0x1]
      %v301 = vperm.slane %v299, 0
      %v303 = vmul.f32 %v297, %v301
      %v304 = vmul.f32 %v298, %v301
      %v305 = vadd.f32 %v293, %v303
      %v306 = vadd.f32 %v294, %v304
      %307 = vst [vmem:[#allocation2] sm:$0xff] %v305
      %308 = vst [vmem:[#allocation2 + $0x8] sm:$0xff] %v306
      %p309 = scmp.eq.s32.totalorder %s23, 24
      // Predicated region
      $region41: #{mobilenet_v3_forward.22} parent=31 // pred_check
        %p310 = pneg %p309
      $region42: #{mobilenet_v3_forward.22} parent=31 // pred_check_branch
        %312 = sbr.rel (%p310) target = $region44
      $region43: #{mobilenet_v3_forward.22} parent=31 // pred_region
        %v313 = vld [vmem:[#allocation2] sm:$0xff]
        %v314 = vld [vmem:[#allocation2 + $0x8] sm:$0xff]
        %v315 = vld [vmem:[%s2] sm:$0x1]
        %v317 = vperm.slane %v315, 0
        %v319 = vadd.f32 %v313, %v317
        %v320 = vadd.f32 %v314, %v317
        %v321 = vadd.f32 %v319, 3.0
        %v322 = vadd.f32 %v320, 3.0
        %v323 = vmax.f32 %v321, 0.0
        %v324 = vmax.f32 %v322, 0.0
        %v325 = vmin.f32 %v323, 6.0
        %v326 = vmin.f32 %v324, 6.0
        %v327 = vmul.f32 %v319, %v325
        %v328 = vmul.f32 %v320, %v326
        %v329 = vmul.f32 %v327, 0.16666667
        %v330 = vmul.f32 %v328, 0.16666667
        %v331 = vpack.c.bf16 %v329, %v329
        %v332 = vpack.c.bf16 %v330, %v330
        %333 = vst [vmem:[%s276] sm:$0xf] %v331
        %334 = vst [vmem:[%s276 + $0x4] sm:$0xf] %v332
        %v335 = vld [vmem:[%s280] sm:$0x1]
        %v336 = vadd.f32 %v329, %v330
        %v337 = vrot.slane %v336, 4
        %v338 = vadd.f32 %v336, %v337
        %v339 = vrot.slane %v338, 2
        %v340 = vadd.f32 %v338, %v339
        %v341 = vrot.slane %v340, 1
        %v342 = vadd.f32 %v340, %v341
        %v343 = vadd.f32 %v335, %v342
        %344 = vst [vmem:[%s280] sm:$0x1] %v343
      $region44: #{mobilenet_v3_forward.22} parent=31 // pred_fallthru
        _
      %s345 = smul.u32 2, %s22
      %p346 = scmp.lt.s32.totalorder %s21, 1
      %s347 = scalar_select %p346, %s21, 1
      %p348 = scmp.lt.s32.totalorder %s345, 1
      %s349 = scalar_select %p348, %s345, 1
      %s350 = smul.addr %s347, 2
      %s351 = sadd.s32 %s349, %s350
      %s352 = smul.addr %s351, 4
      %s353 = scalar_lea.vmem %s3, %s352
      %p354 = scmp.lt.s32.totalorder %s21, 1
      %s355 = scalar_select %p354, %s21, 1
      %s356 = scalar_lea.vmem %s4, %s355
      // Predicated region
      $region45: #{mobilenet_v3_forward.22} parent=31 // pred_check
        %p357 = pneg %p132
      $region46: #{mobilenet_v3_forward.22} parent=31 // pred_check_branch
        %359 = sbr.rel (%p357) target = $region48
      $region47: #{mobilenet_v3_forward.22} parent=31 // pred_region
        %s360 = smul.u32 2, %s22
      $region48: #{mobilenet_v3_forward.22} parent=31 // pred_fallthru
        _
      // Predicated region
      $region49: #{mobilenet_v3_forward.22} parent=31 // pred_check
        %p361 = pneg %p158
      $region50: #{mobilenet_v3_forward.22} parent=31 // pred_check_branch
        %363 = sbr.rel (%p361) target = $region52
      $region51: #{mobilenet_v3_forward.22} parent=31 // pred_region
        _
      $region52: #{mobilenet_v3_forward.22} parent=31 // pred_fallthru
        _
    $region32: #{mobilenet_v3_forward.22} parent=5 // pred_fallthru
      _
    %p364 = scmp.le.s32.totalorder 2, %s11
    // Predicated region
    $region53: #{mobilenet_v3_forward.22} parent=5 // pred_check
      %p365 = pneg %p364
    $region54: #{mobilenet_v3_forward.22} parent=5 // pred_check_branch
      %367 = sbr.rel (%p365) target = $region56
    $region55: #{mobilenet_v3_forward.22} parent=5 // pred_region
      %s368 = ssub.s32 %s11, 2
      // Predicated region
      $region57: #{mobilenet_v3_forward.22} parent=55 // pred_check
        %p369 = pneg %p138
      $region58: #{mobilenet_v3_forward.22} parent=55 // pred_check_branch
        %371 = sbr.rel (%p369) target = $region60
      $region59: #{mobilenet_v3_forward.22} parent=55 // pred_region
        %s372 = smul.u32 2, %s25
        %p373 = scmp.lt.s32.totalorder %s24, 1
        %s374 = scalar_select %p373, %s24, 1
        %p375 = scmp.lt.s32.totalorder %s372, 1
        %s376 = scalar_select %p375, %s372, 1
        %s377 = smul.addr %s374, 2
        %s378 = sadd.s32 %s376, %s377
        %s379 = smul.addr %s378, 4
        %s380 = scalar_lea.vmem %s3, %s379
      $region60: #{mobilenet_v3_forward.22} parent=55 // pred_fallthru
        _
      // Predicated region
      $region61: #{mobilenet_v3_forward.22} parent=55 // pred_check
        %p381 = pneg %p164
      $region62: #{mobilenet_v3_forward.22} parent=55 // pred_check_branch
        %383 = sbr.rel (%p381) target = $region64
      $region63: #{mobilenet_v3_forward.22} parent=55 // pred_region
        %p384 = scmp.lt.s32.totalorder %s24, 1
        %s385 = scalar_select %p384, %s24, 1
        %s386 = scalar_lea.vmem %s4, %s385
      $region64: #{mobilenet_v3_forward.22} parent=55 // pred_fallthru
        _
    $region56: #{mobilenet_v3_forward.22} parent=5 // pred_fallthru
      _
  $region6: #{mobilenet_v3_forward.22} parent=0 // loop_footer
    %s15 = sadd.s32 1, %s11
  $region7: #{mobilenet_v3_forward.22} parent=0 // loop_footer_branch
    %10 = sbr.rel target = $region3
  $region8: #{mobilenet_v3_forward.22} parent=0 // loop_exit
    _

// kernel: mobilenet_v3_forward.24
$region0: #{mobilenet_v3_forward.24}
  #allocation0 [shape = 'u32[]', space=smem, size = 0x4, offset = 0x4, fixed_abs, tag = 'smem constant byte address 0x4 - core index']
  #allocation1 [shape = 'u32[72,128]{1,0:T(1,128)}', space=vmem, size = 0x9000, scoped, tag = 'internal scratch']
  %s0 = inlined_call_operand.vmem [shape: bf16[2,16,128], index: 0, kind: input, shape index: {}]
  %s1 = inlined_call_operand.vmem [shape: f32[2,1,128], index: 1, kind: input, shape index: {}]
  %s2 = inlined_call_operand.vmem [shape: bf16[2,16,128], index: 2, kind: input, shape index: {}]
  %s3 = inlined_call_operand.vmem [shape: bf16[128,128], index: 3, kind: input, shape index: {}]
  %s4 = inlined_call_operand.vmem [shape: f32[1,128], index: 4, kind: input, shape index: {}]
  %s5 = inlined_call_operand.vmem [shape: bf16[2,16,128], index: 5, kind: output, shape index: {}]
  %s6 = sld [smem:[#allocation0]]
  $region53: #{mobilenet_v3_forward.24} parent=0
    _
  %s8 = ssub.s32 1, %s6
  %s9 = scalar_select 0, %s8, %s6
  loop: start=0, step=1, limit=4
  $region2: #{mobilenet_v3_forward.24} parent=0 // loop_pre_header
    _
  $region3: #{mobilenet_v3_forward.24} parent=0 // loop_header
    %s11 = sphi 0, %s15
    %p12 = scmp.ge.s32.totalorder %s11, 4
    %s18 = sphi 0, %s30
    %s19 = sphi 0, %s26
    %s20 = sphi 0, %s18
    %s21 = sphi 0, %s19
    %s22 = sphi 0, %s20
    %s23 = sphi 0, %s21
    %s35 = sphi 0, %s37
    %s38 = sphi 0, %s35
    %s39 = sphi 0, %s38
    %s55 = sphi 0, %s39
    %s61 = sphi 0, %s63
    %s64 = sphi 0, %s61
    %s65 = sphi 0, %s64
    %s81 = sphi 0, %s65
    %s89 = sphi 0, %s91
    %s92 = sphi 0, %s89
    %s93 = sphi 0, %s92
    %s109 = sphi 0, %s93
    %s113 = sphi 0, %s113
    %s115 = sphi 0, %s113
    %s116 = sphi 0, %s115
    %s130 = sphi 0, %s116
    %s134 = sphi 0, %s134
    %s136 = sphi 0, %s134
    %s137 = sphi 0, %s136
    %s151 = sphi 0, %s137
    %s159 = sphi 0, %s161
    %s162 = sphi 0, %s159
    %s163 = sphi 0, %s162
    %s179 = sphi 0, %s163
  $region4: #{mobilenet_v3_forward.24} parent=0 // loop_header_branch
    %14 = sbr.rel (%p12) target = $region8
  $region5: #{mobilenet_v3_forward.24} parent=0 // loop_body
    %s16 = ssub.s32 %s11, 1
    %s17 = ssub.s32 %s11, 2
    %s24 = sadd.s32 1, %s19
    %p25 = scmp.ge.s32.totalorder %s24, 1
    %s26 = scalar_select %p25, 0, %s24
    %s27 = sadd.s32 1, %s18
    %s28 = scalar_select %p25, %s27, %s18
    %p29 = scmp.ge.s32.totalorder %s28, 2
    %s30 = scalar_select %p29, 0, %s28
    %s31 = ssub.s32 %s18, %s30
    %s32 = ssub.s32 %s19, %s26
    %s33 = sor.u32 %s31, %s32
    %p34 = scmp.eq.s32.totalorder %s33, 0
    %s36 = sadd.s32 %s35, 1
    %s37 = scalar_select %p34, %s35, %s36
    %p40 = pneg %p34
    %p41 = scmp.eq.s32.totalorder %s11, 1
    %p42 = por %p40, %p41
    %p43 = scmp.ne.s32.totalorder %s35, %s38
    %p44 = scmp.eq.s32.totalorder %s11, 0
    %p45 = por %p43, %p44
    %p46 = scmp.ne.s32.totalorder %s35, %s38
    %p47 = scmp.eq.s32.totalorder %s16, 1
    %p48 = por %p46, %p47
    %p49 = scmp.ne.s32.totalorder %s38, %s39
    %p50 = scmp.eq.s32.totalorder %s16, 0
    %p51 = por %p49, %p50
    %p52 = scmp.ne.s32.totalorder %s38, %s39
    %p53 = scmp.eq.s32.totalorder %s17, 1
    %p54 = por %p52, %p53
    %p56 = scmp.ne.s32.totalorder %s39, %s55
    %p57 = scmp.eq.s32.totalorder %s17, 0
    %p58 = por %p56, %p57
    %s59 = ssub.s32 %s18, %s30
    %p60 = scmp.eq.s32.totalorder %s59, 0
    %s62 = sadd.s32 %s61, 1
    %s63 = scalar_select %p60, %s61, %s62
    %p66 = pneg %p60
    %p67 = scmp.eq.s32.totalorder %s11, 1
    %p68 = por %p66, %p67
    %p69 = scmp.ne.s32.totalorder %s61, %s64
    %p70 = scmp.eq.s32.totalorder %s11, 0
    %p71 = por %p69, %p70
    %p72 = scmp.ne.s32.totalorder %s61, %s64
    %p73 = scmp.eq.s32.totalorder %s16, 1
    %p74 = por %p72, %p73
    %p75 = scmp.ne.s32.totalorder %s64, %s65
    %p76 = scmp.eq.s32.totalorder %s16, 0
    %p77 = por %p75, %p76
    %p78 = scmp.ne.s32.totalorder %s64, %s65
    %p79 = scmp.eq.s32.totalorder %s17, 1
    %p80 = por %p78, %p79
    %p82 = scmp.ne.s32.totalorder %s65, %s81
    %p83 = scmp.eq.s32.totalorder %s17, 0
    %p84 = por %p82, %p83
    %s85 = ssub.s32 %s18, %s30
    %s86 = ssub.s32 %s19, %s26
    %s87 = sor.u32 %s85, %s86
    %p88 = scmp.eq.s32.totalorder %s87, 0
    %s90 = sadd.s32 %s89, 1
    %s91 = scalar_select %p88, %s89, %s90
    %p94 = pneg %p88
    %p95 = scmp.eq.s32.totalorder %s11, 1
    %p96 = por %p94, %p95
    %p97 = scmp.ne.s32.totalorder %s89, %s92
    %p98 = scmp.eq.s32.totalorder %s11, 0
    %p99 = por %p97, %p98
    %p100 = scmp.ne.s32.totalorder %s89, %s92
    %p101 = scmp.eq.s32.totalorder %s16, 1
    %p102 = por %p100, %p101
    %p103 = scmp.ne.s32.totalorder %s92, %s93
    %p104 = scmp.eq.s32.totalorder %s16, 0
    %p105 = por %p103, %p104
    %p106 = scmp.ne.s32.totalorder %s92, %s93
    %p107 = scmp.eq.s32.totalorder %s17, 1
    %p108 = por %p106, %p107
    %p110 = scmp.ne.s32.totalorder %s93, %s109
    %p111 = scmp.eq.s32.totalorder %s17, 0
    %p112 = por %p110, %p111
    %s114 = sadd.s32 %s113, 1
    %p117 = scmp.eq.s32.totalorder %s11, 1
    %p118 = scmp.ne.s32.totalorder %s113, %s115
    %p119 = scmp.eq.s32.totalorder %s11, 0
    %p120 = por %p118, %p119
    %p121 = scmp.ne.s32.totalorder %s113, %s115
    %p122 = scmp.eq.s32.totalorder %s16, 1
    %p123 = por %p121, %p122
    %p124 = scmp.ne.s32.totalorder %s115, %s116
    %p125 = scmp.eq.s32.totalorder %s16, 0
    %p126 = por %p124, %p125
    %p127 = scmp.ne.s32.totalorder %s115, %s116
    %p128 = scmp.eq.s32.totalorder %s17, 1
    %p129 = por %p127, %p128
    %p131 = scmp.ne.s32.totalorder %s116, %s130
    %p132 = scmp.eq.s32.totalorder %s17, 0
    %p133 = por %p131, %p132
    %s135 = sadd.s32 %s134, 1
    %p138 = scmp.eq.s32.totalorder %s11, 1
    %p139 = scmp.ne.s32.totalorder %s134, %s136
    %p140 = scmp.eq.s32.totalorder %s11, 0
    %p141 = por %p139, %p140
    %p142 = scmp.ne.s32.totalorder %s134, %s136
    %p143 = scmp.eq.s32.totalorder %s16, 1
    %p144 = por %p142, %p143
    %p145 = scmp.ne.s32.totalorder %s136, %s137
    %p146 = scmp.eq.s32.totalorder %s16, 0
    %p147 = por %p145, %p146
    %p148 = scmp.ne.s32.totalorder %s136, %s137
    %p149 = scmp.eq.s32.totalorder %s17, 1
    %p150 = por %p148, %p149
    %p152 = scmp.ne.s32.totalorder %s137, %s151
    %p153 = scmp.eq.s32.totalorder %s17, 0
    %p154 = por %p152, %p153
    %s155 = ssub.s32 %s18, %s30
    %s156 = ssub.s32 %s19, %s26
    %s157 = sor.u32 %s155, %s156
    %p158 = scmp.eq.s32.totalorder %s157, 0
    %s160 = sadd.s32 %s159, 1
    %s161 = scalar_select %p158, %s159, %s160
    %p164 = pneg %p158
    %p165 = scmp.eq.s32.totalorder %s11, 1
    %p166 = por %p164, %p165
    %p167 = scmp.ne.s32.totalorder %s159, %s162
    %p168 = scmp.eq.s32.totalorder %s11, 0
    %p169 = por %p167, %p168
    %p170 = scmp.ne.s32.totalorder %s159, %s162
    %p171 = scmp.eq.s32.totalorder %s16, 1
    %p172 = por %p170, %p171
    %p173 = scmp.ne.s32.totalorder %s162, %s163
    %p174 = scmp.eq.s32.totalorder %s16, 0
    %p175 = por %p173, %p174
    %p176 = scmp.ne.s32.totalorder %s162, %s163
    %p177 = scmp.eq.s32.totalorder %s17, 1
    %p178 = por %p176, %p177
    %p180 = scmp.ne.s32.totalorder %s163, %s179
    %p181 = scmp.eq.s32.totalorder %s17, 0
    %p182 = por %p180, %p181
    %p183 = scmp.le.s32.totalorder 1, %s11
    %p184 = scmp.lt.s32.totalorder %s11, 3
    %p185 = pnand %p183, %p184
    %p186 = pneg %p185
    // Predicated region
    $region9: #{mobilenet_v3_forward.24} parent=5 // pred_check
      _
    $region10: #{mobilenet_v3_forward.24} parent=5 // pred_check_branch
      %188 = sbr.rel (%p185) target = $region12
    $region11: #{mobilenet_v3_forward.24} parent=5 // pred_region
      %s189 = ssub.s32 %s11, 1
      // Predicated region
      $region13: #{mobilenet_v3_forward.24} parent=11 // pred_check
        %p190 = pneg %p126
      $region14: #{mobilenet_v3_forward.24} parent=11 // pred_check_branch
        %192 = sbr.rel (%p190) target = $region16
      $region15: #{mobilenet_v3_forward.24} parent=11 // pred_region
        _
      $region16: #{mobilenet_v3_forward.24} parent=11 // pred_fallthru
        _
      // Predicated region
      $region17: #{mobilenet_v3_forward.24} parent=11 // pred_check
        %p193 = pneg %p147
      $region18: #{mobilenet_v3_forward.24} parent=11 // pred_check_branch
        %195 = sbr.rel (%p193) target = $region20
      $region19: #{mobilenet_v3_forward.24} parent=11 // pred_region
        _
      $region20: #{mobilenet_v3_forward.24} parent=11 // pred_fallthru
        _
    $region12: #{mobilenet_v3_forward.24} parent=5 // pred_fallthru
      _
    %p196 = scmp.lt.s32.totalorder %s11, 2
    // Predicated region
    $region21: #{mobilenet_v3_forward.24} parent=5 // pred_check
      %p197 = pneg %p196
    $region22: #{mobilenet_v3_forward.24} parent=5 // pred_check_branch
      %199 = sbr.rel (%p197) target = $region24
    $region23: #{mobilenet_v3_forward.24} parent=5 // pred_region
      // Predicated region
      $region25: #{mobilenet_v3_forward.24} parent=23 // pred_check
        %p200 = pneg %p45
      $region26: #{mobilenet_v3_forward.24} parent=23 // pred_check_branch
        %202 = sbr.rel (%p200) target = $region28
      $region27: #{mobilenet_v3_forward.24} parent=23 // pred_region
        %s203 = smul.u32 2, %s19
        %p204 = scmp.lt.s32.totalorder %s18, 1
        %s205 = scalar_select %p204, %s18, 1
        %p206 = scmp.lt.s32.totalorder %s203, 1
        %s207 = scalar_select %p206, %s203, 1
        %s208 = smul.addr %s205, 2
        %s209 = sadd.s32 %s207, %s208
        %s210 = smul.addr %s209, 4
        %s211 = scalar_lea.vmem %s0, %s210
        %s212 = smul.u32 2, %s19
      $region28: #{mobilenet_v3_forward.24} parent=23 // pred_fallthru
        _
      // Predicated region
      $region29: #{mobilenet_v3_forward.24} parent=23 // pred_check
        %p213 = pneg %p71
      $region30: #{mobilenet_v3_forward.24} parent=23 // pred_check_branch
        %215 = sbr.rel (%p213) target = $region32
      $region31: #{mobilenet_v3_forward.24} parent=23 // pred_region
        %p216 = scmp.lt.s32.totalorder %s18, 1
        %s217 = scalar_select %p216, %s18, 1
        %s218 = scalar_lea.vmem %s1, %s217
      $region32: #{mobilenet_v3_forward.24} parent=23 // pred_fallthru
        _
      // Predicated region
      $region33: #{mobilenet_v3_forward.24} parent=23 // pred_check
        %p219 = pneg %p99
      $region34: #{mobilenet_v3_forward.24} parent=23 // pred_check_branch
        %221 = sbr.rel (%p219) target = $region36
      $region35: #{mobilenet_v3_forward.24} parent=23 // pred_region
        %s222 = smul.u32 2, %s19
        %p223 = scmp.lt.s32.totalorder %s18, 1
        %s224 = scalar_select %p223, %s18, 1
        %p225 = scmp.lt.s32.totalorder %s222, 1
        %s226 = scalar_select %p225, %s222, 1
        %s227 = smul.addr %s224, 2
        %s228 = sadd.s32 %s226, %s227
        %s229 = smul.addr %s228, 4
        %s230 = scalar_lea.vmem %s2, %s229
        %s231 = smul.u32 2, %s19
      $region36: #{mobilenet_v3_forward.24} parent=23 // pred_fallthru
        _
    $region24: #{mobilenet_v3_forward.24} parent=5 // pred_fallthru
      _
    %p232 = scmp.le.s32.totalorder 1, %s11
    %p233 = scmp.lt.s32.totalorder %s11, 3
    %p234 = pnand %p232, %p233
    %p235 = pneg %p234
    // Predicated region
    $region37: #{mobilenet_v3_forward.24} parent=5 // pred_check
      _
    $region38: #{mobilenet_v3_forward.24} parent=5 // pred_check_branch
      %237 = sbr.rel (%p234) target = $region40
    $region39: #{mobilenet_v3_forward.24} parent=5 // pred_region
      %s238 = ssub.s32 %s11, 1
      %s239 = smul.u32 2, %s21
      %p240 = scmp.lt.s32.totalorder %s20, 1
      %s241 = scalar_select %p240, %s20, 1
      %p242 = scmp.lt.s32.totalorder %s239, 1
      %s243 = scalar_select %p242, %s239, 1
      %s244 = smul.addr %s241, 2
      %s245 = sadd.s32 %s243, %s244
      %s246 = smul.addr %s245, 4
      %s247 = scalar_lea.vmem %s0, %s246
      %p248 = pneg %p51
      %p249 = pneg %p48
      %p250 = scmp.lt.s32.totalorder %s20, 1
      %s251 = scalar_select %p250, %s20, 1
      %s252 = scalar_lea.vmem %s1, %s251
      %p253 = pneg %p77
      %p254 = pneg %p74
      %s255 = smul.u32 2, %s21
      %p256 = scmp.lt.s32.totalorder %s20, 1
      %s257 = scalar_select %p256, %s20, 1
      %p258 = scmp.lt.s32.totalorder %s255, 1
      %s259 = scalar_select %p258, %s255, 1
      %s260 = smul.addr %s257, 2
      %s261 = sadd.s32 %s259, %s260
      %s262 = smul.addr %s261, 4
      %s263 = scalar_lea.vmem %s2, %s262
      %p264 = pneg %p105
      %p265 = pneg %p102
      %p266 = pneg %p126
      %p267 = pneg %p123
      %p268 = pneg %p147
      %p269 = pneg %p144
      %p270 = pneg %p175
      %p271 = pneg %p172
      %s272 = smul.u32 2, %s21
      %p273 = scmp.lt.s32.totalorder %s20, 1
      %s274 = scalar_select %p273, %s20, 1
      %p275 = scmp.lt.s32.totalorder %s272, 1
      %s276 = scalar_select %p275, %s272, 1
      %s277 = smul.addr %s274, 2
      %s278 = sadd.s32 %s276, %s277
      %s279 = smul.addr %s278, 4
      %s280 = scalar_lea.vmem %s5, %s279
      %s281 = smul.u32 2, %s21
      %p282 = scmp.lt.s32.totalorder %s20, 1
      %s283 = scalar_select %p282, %s20, 1
      %p284 = scmp.lt.s32.totalorder %s281, 1
      %s285 = scalar_select %p284, %s281, 1
      %s286 = smul.addr %s283, 2
      %s287 = sadd.s32 %s285, %s286
      %s288 = smul.addr %s287, 4
      %s289 = scalar_lea.vmem %s0, %s288
      %s290 = smul.u32 2, %s21
      %p291 = scmp.lt.s32.totalorder %s20, 1
      %s292 = scalar_select %p291, %s20, 1
      %s293 = scalar_lea.vmem %s1, %s292
      %s294 = smul.u32 2, %s21
      %p295 = scmp.lt.s32.totalorder %s20, 1
      %s296 = scalar_select %p295, %s20, 1
      %p297 = scmp.lt.s32.totalorder %s294, 1
      %s298 = scalar_select %p297, %s294, 1
      %s299 = smul.addr %s296, 2
      %s300 = sadd.s32 %s298, %s299
      %s301 = smul.addr %s300, 4
      %s302 = scalar_lea.vmem %s2, %s301
      %s303 = smul.u32 2, %s21
      %s304 = smul.u32 2, %s21
      %p305 = scmp.lt.s32.totalorder %s20, 1
      %s306 = scalar_select %p305, %s20, 1
      %p307 = scmp.lt.s32.totalorder %s304, 1
      %s308 = scalar_select %p307, %s304, 1
      %s309 = smul.addr %s306, 2
      %s310 = sadd.s32 %s308, %s309
      %s311 = smul.addr %s310, 4
      %s312 = scalar_lea.vmem %s5, %s311
      %s313 = smul.u32 2, %s21
      %v314 = vld [vmem:[%s289] sm:$0xf]
      %v315 = vld [vmem:[%s289 + $0x4] sm:$0xf]
      %v316 = vunpack.c.l.bf16 %v314
      %v317 = vunpack.c.l.bf16 %v315
      %v318 = vld [vmem:[%s293] sm:$0x1]
      %v320 = vperm.slane %v318, 0
      %v322 = vmul.f32 %v316, %v320
      %v323 = vmul.f32 %v317, %v320
      %v324 = vpack.c.bf16 %v323, %v322
      %v325 = vld [vmem:[%s3] sm:$0xf]
      %v326 = vld [vmem:[%s3 + $0x4] sm:$0xf]
      %v327 = vld [vmem:[%s3 + $0x8] sm:$0xf]
      %v328 = vld [vmem:[%s3 + $0xc] sm:$0xf]
      %v329 = vld [vmem:[%s3 + $0x10] sm:$0xf]
      %v330 = vld [vmem:[%s3 + $0x14] sm:$0xf]
      %v331 = vld [vmem:[%s3 + $0x18] sm:$0xf]
      %v332 = vld [vmem:[%s3 + $0x1c] sm:$0xf]
      %v333 = vld [vmem:[%s3 + $0x20] sm:$0xf]
      %v334 = vld [vmem:[%s3 + $0x24] sm:$0xf]
      %v335 = vld [vmem:[%s3 + $0x28] sm:$0xf]
      %v336 = vld [vmem:[%s3 + $0x2c] sm:$0xf]
      %v337 = vld [vmem:[%s3 + $0x30] sm:$0xf]
      %v338 = vld [vmem:[%s3 + $0x34] sm:$0xf]
      %v339 = vld [vmem:[%s3 + $0x38] sm:$0xf]
      %v340 = vld [vmem:[%s3 + $0x3c] sm:$0xf]
      %v341 = vld [vmem:[%s4] sm:$0x1]
      %v343 = vperm.slane %v341, 0
      %v361 = vunpack.c.l.b16 %v325
      %v362 = vunpack.c.l.b16 %v326
      %v363 = vunpack.c.l.b16 %v327
      %v364 = vunpack.c.l.b16 %v328
      %v365 = vunpack.c.l.b16 %v329
      %v366 = vunpack.c.l.b16 %v330
      %v367 = vunpack.c.l.b16 %v331
      %v368 = vunpack.c.l.b16 %v332
      %v369 = vunpack.c.l.b16 %v333
      %v370 = vunpack.c.l.b16 %v334
      %v371 = vunpack.c.l.b16 %v335
      %v372 = vunpack.c.l.b16 %v336
      %v373 = vunpack.c.l.b16 %v337
      %v374 = vunpack.c.l.b16 %v338
      %v375 = vunpack.c.l.b16 %v339
      %v376 = vunpack.c.l.b16 %v340
      %v377 = vpack.c.b16 %v362, %v361
      %v378 = vpack.c.b16 %v364, %v363
      %v379 = vpack.c.b16 %v366, %v365
      %v380 = vpack.c.b16 %v368, %v367
      %v381 = vpack.c.b16 %v370, %v369
      %v382 = vpack.c.b16 %v372, %v371
      %v383 = vpack.c.b16 %v374, %v373
      %v384 = vpack.c.b16 %v376, %v375
      %393 = vmatpush.bf16.msra.mxu0 %v384
      %394 = vmatpush.bf16.msra.mxu0 %v383
      %395 = vmatpush.bf16.msra.mxu0 %v382
      %396 = vmatpush.bf16.msra.mxu0 %v381
      %397 = vmatpush.bf16.msra.mxu0 %v380
      %398 = vmatpush.bf16.msra.mxu0 %v379
      %399 = vmatpush.bf16.msra.mxu0 %v378
      %400 = vmatpush.bf16.msra.mxu0 %v377
      %401 = vmatmul.bf16.gmra.mxu0 %v324
      %v402 = vpop.f32.mrf.mxu0
      %v403 = vadd.f32 %v343, %v402
      %v404 = vpop.f32.mrf.mxu0
      %v405 = vadd.f32 %v343, %v404
      %406 = vdwg.mxu0
      %v407 = vld [vmem:[%s302] sm:$0xf]
      %v408 = vld [vmem:[%s302 + $0x4] sm:$0xf]
      %v409 = vunpack.c.l.bf16 %v407
      %v410 = vunpack.c.l.bf16 %v408
      %v411 = vadd.f32 %v403, %v409
      %v412 = vadd.f32 %v405, %v410
      %v413 = vpack.c.bf16 %v411, %v411
      %v414 = vpack.c.bf16 %v412, %v412
      %415 = vst [vmem:[%s312] sm:$0xf] %v413
      %416 = vst [vmem:[%s312 + $0x4] sm:$0xf] %v414
      %s417 = smul.u32 2, %s21
      %p418 = scmp.lt.s32.totalorder %s20, 1
      %s419 = scalar_select %p418, %s20, 1
      %p420 = scmp.lt.s32.totalorder %s417, 1
      %s421 = scalar_select %p420, %s417, 1
      %s422 = smul.addr %s419, 2
      %s423 = sadd.s32 %s421, %s422
      %s424 = smul.addr %s423, 4
      %s425 = scalar_lea.vmem %s5, %s424
      // Predicated region
      $region41: #{mobilenet_v3_forward.24} parent=39 // pred_check
        %p426 = pneg %p172
      $region42: #{mobilenet_v3_forward.24} parent=39 // pred_check_branch
        %428 = sbr.rel (%p426) target = $region44
      $region43: #{mobilenet_v3_forward.24} parent=39 // pred_region
        %s429 = smul.u32 2, %s21
      $region44: #{mobilenet_v3_forward.24} parent=39 // pred_fallthru
        _
    $region40: #{mobilenet_v3_forward.24} parent=5 // pred_fallthru
      _
    %p430 = scmp.le.s32.totalorder 2, %s11
    // Predicated region
    $region45: #{mobilenet_v3_forward.24} parent=5 // pred_check
      %p431 = pneg %p430
    $region46: #{mobilenet_v3_forward.24} parent=5 // pred_check_branch
      %433 = sbr.rel (%p431) target = $region48
    $region47: #{mobilenet_v3_forward.24} parent=5 // pred_region
      %s434 = ssub.s32 %s11, 2
      // Predicated region
      $region49: #{mobilenet_v3_forward.24} parent=47 // pred_check
        %p435 = pneg %p178
      $region50: #{mobilenet_v3_forward.24} parent=47 // pred_check_branch
        %437 = sbr.rel (%p435) target = $region52
      $region51: #{mobilenet_v3_forward.24} parent=47 // pred_region
        %s438 = smul.u32 2, %s23
        %p439 = scmp.lt.s32.totalorder %s22, 1
        %s440 = scalar_select %p439, %s22, 1
        %p441 = scmp.lt.s32.totalorder %s438, 1
        %s442 = scalar_select %p441, %s438, 1
        %s443 = smul.addr %s440, 2
        %s444 = sadd.s32 %s442, %s443
        %s445 = smul.addr %s444, 4
        %s446 = scalar_lea.vmem %s5, %s445
      $region52: #{mobilenet_v3_forward.24} parent=47 // pred_fallthru
        _
    $region48: #{mobilenet_v3_forward.24} parent=5 // pred_fallthru
      _
  $region6: #{mobilenet_v3_forward.24} parent=0 // loop_footer
    %s15 = sadd.s32 1, %s11
  $region7: #{mobilenet_v3_forward.24} parent=0 // loop_footer_branch
    %10 = sbr.rel target = $region3
  $region8: #{mobilenet_v3_forward.24} parent=0 // loop_exit
    _

// kernel: mobilenet_v3_forward.26
$region0: #{mobilenet_v3_forward.26}
  #allocation0 [shape = 'u32[]', space=smem, size = 0x4, offset = 0x4, fixed_abs, tag = 'smem constant byte address 0x4 - core index']
  #allocation1 [shape = 'u32[72,128]{1,0:T(1,128)}', space=vmem, size = 0x9000, scoped, tag = 'internal scratch']
  %s0 = inlined_call_operand.vmem [shape: f32[1,2,256], index: 0, kind: input, shape index: {}]
  %s1 = inlined_call_operand.vmem [shape: bf16[256,128], index: 1, kind: input, shape index: {}]
  %s2 = inlined_call_operand.vmem [shape: f32[1,128], index: 2, kind: input, shape index: {}]
  %s3 = inlined_call_operand.vmem [shape: bf16[1,2,128], index: 3, kind: output, shape index: {}]
  %s4 = sld [smem:[#allocation0]]
  $region22: #{mobilenet_v3_forward.26} parent=0
    _
  %s6 = ssub.s32 1, %s4
  %s7 = scalar_select 0, %s6, %s4
  // Predicated region
  $region2: #{mobilenet_v3_forward.26} parent=0 // pred_check
    _
  $region3: #{mobilenet_v3_forward.26} parent=0 // pred_check_branch
    %9 = sbr.rel (0) target = $region5
  $region4: #{mobilenet_v3_forward.26} parent=0 // pred_region
    _
  $region5: #{mobilenet_v3_forward.26} parent=0 // pred_fallthru
    _
  // Predicated region
  $region6: #{mobilenet_v3_forward.26} parent=0 // pred_check
    _
  $region7: #{mobilenet_v3_forward.26} parent=0 // pred_check_branch
    %11 = sbr.rel (0) target = $region9
  $region8: #{mobilenet_v3_forward.26} parent=0 // pred_region
    _
  $region9: #{mobilenet_v3_forward.26} parent=0 // pred_fallthru
    _
  // Predicated region
  $region10: #{mobilenet_v3_forward.26} parent=0 // pred_check
    _
  $region11: #{mobilenet_v3_forward.26} parent=0 // pred_check_branch
    %13 = sbr.rel (0) target = $region13
  $region12: #{mobilenet_v3_forward.26} parent=0 // pred_region
    _
  $region13: #{mobilenet_v3_forward.26} parent=0 // pred_fallthru
    _
  %v14 = vld [vmem:[%s0] sm:$0xf]
  %16 = vst [vmem:[#allocation1] ss:$4 sm:$0xff] %v14
  %v17 = vld.sshfl [vmem:[#allocation1] sm:$0xff pattern:$0x73625140]
  %v18 = vld.sshfl [vmem:[#allocation1 + $0x8] sm:$0xff pattern:$0x73625140]
  %v21 = vpack.c.bf16 %v17, %v17
  %v22 = vpack.c.bf16 %v18, %v18
  %v23 = vld [vmem:[%s1] sm:$0xf]
  %v24 = vld [vmem:[%s1 + $0x4] sm:$0xf]
  %v25 = vld [vmem:[%s1 + $0x8] sm:$0xf]
  %v26 = vld [vmem:[%s1 + $0xc] sm:$0xf]
  %v27 = vld [vmem:[%s1 + $0x10] sm:$0xf]
  %v28 = vld [vmem:[%s1 + $0x14] sm:$0xf]
  %v29 = vld [vmem:[%s1 + $0x18] sm:$0xf]
  %v30 = vld [vmem:[%s1 + $0x1c] sm:$0xf]
  %v31 = vld [vmem:[%s1 + $0x20] sm:$0xf]
  %v32 = vld [vmem:[%s1 + $0x24] sm:$0xf]
  %v33 = vld [vmem:[%s1 + $0x28] sm:$0xf]
  %v34 = vld [vmem:[%s1 + $0x2c] sm:$0xf]
  %v35 = vld [vmem:[%s1 + $0x30] sm:$0xf]
  %v36 = vld [vmem:[%s1 + $0x34] sm:$0xf]
  %v37 = vld [vmem:[%s1 + $0x38] sm:$0xf]
  %v38 = vld [vmem:[%s1 + $0x3c] sm:$0xf]
  %v39 = vld [vmem:[%s1 + $0x40] sm:$0xf]
  %v40 = vld [vmem:[%s1 + $0x44] sm:$0xf]
  %v41 = vld [vmem:[%s1 + $0x48] sm:$0xf]
  %v42 = vld [vmem:[%s1 + $0x4c] sm:$0xf]
  %v43 = vld [vmem:[%s1 + $0x50] sm:$0xf]
  %v44 = vld [vmem:[%s1 + $0x54] sm:$0xf]
  %v45 = vld [vmem:[%s1 + $0x58] sm:$0xf]
  %v46 = vld [vmem:[%s1 + $0x5c] sm:$0xf]
  %v47 = vld [vmem:[%s1 + $0x60] sm:$0xf]
  %v48 = vld [vmem:[%s1 + $0x64] sm:$0xf]
  %v49 = vld [vmem:[%s1 + $0x68] sm:$0xf]
  %v50 = vld [vmem:[%s1 + $0x6c] sm:$0xf]
  %v51 = vld [vmem:[%s1 + $0x70] sm:$0xf]
  %v52 = vld [vmem:[%s1 + $0x74] sm:$0xf]
  %v53 = vld [vmem:[%s1 + $0x78] sm:$0xf]
  %v54 = vld [vmem:[%s1 + $0x7c] sm:$0xf]
  %v55 = vld [vmem:[%s2] sm:$0x1]
  %v57 = vperm.slane %v55, 0
  %v91 = vunpack.c.l.b16 %v23
  %v92 = vunpack.c.l.b16 %v24
  %v93 = vunpack.c.l.b16 %v25
  %v94 = vunpack.c.l.b16 %v26
  %v95 = vunpack.c.l.b16 %v27
  %v96 = vunpack.c.l.b16 %v28
  %v97 = vunpack.c.l.b16 %v29
  %v98 = vunpack.c.l.b16 %v30
  %v99 = vunpack.c.l.b16 %v31
  %v100 = vunpack.c.l.b16 %v32
  %v101 = vunpack.c.l.b16 %v33
  %v102 = vunpack.c.l.b16 %v34
  %v103 = vunpack.c.l.b16 %v35
  %v104 = vunpack.c.l.b16 %v36
  %v105 = vunpack.c.l.b16 %v37
  %v106 = vunpack.c.l.b16 %v38
  %v107 = vunpack.c.l.b16 %v39
  %v108 = vunpack.c.l.b16 %v40
  %v109 = vunpack.c.l.b16 %v41
  %v110 = vunpack.c.l.b16 %v42
  %v111 = vunpack.c.l.b16 %v43
  %v112 = vunpack.c.l.b16 %v44
  %v113 = vunpack.c.l.b16 %v45
  %v114 = vunpack.c.l.b16 %v46
  %v115 = vunpack.c.l.b16 %v47
  %v116 = vunpack.c.l.b16 %v48
  %v117 = vunpack.c.l.b16 %v49
  %v118 = vunpack.c.l.b16 %v50
  %v119 = vunpack.c.l.b16 %v51
  %v120 = vunpack.c.l.b16 %v52
  %v121 = vunpack.c.l.b16 %v53
  %v122 = vunpack.c.l.b16 %v54
  %v123 = vpack.c.b16 %v92, %v91
  %v124 = vpack.c.b16 %v94, %v93
  %v125 = vpack.c.b16 %v96, %v95
  %v126 = vpack.c.b16 %v98, %v97
  %v127 = vpack.c.b16 %v100, %v99
  %v128 = vpack.c.b16 %v102, %v101
  %v129 = vpack.c.b16 %v104, %v103
  %v130 = vpack.c.b16 %v106, %v105
  %v131 = vpack.c.b16 %v108, %v107
  %v132 = vpack.c.b16 %v110, %v109
  %v133 = vpack.c.b16 %v112, %v111
  %v134 = vpack.c.b16 %v114, %v113
  %v135 = vpack.c.b16 %v116, %v115
  %v136 = vpack.c.b16 %v118, %v117
  %v137 = vpack.c.b16 %v120, %v119
  %v138 = vpack.c.b16 %v122, %v121
  %155 = vmatpush.bf16.msra.mxu0 %v130
  %156 = vmatpush.bf16.msra.mxu0 %v129
  %157 = vmatpush.bf16.msra.mxu0 %v128
  %158 = vmatpush.bf16.msra.mxu0 %v127
  %159 = vmatpush.bf16.msra.mxu0 %v126
  %160 = vmatpush.bf16.msra.mxu0 %v125
  %161 = vmatpush.bf16.msra.mxu0 %v124
  %162 = vmatpush.bf16.msra.mxu0 %v123
  %163 = vmatmul.bf16.gmra.mxu0 %v21
  %v164 = vpop.f32.mrf.mxu0
  %v165 = vadd.f32 %v57, %v164
  %v166 = vpop.f32.mrf.mxu0
  %167 = vdwg.mxu0
  %168 = vmatpush.bf16.msra.mxu0 %v138
  %169 = vmatpush.bf16.msra.mxu0 %v137
  %170 = vmatpush.bf16.msra.mxu0 %v136
  %171 = vmatpush.bf16.msra.mxu0 %v135
  %172 = vmatpush.bf16.msra.mxu0 %v134
  %173 = vmatpush.bf16.msra.mxu0 %v133
  %174 = vmatpush.bf16.msra.mxu0 %v132
  %175 = vmatpush.bf16.msra.mxu0 %v131
  %176 = vmatmul.bf16.gmra.mxu0 %v22
  %v177 = vpop.f32.mrf.mxu0
  %v178 = vadd.f32 %v165, %v177
  %v179 = vpop.f32.mrf.mxu0
  %180 = vdwg.mxu0
  %v181 = vadd.f32 %v178, 3.0
  %v182 = vmax.f32 %v181, 0.0
  %v183 = vmin.f32 %v182, 6.0
  %v184 = vmul.f32 %v178, %v183
  %v185 = vmul.f32 %v184, 0.16666667
  %v186 = vpack.c.bf16 %v185, %v185
  %187 = vst [vmem:[%s3] sm:$0x1] %v186
  // Predicated region
  $region14: #{mobilenet_v3_forward.26} parent=0 // pred_check
    _
  $region15: #{mobilenet_v3_forward.26} parent=0 // pred_check_branch
    %189 = sbr.rel (0) target = $region17
  $region16: #{mobilenet_v3_forward.26} parent=0 // pred_region
    _
  $region17: #{mobilenet_v3_forward.26} parent=0 // pred_fallthru
    _
  // Predicated region
  $region18: #{mobilenet_v3_forward.26} parent=0 // pred_check
    _
  $region19: #{mobilenet_v3_forward.26} parent=0 // pred_check_branch
    %191 = sbr.rel (0) target = $region21
  $region20: #{mobilenet_v3_forward.26} parent=0 // pred_region
    _
  $region21: #{mobilenet_v3_forward.26} parent=0 // pred_fallthru
    _

// kernel: mobilenet_v3_forward.27
$region0: #{mobilenet_v3_forward.27}
  #allocation0 [shape = 'u32[]', space=smem, size = 0x4, offset = 0x4, fixed_abs, tag = 'smem constant byte address 0x4 - core index']
  #allocation1 [shape = 'u32[72,128]{1,0:T(1,128)}', space=vmem, size = 0x9000, scoped, tag = 'internal scratch']
  %s0 = inlined_call_operand.vmem [shape: bf16[1,2,128], index: 0, kind: input, shape index: {}]
  %s1 = inlined_call_operand.vmem [shape: bf16[128,128], index: 1, kind: input, shape index: {}]
  %s2 = inlined_call_operand.vmem [shape: f32[1,128], index: 2, kind: input, shape index: {}]
  %s3 = inlined_call_operand.vmem [shape: bf16[1,2,128], index: 3, kind: output, shape index: {}]
  %s4 = sld [smem:[#allocation0]]
  $region22: #{mobilenet_v3_forward.27} parent=0
    _
  %s6 = ssub.s32 1, %s4
  %s7 = scalar_select 0, %s6, %s4
  // Predicated region
  $region2: #{mobilenet_v3_forward.27} parent=0 // pred_check
    _
  $region3: #{mobilenet_v3_forward.27} parent=0 // pred_check_branch
    %9 = sbr.rel (0) target = $region5
  $region4: #{mobilenet_v3_forward.27} parent=0 // pred_region
    _
  $region5: #{mobilenet_v3_forward.27} parent=0 // pred_fallthru
    _
  // Predicated region
  $region6: #{mobilenet_v3_forward.27} parent=0 // pred_check
    _
  $region7: #{mobilenet_v3_forward.27} parent=0 // pred_check_branch
    %11 = sbr.rel (0) target = $region9
  $region8: #{mobilenet_v3_forward.27} parent=0 // pred_region
    _
  $region9: #{mobilenet_v3_forward.27} parent=0 // pred_fallthru
    _
  // Predicated region
  $region10: #{mobilenet_v3_forward.27} parent=0 // pred_check
    _
  $region11: #{mobilenet_v3_forward.27} parent=0 // pred_check_branch
    %13 = sbr.rel (0) target = $region13
  $region12: #{mobilenet_v3_forward.27} parent=0 // pred_region
    _
  $region13: #{mobilenet_v3_forward.27} parent=0 // pred_fallthru
    _
  %v14 = vld [vmem:[%s0] sm:$0x1]
  %v15 = vld [vmem:[%s1] sm:$0xf]
  %v16 = vld [vmem:[%s1 + $0x4] sm:$0xf]
  %v17 = vld [vmem:[%s1 + $0x8] sm:$0xf]
  %v18 = vld [vmem:[%s1 + $0xc] sm:$0xf]
  %v19 = vld [vmem:[%s1 + $0x10] sm:$0xf]
  %v20 = vld [vmem:[%s1 + $0x14] sm:$0xf]
  %v21 = vld [vmem:[%s1 + $0x18] sm:$0xf]
  %v22 = vld [vmem:[%s1 + $0x1c] sm:$0xf]
  %v23 = vld [vmem:[%s1 + $0x20] sm:$0xf]
  %v24 = vld [vmem:[%s1 + $0x24] sm:$0xf]
  %v25 = vld [vmem:[%s1 + $0x28] sm:$0xf]
  %v26 = vld [vmem:[%s1 + $0x2c] sm:$0xf]
  %v27 = vld [vmem:[%s1 + $0x30] sm:$0xf]
  %v28 = vld [vmem:[%s1 + $0x34] sm:$0xf]
  %v29 = vld [vmem:[%s1 + $0x38] sm:$0xf]
  %v30 = vld [vmem:[%s1 + $0x3c] sm:$0xf]
  %v31 = vld [vmem:[%s2] sm:$0x1]
  %v33 = vperm.slane %v31, 0
  %v51 = vunpack.c.l.b16 %v15
  %v52 = vunpack.c.l.b16 %v16
  %v53 = vunpack.c.l.b16 %v17
  %v54 = vunpack.c.l.b16 %v18
  %v55 = vunpack.c.l.b16 %v19
  %v56 = vunpack.c.l.b16 %v20
  %v57 = vunpack.c.l.b16 %v21
  %v58 = vunpack.c.l.b16 %v22
  %v59 = vunpack.c.l.b16 %v23
  %v60 = vunpack.c.l.b16 %v24
  %v61 = vunpack.c.l.b16 %v25
  %v62 = vunpack.c.l.b16 %v26
  %v63 = vunpack.c.l.b16 %v27
  %v64 = vunpack.c.l.b16 %v28
  %v65 = vunpack.c.l.b16 %v29
  %v66 = vunpack.c.l.b16 %v30
  %v67 = vpack.c.b16 %v52, %v51
  %v68 = vpack.c.b16 %v54, %v53
  %v69 = vpack.c.b16 %v56, %v55
  %v70 = vpack.c.b16 %v58, %v57
  %v71 = vpack.c.b16 %v60, %v59
  %v72 = vpack.c.b16 %v62, %v61
  %v73 = vpack.c.b16 %v64, %v63
  %v74 = vpack.c.b16 %v66, %v65
  %83 = vmatpush.bf16.msra.mxu0 %v74
  %84 = vmatpush.bf16.msra.mxu0 %v73
  %85 = vmatpush.bf16.msra.mxu0 %v72
  %86 = vmatpush.bf16.msra.mxu0 %v71
  %87 = vmatpush.bf16.msra.mxu0 %v70
  %88 = vmatpush.bf16.msra.mxu0 %v69
  %89 = vmatpush.bf16.msra.mxu0 %v68
  %90 = vmatpush.bf16.msra.mxu0 %v67
  %91 = vmatmul.bf16.gmra.mxu0 %v14
  %v92 = vpop.f32.mrf.mxu0
  %v93 = vadd.f32 %v33, %v92
  %v94 = vpop.f32.mrf.mxu0
  %95 = vdwg.mxu0
  %v96 = vpack.c.bf16 %v93, %v93
  %97 = vst [vmem:[%s3] sm:$0x1] %v96
  // Predicated region
  $region14: #{mobilenet_v3_forward.27} parent=0 // pred_check
    _
  $region15: #{mobilenet_v3_forward.27} parent=0 // pred_check_branch
    %99 = sbr.rel (0) target = $region17
  $region16: #{mobilenet_v3_forward.27} parent=0 // pred_region
    _
  $region17: #{mobilenet_v3_forward.27} parent=0 // pred_fallthru
    _
  // Predicated region
  $region18: #{mobilenet_v3_forward.27} parent=0 // pred_check
    _
  $region19: #{mobilenet_v3_forward.27} parent=0 // pred_check_branch
    %101 = sbr.rel (0) target = $region21
  $region20: #{mobilenet_v3_forward.27} parent=0 // pred_region
    _
  $region21: #{mobilenet_v3_forward.27} parent=0 // pred_fallthru
    _

</llo_original>
